<compile_context>
chip_gen: v5e
topology: v5e:2x2
jax: 0.10.0
libtpu: 0.0.40
codegen_flags: <defaults>
</compile_context>

<pallas_src>
import functools

import jax
import jax.numpy as jnp
from jax.experimental import pallas as pl
from jax.experimental.pallas import tpu as pltpu


def cuboid_attention_kernel(x_ref, *refs, heads, scale, fuse_qkv):
    """x_ref: (nb, L, C) bf16; weights bf16; bias f32; output (nb, L, C) f32."""
    if fuse_qkv:
        wqkv_ref, wp_ref, bp_ref, o_ref = refs
    else:
        wq_ref, wk_ref, wv_ref, wp_ref, bp_ref, o_ref = refs

    nb, L, C = x_ref.shape
    hd = C // heads
    R = nb * L

    # Windows stacked into the MXU M dimension: (nb, L, C) -> (nb*L, C).
    x2 = x_ref[...].reshape(R, C)

    if fuse_qkv:
        # One (R, C) x (C, 3C) dot; 128-aligned lane slices of the result.
        qkv = jnp.dot(x2, wqkv_ref[...], preferred_element_type=jnp.float32)
        q2 = qkv[:, 0 * C:1 * C]
        k2 = qkv[:, 1 * C:2 * C]
        v2 = qkv[:, 2 * C:3 * C]
    else:
        q2 = jnp.dot(x2, wq_ref[...], preferred_element_type=jnp.float32)
        k2 = jnp.dot(x2, wk_ref[...], preferred_element_type=jnp.float32)
        v2 = jnp.dot(x2, wv_ref[...], preferred_element_type=jnp.float32)

    q3 = (q2 * scale).reshape(nb, L, C).astype(jnp.bfloat16)
    k3 = k2.reshape(nb, L, C).astype(jnp.bfloat16)
    v3 = v2.reshape(nb, L, C).astype(jnp.bfloat16)

    # Fold heads into the leading batch dim: (heads*nb, L, hd).  The batch
    # index is h*nb + window, so the score / PV matmuls below run as ONE
    # batched MXU dot_general over all heads and windows.
    def stack_heads(t3):
        return jnp.concatenate(
            [t3[:, :, h * hd:(h + 1) * hd] for h in range(heads)], axis=0)

    qh = stack_heads(q3)
    kh = stack_heads(k3)
    vh = stack_heads(v3)

    s = jnp.einsum('bld,bmd->blm', qh, kh,
                   preferred_element_type=jnp.float32)       # (heads*nb, L, L)
    s = s - jnp.max(s, axis=-1, keepdims=True)
    p = jnp.exp(s)
    p = p * pl.reciprocal(jnp.sum(p, axis=-1, keepdims=True), approx=True)
    oh = jnp.einsum('blm,bmd->bld', p.astype(jnp.bfloat16), vh,
                    preferred_element_type=jnp.float32)      # (heads*nb, L, hd)

    # Concatenate heads back onto the lane dim and run ONE output projection
    # with contraction K = C.
    attn = jnp.concatenate(
        [oh[h * nb:(h + 1) * nb] for h in range(heads)], axis=-1)  # (nb, L, C)
    attn2 = attn.reshape(R, C).astype(jnp.bfloat16)
    out2 = jnp.dot(attn2, wp_ref[...],
                   preferred_element_type=jnp.float32) + bp_ref[...]
    o_ref[...] = out2.reshape(nb, L, C)


def _vmem_capacity_bytes():
    """Physical VMEM of the local TPU (64 MiB on v7x, 128 MiB on v5e/v6e)."""
    try:
        info = pltpu.get_tpu_info()
        cap = int(getattr(info, "vmem_capacity_bytes", 0) or 0)
        if cap > 0:
            return cap
    except Exception:
        pass
    return 64 << 20   # conservative (v7x-sized) default


def _live_bytes_model(l, c, heads):
    """Conservative per-window live-VMEM bytes for one grid step:
    double-buffered bf16 input + f32 output tiles, f32 q/k/v + bf16 copies,
    (heads, L, L) f32 score + prob (+ bf16 prob) tensors, attn/out buffers."""
    per_win = 42 * l * c + 10 * heads * l * l
    weights = 2 * (8 * c * c) + 8 * c        # double-buffered bf16 weights + bias
    return per_win, weights


def _choose_nb(nw, l, c, heads, vmem_cap):
    """Windows per grid step from a live-bytes budget (<= ~55% of VMEM),
    keeping pipeline depth (grid >= 8) and MXU M (nb*L >= 128) when possible."""
    per_win, weights = _live_bytes_model(l, c, heads)
    budget = max(per_win, int(0.55 * vmem_cap) - weights)
    nb_cap = max(1, budget // per_win)
    # Bigger I/O tiles on 128 MiB parts (v5e/v6e), smaller on v7x (64 MiB).
    tile_target = (6 << 20) if vmem_cap >= (96 << 20) else (3 << 20)
    nb_cap = min(nb_cap, max(1, tile_target // (6 * l * c)), 1024)
    divs = [d for d in range(1, nw + 1) if nw % d == 0 and d <= nb_cap] or [1]
    deep = [d for d in divs if nw // d >= 8]          # DMA/compute overlap
    wide = [d for d in deep if d * l >= 128]          # MXU M >= 128 rows
    if wide:
        return max(wide)
    if deep and max(deep) * l >= 64:
        return max(deep)
    return max(divs)


def cuboid_self_attention(x, params, *, heads, window_size):
    """x: (B, T, H, W, C) float32 -> (B, T, H, W, C), matching the PyTorch
    CuboidSelfAttention.forward (dropout is identity)."""
    B, T, H, W, C = x.shape
    ws = window_size
    assert H % ws == 0 and W % ws == 0, "H, W must be divisible by window_size"
    assert C % heads == 0, "dim must be divisible by heads"
    L = T * ws * ws
    scale = float((C // heads) ** (-0.5))

    # Window partition (pure permutation, JAX glue outside the kernel).  The
    # bf16 cast is fused into the permute so the kernel reads half the bytes.
    # TODO(synk): folding the partition/reverse into the pallas grid needs a
    # strided index_map over (H/ws, W/ws) with ws < 8 rows; kept outside.
    xw = x.reshape(B, T, H // ws, ws, W // ws, ws, C)
    xw = xw.transpose(0, 2, 4, 1, 3, 5, 6).astype(jnp.bfloat16).reshape(-1, L, C)
    NW = xw.shape[0]

    vmem_cap = _vmem_capacity_bytes()
    nb = _choose_nb(NW, L, C, heads, vmem_cap)
    grid = (NW // nb,)

    # Fused (C, 3C) QKV dot only when the in-kernel q/k/v lane slices land on
    # 128-aligned offsets; otherwise split the weight once in the wrapper.
    fuse_qkv = (C % 128 == 0)
    w_qkv = params["w_qkv"]
    wp = params["w_proj"].astype(jnp.bfloat16)
    bp = params["b_proj"].reshape(1, C).astype(jnp.float32)

    if fuse_qkv:
        weight_args = (w_qkv.astype(jnp.bfloat16),)
        weight_specs = [pl.BlockSpec((C, 3 * C), lambda i: (0, 0))]
    else:
        weight_args = (w_qkv[:, 0 * C:1 * C].astype(jnp.bfloat16),
                       w_qkv[:, 1 * C:2 * C].astype(jnp.bfloat16),
                       w_qkv[:, 2 * C:3 * C].astype(jnp.bfloat16))
        weight_specs = [pl.BlockSpec((C, C), lambda i: (0, 0))] * 3

    kernel = functools.partial(cuboid_attention_kernel, heads=heads,
                               scale=scale, fuse_qkv=fuse_qkv)

    # VMEM limit from the same live-bytes model used to pick nb, with margin.
    per_win, weight_bytes = _live_bytes_model(L, C, heads)
    vmem_limit = nb * per_win + weight_bytes + (4 << 20)
    vmem_limit = int(max(min(vmem_limit, int(0.9 * vmem_cap)), 32 << 20))

    # Advisory cost estimate for the XLA scheduler.
    flops = 8 * NW * L * C * C + 4 * NW * L * L * C
    transcendentals = NW * heads * L * L + NW * heads * L
    bytes_accessed = NW * L * C * (2 + 4) + 4 * C * C * 2 + C * 4

    out = pl.pallas_call(
        kernel,
        out_shape=jax.ShapeDtypeStruct((NW, L, C), jnp.float32),
        grid_spec=pltpu.PrefetchScalarGridSpec(
            num_scalar_prefetch=0,
            grid=grid,
            in_specs=[pl.BlockSpec((nb, L, C), lambda i: (i, 0, 0))]
                     + weight_specs
                     + [pl.BlockSpec((C, C), lambda i: (0, 0)),
                        pl.BlockSpec((1, C), lambda i: (0, 0))],
            out_specs=pl.BlockSpec((nb, L, C), lambda i: (i, 0, 0)),
        ),
        compiler_params=pltpu.CompilerParams(
            dimension_semantics=("parallel",),
            vmem_limit_bytes=vmem_limit,
        ),
        cost_estimate=pl.CostEstimate(
            flops=int(flops),
            transcendentals=int(transcendentals),
            bytes_accessed=int(bytes_accessed)),
    )(xw, *weight_args, wp, bp)

    # Window reverse (glue).
    out = out.reshape(B, H // ws, W // ws, T, ws, ws, C)
    out = out.transpose(0, 3, 1, 4, 2, 5, 6).reshape(B, T, H, W, C)
    return out


def cuboid_self_attention_reference(x, params, *, heads, window_size):
    """Pure-JAX f32 reference of the PyTorch forward (for a tolerance check)."""
    B, T, H, W, C = x.shape
    ws = window_size
    L = T * ws * ws
    hd = C // heads
    scale = (C // heads) ** (-0.5)
    xw = x.reshape(B, T, H // ws, ws, W // ws, ws, C)
    xw = xw.transpose(0, 2, 4, 1, 3, 5, 6).reshape(-1, L, C)
    q = xw @ params["w_qkv"][:, 0 * C:1 * C]
    k = xw @ params["w_qkv"][:, 1 * C:2 * C]
    v = xw @ params["w_qkv"][:, 2 * C:3 * C]

    def split(t):
        return t.reshape(-1, L, heads, hd).transpose(0, 2, 1, 3)

    qh, kh, vh = split(q), split(k), split(v)
    s = jnp.einsum('nhld,nhmd->nhlm', qh, kh) * scale
    p = jax.nn.softmax(s, axis=-1)
    o = jnp.einsum('nhlm,nhmd->nhld', p, vh)
    o = o.transpose(0, 2, 1, 3).reshape(-1, L, C)
    o = o @ params["w_proj"] + params["b_proj"]
    o = o.reshape(B, H // ws, W // ws, T, ws, ws, C)
    return o.transpose(0, 3, 1, 4, 2, 5, 6).reshape(B, T, H, W, C)


def init_params(key, dim):
    """Deterministic synthetic parameters (JAX layout: x @ W + b)."""
    ks = jax.random.split(key, 3)
    s = 0.02
    return {
        "w_qkv": s * jax.random.normal(ks[0], (dim, 3 * dim), jnp.float32),
        "w_proj": s * jax.random.normal(ks[1], (dim, dim), jnp.float32),
        "b_proj": s * jax.random.normal(ks[2], (dim,), jnp.float32),
    }


if __name__ == "__main__":
    # Small shapes consistent with the module: (B, T, H, W, C)
    B, T, H, W = 2, 2, 8, 8
    dim, heads, window_size = 32, 4, 4

    key = jax.random.PRNGKey(0)
    kx, kp = jax.random.split(key)
    x = jax.random.normal(kx, (B, T, H, W, dim), jnp.float32)
    params = init_params(kp, dim)

    out = cuboid_self_attention(x, params, heads=heads, window_size=window_size)
    out = jax.block_until_ready(out)

    assert out.shape == (B, T, H, W, dim)
    assert bool(jnp.all(jnp.isfinite(out)))

    # bf16 MXU + approx reciprocal => loose (not bitwise) agreement with f32.
    ref = cuboid_self_attention_reference(x, params, heads=heads,
                                          window_size=window_size)
    err = float(jnp.max(jnp.abs(out - ref)))
    assert err < 5e-3, f"max abs error vs f32 reference too large: {err}"

    print("KERNEL_OK")
</pallas_src>

<mosaic_0001>
module attributes {stable_mosaic.version = 11 : i64} {
  func.func @cuboid_attention_kernel(%arg0: i32, %arg1: memref<8x32x32xbf16, #tpu.memory_space<vmem>>, %arg2: memref<32x32xbf16, #tpu.memory_space<vmem>>, %arg3: memref<32x32xbf16, #tpu.memory_space<vmem>>, %arg4: memref<32x32xbf16, #tpu.memory_space<vmem>>, %arg5: memref<32x32xbf16, #tpu.memory_space<vmem>>, %arg6: memref<1x32xf32, #tpu.memory_space<vmem>>, %arg7: memref<8x32x32xf32, #tpu.memory_space<vmem>>) attributes {dimension_semantics = [#tpu.dimension_semantics<parallel>], iteration_bounds = array<i64: 1>, scalar_prefetch = 0 : i64, scratch_operands = 0 : i64, tpu.core_type = #tpu.core_type<tc>, window_params = [{transform_indices = @transform_0, window_bounds = array<i64: 8, 32, 32>}, {pipeline_mode = #tpu.pipeline_mode<synchronous>, transform_indices = @transform_1, window_bounds = array<i64: 32, 32>}, {pipeline_mode = #tpu.pipeline_mode<synchronous>, transform_indices = @transform_2, window_bounds = array<i64: 32, 32>}, {pipeline_mode = #tpu.pipeline_mode<synchronous>, transform_indices = @transform_3, window_bounds = array<i64: 32, 32>}, {pipeline_mode = #tpu.pipeline_mode<synchronous>, transform_indices = @transform_4, window_bounds = array<i64: 32, 32>}, {pipeline_mode = #tpu.pipeline_mode<synchronous>, transform_indices = @transform_5, window_bounds = array<i64: 1, 32>}, {transform_indices = @transform_6, window_bounds = array<i64: 8, 32, 32>}]} {
    %c0 = arith.constant 0 : index
    %c0_0 = arith.constant 0 : index
    %c0_1 = arith.constant 0 : index
    %0 = vector.load %arg1[%c0, %c0_0, %c0_1] : memref<8x32x32xbf16, #tpu.memory_space<vmem>>, vector<8x32x32xbf16>
    %1 = vector.shape_cast %0 : vector<8x32x32xbf16> to vector<256x32xbf16>
    %c0_2 = arith.constant 0 : index
    %c0_3 = arith.constant 0 : index
    %2 = vector.load %arg2[%c0_2, %c0_3] : memref<32x32xbf16, #tpu.memory_space<vmem>>, vector<32x32xbf16>
    %cst = arith.constant dense<0.000000e+00> : vector<256x32xf32>
    %3 = tpu.matmul %1, %2, %cst {dimension_numbers = #tpu.dot_dimension_numbers<[1], [0], [0], [1], [0, 0, 1, 1], [], []>} : vector<256x32xbf16>, vector<32x32xbf16>, vector<256x32xf32> -> vector<256x32xf32>
    %c0_4 = arith.constant 0 : index
    %c0_5 = arith.constant 0 : index
    %4 = vector.load %arg3[%c0_4, %c0_5] : memref<32x32xbf16, #tpu.memory_space<vmem>>, vector<32x32xbf16>
    %cst_6 = arith.constant dense<0.000000e+00> : vector<256x32xf32>
    %5 = tpu.matmul %1, %4, %cst_6 {dimension_numbers = #tpu.dot_dimension_numbers<[1], [0], [0], [1], [0, 0, 1, 1], [], []>} : vector<256x32xbf16>, vector<32x32xbf16>, vector<256x32xf32> -> vector<256x32xf32>
    %c0_7 = arith.constant 0 : index
    %c0_8 = arith.constant 0 : index
    %6 = vector.load %arg4[%c0_7, %c0_8] : memref<32x32xbf16, #tpu.memory_space<vmem>>, vector<32x32xbf16>
    %cst_9 = arith.constant dense<0.000000e+00> : vector<256x32xf32>
    %7 = tpu.matmul %1, %6, %cst_9 {dimension_numbers = #tpu.dot_dimension_numbers<[1], [0], [0], [1], [0, 0, 1, 1], [], []>} : vector<256x32xbf16>, vector<32x32xbf16>, vector<256x32xf32> -> vector<256x32xf32>
    %cst_10 = arith.constant 0.353553385 : f32
    %8 = vector.broadcast %cst_10 : f32 to vector<256x32xf32>
    %9 = arith.mulf %3, %8 : vector<256x32xf32>
    %10 = vector.shape_cast %9 : vector<256x32xf32> to vector<8x32x32xf32>
    %11 = arith.truncf %10 : vector<8x32x32xf32> to vector<8x32x32xbf16>
    %12 = vector.shape_cast %5 : vector<256x32xf32> to vector<8x32x32xf32>
    %13 = arith.truncf %12 : vector<8x32x32xf32> to vector<8x32x32xbf16>
    %14 = vector.shape_cast %7 : vector<256x32xf32> to vector<8x32x32xf32>
    %15 = arith.truncf %14 : vector<8x32x32xf32> to vector<8x32x32xbf16>
    %16 = vector.extract_strided_slice %11 {offsets = [0, 0, 0], sizes = [8, 32, 8], strides = [1, 1, 1]} : vector<8x32x32xbf16> to vector<8x32x8xbf16>
    %17 = vector.extract_strided_slice %11 {offsets = [0, 0, 8], sizes = [8, 32, 8], strides = [1, 1, 1]} : vector<8x32x32xbf16> to vector<8x32x8xbf16>
    %18 = vector.extract_strided_slice %11 {offsets = [0, 0, 16], sizes = [8, 32, 8], strides = [1, 1, 1]} : vector<8x32x32xbf16> to vector<8x32x8xbf16>
    %19 = vector.extract_strided_slice %11 {offsets = [0, 0, 24], sizes = [8, 32, 8], strides = [1, 1, 1]} : vector<8x32x32xbf16> to vector<8x32x8xbf16>
    %20 = tpu.concatenate %16, %17, %18, %19 in 0 : vector<8x32x8xbf16>, vector<8x32x8xbf16>, vector<8x32x8xbf16>, vector<8x32x8xbf16> -> vector<32x32x8xbf16>
    %21 = vector.extract_strided_slice %13 {offsets = [0, 0, 0], sizes = [8, 32, 8], strides = [1, 1, 1]} : vector<8x32x32xbf16> to vector<8x32x8xbf16>
    %22 = vector.extract_strided_slice %13 {offsets = [0, 0, 8], sizes = [8, 32, 8], strides = [1, 1, 1]} : vector<8x32x32xbf16> to vector<8x32x8xbf16>
    %23 = vector.extract_strided_slice %13 {offsets = [0, 0, 16], sizes = [8, 32, 8], strides = [1, 1, 1]} : vector<8x32x32xbf16> to vector<8x32x8xbf16>
    %24 = vector.extract_strided_slice %13 {offsets = [0, 0, 24], sizes = [8, 32, 8], strides = [1, 1, 1]} : vector<8x32x32xbf16> to vector<8x32x8xbf16>
    %25 = tpu.concatenate %21, %22, %23, %24 in 0 : vector<8x32x8xbf16>, vector<8x32x8xbf16>, vector<8x32x8xbf16>, vector<8x32x8xbf16> -> vector<32x32x8xbf16>
    %26 = vector.extract_strided_slice %15 {offsets = [0, 0, 0], sizes = [8, 32, 8], strides = [1, 1, 1]} : vector<8x32x32xbf16> to vector<8x32x8xbf16>
    %27 = vector.extract_strided_slice %15 {offsets = [0, 0, 8], sizes = [8, 32, 8], strides = [1, 1, 1]} : vector<8x32x32xbf16> to vector<8x32x8xbf16>
    %28 = vector.extract_strided_slice %15 {offsets = [0, 0, 16], sizes = [8, 32, 8], strides = [1, 1, 1]} : vector<8x32x32xbf16> to vector<8x32x8xbf16>
    %29 = vector.extract_strided_slice %15 {offsets = [0, 0, 24], sizes = [8, 32, 8], strides = [1, 1, 1]} : vector<8x32x32xbf16> to vector<8x32x8xbf16>
    %30 = tpu.concatenate %26, %27, %28, %29 in 0 : vector<8x32x8xbf16>, vector<8x32x8xbf16>, vector<8x32x8xbf16>, vector<8x32x8xbf16> -> vector<32x32x8xbf16>
    "tpu.trace_start"() <{level = 10 : i32, message = "bld,bmd->blm"}> : () -> ()
    %cst_11 = arith.constant dense<0.000000e+00> : vector<32x32x32xf32>
    %31 = tpu.matmul %20, %25, %cst_11 {dimension_numbers = #tpu.dot_dimension_numbers<[2], [2], [1], [1], [0, 0, 0, 1, 1, 1], [0], [0]>} : vector<32x32x8xbf16>, vector<32x32x8xbf16>, vector<32x32x32xf32> -> vector<32x32x32xf32>
    "tpu.trace_stop"() : () -> ()
    %cst_12 = arith.constant dense<0xFF800000> : vector<32x32xf32>
    %32 = vector.multi_reduction <maximumf>, %31, %cst_12 [2] : vector<32x32x32xf32> to vector<32x32xf32>
    %33 = vector.shape_cast %32 : vector<32x32xf32> to vector<32x32x1xf32>
    %34 = vector.broadcast %33 : vector<32x32x1xf32> to vector<32x32x32xf32>
    %35 = arith.subf %31, %34 : vector<32x32x32xf32>
    %36 = math.exp %35 : vector<32x32x32xf32>
    %cst_13 = arith.constant dense<0.000000e+00> : vector<32x32xf32>
    %37 = vector.multi_reduction <add>, %36, %cst_13 [2] : vector<32x32x32xf32> to vector<32x32xf32>
    %38 = vector.shape_cast %37 : vector<32x32xf32> to vector<32x32x1xf32>
    %39 = tpu.reciprocal %38 {approx = true} : vector<32x32x1xf32> -> vector<32x32x1xf32>
    %40 = vector.broadcast %39 : vector<32x32x1xf32> to vector<32x32x32xf32>
    %41 = arith.mulf %36, %40 : vector<32x32x32xf32>
    %42 = arith.truncf %41 : vector<32x32x32xf32> to vector<32x32x32xbf16>
    "tpu.trace_start"() <{level = 10 : i32, message = "blm,bmd->bld"}> : () -> ()
    %cst_14 = arith.constant dense<0.000000e+00> : vector<32x32x8xf32>
    %43 = tpu.matmul %42, %30, %cst_14 {dimension_numbers = #tpu.dot_dimension_numbers<[2], [1], [1], [2], [0, 0, 0, 1, 1, 2], [0], [0]>} : vector<32x32x32xbf16>, vector<32x32x8xbf16>, vector<32x32x8xf32> -> vector<32x32x8xf32>
    "tpu.trace_stop"() : () -> ()
    %44 = vector.extract_strided_slice %43 {offsets = [0, 0, 0], sizes = [8, 32, 8], strides = [1, 1, 1]} : vector<32x32x8xf32> to vector<8x32x8xf32>
    %45 = vector.extract_strided_slice %43 {offsets = [8, 0, 0], sizes = [8, 32, 8], strides = [1, 1, 1]} : vector<32x32x8xf32> to vector<8x32x8xf32>
    %46 = vector.extract_strided_slice %43 {offsets = [16, 0, 0], sizes = [8, 32, 8], strides = [1, 1, 1]} : vector<32x32x8xf32> to vector<8x32x8xf32>
    %47 = vector.extract_strided_slice %43 {offsets = [24, 0, 0], sizes = [8, 32, 8], strides = [1, 1, 1]} : vector<32x32x8xf32> to vector<8x32x8xf32>
    %48 = tpu.concatenate %44, %45, %46, %47 in 2 : vector<8x32x8xf32>, vector<8x32x8xf32>, vector<8x32x8xf32>, vector<8x32x8xf32> -> vector<8x32x32xf32>
    %49 = vector.shape_cast %48 : vector<8x32x32xf32> to vector<256x32xf32>
    %50 = arith.truncf %49 : vector<256x32xf32> to vector<256x32xbf16>
    %c0_15 = arith.constant 0 : index
    %c0_16 = arith.constant 0 : index
    %51 = vector.load %arg5[%c0_15, %c0_16] : memref<32x32xbf16, #tpu.memory_space<vmem>>, vector<32x32xbf16>
    %cst_17 = arith.constant dense<0.000000e+00> : vector<256x32xf32>
    %52 = tpu.matmul %50, %51, %cst_17 {dimension_numbers = #tpu.dot_dimension_numbers<[1], [0], [0], [1], [0, 0, 1, 1], [], []>} : vector<256x32xbf16>, vector<32x32xbf16>, vector<256x32xf32> -> vector<256x32xf32>
    %c0_18 = arith.constant 0 : index
    %c0_19 = arith.constant 0 : index
    %53 = vector.load %arg6[%c0_18, %c0_19] : memref<1x32xf32, #tpu.memory_space<vmem>>, vector<1x32xf32>
    %54 = vector.broadcast %53 : vector<1x32xf32> to vector<256x32xf32>
    %55 = arith.addf %52, %54 : vector<256x32xf32>
    %56 = vector.shape_cast %55 : vector<256x32xf32> to vector<8x32x32xf32>
    %c0_20 = arith.constant 0 : index
    %c0_21 = arith.constant 0 : index
    %c0_22 = arith.constant 0 : index
    %57 = vector.load %arg7[%c0_20, %c0_21, %c0_22] : memref<8x32x32xf32, #tpu.memory_space<vmem>>, vector<8x32x32xf32>
    tpu.vector_store %arg7[%c0_20, %c0_21, %c0_22], %56 {strides = array<i32>} : memref<8x32x32xf32, #tpu.memory_space<vmem>>, vector<8x32x32xf32>,
    return
  }
  func.func @transform_0(%arg0: i32) -> (i32, i32, i32) {
    %c0_i32 = arith.constant 0 : i32
    %c0_i32_0 = arith.constant 0 : i32
    %c0_i32_1 = arith.constant 0 : i32
    return %arg0, %c0_i32, %c0_i32_0 : i32, i32, i32
  }
  func.func @transform_1(%arg0: i32) -> (i32, i32) {
    %c0_i32 = arith.constant 0 : i32
    %c0_i32_0 = arith.constant 0 : i32
    %c0_i32_1 = arith.constant 0 : i32
    return %c0_i32, %c0_i32_0 : i32, i32
  }
  func.func @transform_2(%arg0: i32) -> (i32, i32) {
    %c0_i32 = arith.constant 0 : i32
    %c0_i32_0 = arith.constant 0 : i32
    %c0_i32_1 = arith.constant 0 : i32
    return %c0_i32, %c0_i32_0 : i32, i32
  }
  func.func @transform_3(%arg0: i32) -> (i32, i32) {
    %c0_i32 = arith.constant 0 : i32
    %c0_i32_0 = arith.constant 0 : i32
    %c0_i32_1 = arith.constant 0 : i32
    return %c0_i32, %c0_i32_0 : i32, i32
  }
  func.func @transform_4(%arg0: i32) -> (i32, i32) {
    %c0_i32 = arith.constant 0 : i32
    %c0_i32_0 = arith.constant 0 : i32
    %c0_i32_1 = arith.constant 0 : i32
    return %c0_i32, %c0_i32_0 : i32, i32
  }
  func.func @transform_5(%arg0: i32) -> (i32, i32) {
    %c0_i32 = arith.constant 0 : i32
    %c0_i32_0 = arith.constant 0 : i32
    %c0_i32_1 = arith.constant 0 : i32
    return %c0_i32, %c0_i32_0 : i32, i32
  }
  func.func @transform_6(%arg0: i32) -> (i32, i32, i32) {
    %c0_i32 = arith.constant 0 : i32
    %c0_i32_0 = arith.constant 0 : i32
    %c0_i32_1 = arith.constant 0 : i32
    return %arg0, %c0_i32, %c0_i32_0 : i32, i32, i32
  }
}

</mosaic_0001>

<llo_original>
// kernel: tpu_custom_call.1
$region0: #{tpu_custom_call.1}
  #allocation0 [shape = 'u32[]', space=smem, size = 0x4, offset = 0x4, fixed_abs, tag = 'smem constant byte address 0x4 - core index']
  #allocation1 [shape = 'u32[72,128]{1,0:T(1,128)}', space=vmem, size = 0x9000, scoped, tag = 'internal scratch']
  %s0 = inlined_call_operand.hbm [shape: bf16[8,32,32], index: 0, kind: input, shape index: {}]
  %s1 = inlined_call_operand.hbm [shape: bf16[32,32], index: 1, kind: input, shape index: {}]
  %s2 = inlined_call_operand.hbm [shape: bf16[32,32], index: 2, kind: input, shape index: {}]
  %s3 = inlined_call_operand.hbm [shape: bf16[32,32], index: 3, kind: input, shape index: {}]
  %s4 = inlined_call_operand.hbm [shape: bf16[32,32], index: 4, kind: input, shape index: {}]
  %s5 = inlined_call_operand.vmem [shape: f32[1,32], index: 5, kind: input, shape index: {}]
  %s6 = inlined_call_operand.hbm [shape: f32[8,32,32], index: 6, kind: output, shape index: {}]
  %s7 = sld [smem:[#allocation0]]
  $region54: #{tpu_custom_call.1} parent=0
    _
  %s9 = ssub.s32 1, %s7
  %s10 = scalar_select 0, %s9, %s7
  $region1: #{tpu_custom_call.1} parent=0
    #allocation2 [shape = 'u8[65536]{0}', space=vmem, size = 0x10000, scoped, tag = 'input window, operand 0, single buffered']
    #allocation3 [shape = 's32[1]{0}', space=sflag, size = 0x4, scoped, tag = 'scoped memory for tpu_custom_call.1']
    #allocation4 [shape = 's32[1]{0}', space=sflag, size = 0x4, scoped, tag = 'scoped memory for tpu_custom_call.1']
    #allocation5 [shape = 'u8[8192]{0}', space=vmem, size = 0x2000, scoped, tag = 'input window, operand 1, single buffered']
    #allocation6 [shape = 's32[1]{0}', space=sflag, size = 0x4, scoped, tag = 'scoped memory for tpu_custom_call.1']
    #allocation7 [shape = 'u8[8192]{0}', space=vmem, size = 0x2000, scoped, tag = 'input window, operand 2, single buffered']
    #allocation8 [shape = 'u8[8192]{0}', space=vmem, size = 0x2000, scoped, tag = 'input window, operand 3, single buffered']
    #allocation9 [shape = 's32[1]{0}', space=sflag, size = 0x4, scoped, tag = 'scoped memory for tpu_custom_call.1']
    #allocation10 [shape = 'u8[8192]{0}', space=vmem, size = 0x2000, scoped, tag = 'input window, operand 4, single buffered']
    #allocation11 [shape = 'u8[131072]{0}', space=vmem, size = 0x20000, scoped, tag = 'output window, operand 0, single buffered']
    %11 = vsyncpa [#allocation3], 0
    %12 = vsyncpa [#allocation6], 0
    %13 = vsyncpa [#allocation9], 0
    %14 = vsyncpa [#allocation4], 0
    // Predicated region
    $region2: #{tpu_custom_call.1} parent=1 // pred_check
      _
    $region3: #{tpu_custom_call.1} parent=1 // pred_check_branch
      %16 = sbr.rel (0) target = $region5
    $region4: #{tpu_custom_call.1} parent=1 // pred_region
      %18 = vsyncadd [#allocation3], 0
      %s19 = sshll.u32 %s0, 4
      %s20 = int_to_ptr.hbm [resolvable:$true] %s19
      %s21 = sshll.u32 [#allocation2], 4
      %s22 = int_to_ptr.vmem [resolvable:$true] %s21
      %27 = dma.hbm_to_vmem [thread:$0]  %s20, 2048, %s22, [#allocation3], 64, 64, 4
    $region5: #{tpu_custom_call.1} parent=1 // pred_fallthru
      _
    // Predicated region
    $region6: #{tpu_custom_call.1} parent=1 // pred_check
      _
    $region7: #{tpu_custom_call.1} parent=1 // pred_check_branch
      %29 = sbr.rel (0) target = $region9
    $region8: #{tpu_custom_call.1} parent=1 // pred_region
      %31 = vsyncadd [#allocation6], 0
      %s32 = sshll.u32 %s1, 4
      %s33 = int_to_ptr.hbm [resolvable:$true] %s32
      %s34 = sshll.u32 [#allocation5], 4
      %s35 = int_to_ptr.vmem [resolvable:$true] %s34
      %40 = dma.hbm_to_vmem [thread:$0]  %s33, 256, %s35, [#allocation6], 64, 64, 4
    $region9: #{tpu_custom_call.1} parent=1 // pred_fallthru
      _
    // Predicated region
    $region10: #{tpu_custom_call.1} parent=1 // pred_check
      _
    $region11: #{tpu_custom_call.1} parent=1 // pred_check_branch
      %42 = sbr.rel (0) target = $region13
    $region12: #{tpu_custom_call.1} parent=1 // pred_region
      %44 = vsyncadd [#allocation6], 0
      %s45 = sshll.u32 %s2, 4
      %s46 = int_to_ptr.hbm [resolvable:$true] %s45
      %s47 = sshll.u32 [#allocation7], 4
      %s48 = int_to_ptr.vmem [resolvable:$true] %s47
      %53 = dma.hbm_to_vmem [thread:$0]  %s46, 256, %s48, [#allocation6], 64, 64, 4
    $region13: #{tpu_custom_call.1} parent=1 // pred_fallthru
      _
    // Predicated region
    $region14: #{tpu_custom_call.1} parent=1 // pred_check
      _
    $region15: #{tpu_custom_call.1} parent=1 // pred_check_branch
      %55 = sbr.rel (0) target = $region17
    $region16: #{tpu_custom_call.1} parent=1 // pred_region
      %57 = vsyncadd [#allocation9], 0
      %s58 = sshll.u32 %s3, 4
      %s59 = int_to_ptr.hbm [resolvable:$true] %s58
      %s60 = sshll.u32 [#allocation8], 4
      %s61 = int_to_ptr.vmem [resolvable:$true] %s60
      %66 = dma.hbm_to_vmem [thread:$0]  %s59, 256, %s61, [#allocation9], 64, 64, 4
    $region17: #{tpu_custom_call.1} parent=1 // pred_fallthru
      _
    // Predicated region
    $region18: #{tpu_custom_call.1} parent=1 // pred_check
      _
    $region19: #{tpu_custom_call.1} parent=1 // pred_check_branch
      %68 = sbr.rel (0) target = $region21
    $region20: #{tpu_custom_call.1} parent=1 // pred_region
      %70 = vsyncadd [#allocation9], 0
      %s71 = sshll.u32 %s4, 4
      %s72 = int_to_ptr.hbm [resolvable:$true] %s71
      %s73 = sshll.u32 [#allocation10], 4
      %s74 = int_to_ptr.vmem [resolvable:$true] %s73
      %79 = dma.hbm_to_vmem [thread:$0]  %s72, 256, %s74, [#allocation9], 64, 64, 4
    $region21: #{tpu_custom_call.1} parent=1 // pred_fallthru
      _
    // Predicated region
    $region22: #{tpu_custom_call.1} parent=1 // pred_check
      _
    $region23: #{tpu_custom_call.1} parent=1 // pred_check_branch
      %81 = sbr.rel (0) target = $region25
    $region24: #{tpu_custom_call.1} parent=1 // pred_region
      _
    $region25: #{tpu_custom_call.1} parent=1 // pred_fallthru
      _
    // Predicated region
    $region26: #{tpu_custom_call.1} parent=1 // pred_check
      _
    $region27: #{tpu_custom_call.1} parent=1 // pred_check_branch
      %83 = sbr.rel (0) target = $region29
    $region28: #{tpu_custom_call.1} parent=1 // pred_region
      %85 = dma.done [#allocation3], 2048
    $region29: #{tpu_custom_call.1} parent=1 // pred_fallthru
      _
    // Predicated region
    $region30: #{tpu_custom_call.1} parent=1 // pred_check
      _
    $region31: #{tpu_custom_call.1} parent=1 // pred_check_branch
      %87 = sbr.rel (0) target = $region33
    $region32: #{tpu_custom_call.1} parent=1 // pred_region
      %89 = dma.done [#allocation6], 256
    $region33: #{tpu_custom_call.1} parent=1 // pred_fallthru
      _
    // Predicated region
    $region34: #{tpu_custom_call.1} parent=1 // pred_check
      _
    $region35: #{tpu_custom_call.1} parent=1 // pred_check_branch
      %91 = sbr.rel (0) target = $region37
    $region36: #{tpu_custom_call.1} parent=1 // pred_region
      %93 = dma.done [#allocation6], 256
    $region37: #{tpu_custom_call.1} parent=1 // pred_fallthru
      _
    // Predicated region
    $region38: #{tpu_custom_call.1} parent=1 // pred_check
      _
    $region39: #{tpu_custom_call.1} parent=1 // pred_check_branch
      %95 = sbr.rel (0) target = $region41
    $region40: #{tpu_custom_call.1} parent=1 // pred_region
      %97 = dma.done [#allocation9], 256
    $region41: #{tpu_custom_call.1} parent=1 // pred_fallthru
      _
    // Predicated region
    $region42: #{tpu_custom_call.1} parent=1 // pred_check
      _
    $region43: #{tpu_custom_call.1} parent=1 // pred_check_branch
      %99 = sbr.rel (0) target = $region45
    $region44: #{tpu_custom_call.1} parent=1 // pred_region
      %101 = dma.done [#allocation9], 256
    $region45: #{tpu_custom_call.1} parent=1 // pred_fallthru
      _
    %v103 = vld [vmem:[#allocation2] sm:$0xf]
    %v104 = vld [vmem:[#allocation2 + $0x4] sm:$0xf]
    %v105 = vld [vmem:[#allocation2 + $0x8] sm:$0xf]
    %v106 = vld [vmem:[#allocation2 + $0xc] sm:$0xf]
    %v107 = vld [vmem:[#allocation2 + $0x10] sm:$0xf]
    %v108 = vld [vmem:[#allocation2 + $0x14] sm:$0xf]
    %v109 = vld [vmem:[#allocation2 + $0x18] sm:$0xf]
    %v110 = vld [vmem:[#allocation2 + $0x1c] sm:$0xf]
    %v111 = vld [vmem:[#allocation2 + $0x20] sm:$0xf]
    %v112 = vld [vmem:[#allocation2 + $0x24] sm:$0xf]
    %v113 = vld [vmem:[#allocation2 + $0x28] sm:$0xf]
    %v114 = vld [vmem:[#allocation2 + $0x2c] sm:$0xf]
    %v115 = vld [vmem:[#allocation2 + $0x30] sm:$0xf]
    %v116 = vld [vmem:[#allocation2 + $0x34] sm:$0xf]
    %v117 = vld [vmem:[#allocation2 + $0x38] sm:$0xf]
    %v118 = vld [vmem:[#allocation2 + $0x3c] sm:$0xf]
    %v119 = vld [vmem:[#allocation2 + $0x40] sm:$0xf]
    %v120 = vld [vmem:[#allocation2 + $0x44] sm:$0xf]
    %v121 = vld [vmem:[#allocation2 + $0x48] sm:$0xf]
    %v122 = vld [vmem:[#allocation2 + $0x4c] sm:$0xf]
    %v123 = vld [vmem:[#allocation2 + $0x50] sm:$0xf]
    %v124 = vld [vmem:[#allocation2 + $0x54] sm:$0xf]
    %v125 = vld [vmem:[#allocation2 + $0x58] sm:$0xf]
    %v126 = vld [vmem:[#allocation2 + $0x5c] sm:$0xf]
    %v127 = vld [vmem:[#allocation2 + $0x60] sm:$0xf]
    %v128 = vld [vmem:[#allocation2 + $0x64] sm:$0xf]
    %v129 = vld [vmem:[#allocation2 + $0x68] sm:$0xf]
    %v130 = vld [vmem:[#allocation2 + $0x6c] sm:$0xf]
    %v131 = vld [vmem:[#allocation2 + $0x70] sm:$0xf]
    %v132 = vld [vmem:[#allocation2 + $0x74] sm:$0xf]
    %v133 = vld [vmem:[#allocation2 + $0x78] sm:$0xf]
    %v134 = vld [vmem:[#allocation2 + $0x7c] sm:$0xf]
    %v135 = vld [vmem:[#allocation5] sm:$0xf]
    %v136 = vld [vmem:[#allocation5 + $0x4] sm:$0xf]
    %v137 = vld [vmem:[#allocation5 + $0x8] sm:$0xf]
    %v138 = vld [vmem:[#allocation5 + $0xc] sm:$0xf]
    %v171 = vunpack.c.l.b16 %v103
    %v172 = vunpack.c.l.b16 %v104
    %v173 = vunpack.c.l.b16 %v105
    %v174 = vunpack.c.l.b16 %v106
    %v175 = vunpack.c.l.b16 %v107
    %v176 = vunpack.c.l.b16 %v108
    %v177 = vunpack.c.l.b16 %v109
    %v178 = vunpack.c.l.b16 %v110
    %v179 = vunpack.c.l.b16 %v111
    %v180 = vunpack.c.l.b16 %v112
    %v181 = vunpack.c.l.b16 %v113
    %v182 = vunpack.c.l.b16 %v114
    %v183 = vunpack.c.l.b16 %v115
    %v184 = vunpack.c.l.b16 %v116
    %v185 = vunpack.c.l.b16 %v117
    %v186 = vunpack.c.l.b16 %v118
    %v187 = vunpack.c.l.b16 %v119
    %v188 = vunpack.c.l.b16 %v120
    %v189 = vunpack.c.l.b16 %v121
    %v190 = vunpack.c.l.b16 %v122
    %v191 = vunpack.c.l.b16 %v123
    %v192 = vunpack.c.l.b16 %v124
    %v193 = vunpack.c.l.b16 %v125
    %v194 = vunpack.c.l.b16 %v126
    %v195 = vunpack.c.l.b16 %v127
    %v196 = vunpack.c.l.b16 %v128
    %v197 = vunpack.c.l.b16 %v129
    %v198 = vunpack.c.l.b16 %v130
    %v199 = vunpack.c.l.b16 %v131
    %v200 = vunpack.c.l.b16 %v132
    %v201 = vunpack.c.l.b16 %v133
    %v202 = vunpack.c.l.b16 %v134
    %v203 = vpack.c.b16 %v172, %v171
    %v204 = vpack.c.b16 %v174, %v173
    %v205 = vpack.c.b16 %v176, %v175
    %v206 = vpack.c.b16 %v178, %v177
    %v207 = vpack.c.b16 %v180, %v179
    %v208 = vpack.c.b16 %v182, %v181
    %v209 = vpack.c.b16 %v184, %v183
    %v210 = vpack.c.b16 %v186, %v185
    %v211 = vpack.c.b16 %v188, %v187
    %v212 = vpack.c.b16 %v190, %v189
    %v213 = vpack.c.b16 %v192, %v191
    %v214 = vpack.c.b16 %v194, %v193
    %v215 = vpack.c.b16 %v196, %v195
    %v216 = vpack.c.b16 %v198, %v197
    %v217 = vpack.c.b16 %v200, %v199
    %v218 = vpack.c.b16 %v202, %v201
    %v223 = vunpack.c.l.b16 %v135
    %v224 = vunpack.c.l.b16 %v136
    %v225 = vunpack.c.l.b16 %v137
    %v226 = vunpack.c.l.b16 %v138
    %v227 = vpack.c.b16 %v224, %v223
    %v228 = vpack.c.b16 %v226, %v225
    %vm231 = vcmask 261120
    %v233 = vsel %vm231, %v203, 0
    %v236 = vsel %vm231, %v204, 0
    %v239 = vsel %vm231, %v205, 0
    %v242 = vsel %vm231, %v206, 0
    %v245 = vsel %vm231, %v207, 0
    %v248 = vsel %vm231, %v208, 0
    %v251 = vsel %vm231, %v209, 0
    %v254 = vsel %vm231, %v210, 0
    %v257 = vsel %vm231, %v211, 0
    %v260 = vsel %vm231, %v212, 0
    %v263 = vsel %vm231, %v213, 0
    %v266 = vsel %vm231, %v214, 0
    %v269 = vsel %vm231, %v215, 0
    %v272 = vsel %vm231, %v216, 0
    %v275 = vsel %vm231, %v217, 0
    %v278 = vsel %vm231, %v218, 0
    %280 = vmatpush.bf16.msra.mxu0 0
    %281 = vmatpush.bf16.msra.mxu0 0
    %282 = vmatpush.bf16.msra.mxu0 0
    %283 = vmatpush.bf16.msra.mxu0 0
    %284 = vmatpush.bf16.msra.mxu0 0
    %285 = vmatpush.bf16.msra.mxu0 0
    %286 = vmatpush.bf16.msra.mxu0 %v228
    %287 = vmatpush.bf16.msra.mxu0 %v227
    %288 = vmatmul.bf16.gmra.mxu0 %v233
    %v289 = vpop.f32.mrf.mxu0
    %v290 = vadd.f32 0.0, %v289
    %v291 = vpop.f32.mrf.mxu0
    %v292 = vadd.f32 0.0, %v291
    %293 = vmatmul.bf16.gmra.mxu0 %v236
    %v294 = vpop.f32.mrf.mxu0
    %v295 = vadd.f32 0.0, %v294
    %v296 = vpop.f32.mrf.mxu0
    %v297 = vadd.f32 0.0, %v296
    %298 = vmatmul.bf16.gmra.mxu0 %v239
    %v299 = vpop.f32.mrf.mxu0
    %v300 = vadd.f32 0.0, %v299
    %v301 = vpop.f32.mrf.mxu0
    %v302 = vadd.f32 0.0, %v301
    %303 = vmatmul.bf16.gmra.mxu0 %v242
    %v304 = vpop.f32.mrf.mxu0
    %v305 = vadd.f32 0.0, %v304
    %v306 = vpop.f32.mrf.mxu0
    %v307 = vadd.f32 0.0, %v306
    %308 = vmatmul.bf16.gmra.mxu0 %v245
    %v309 = vpop.f32.mrf.mxu0
    %v310 = vadd.f32 0.0, %v309
    %v311 = vpop.f32.mrf.mxu0
    %v312 = vadd.f32 0.0, %v311
    %313 = vmatmul.bf16.gmra.mxu0 %v248
    %v314 = vpop.f32.mrf.mxu0
    %v315 = vadd.f32 0.0, %v314
    %v316 = vpop.f32.mrf.mxu0
    %v317 = vadd.f32 0.0, %v316
    %318 = vmatmul.bf16.gmra.mxu0 %v251
    %v319 = vpop.f32.mrf.mxu0
    %v320 = vadd.f32 0.0, %v319
    %v321 = vpop.f32.mrf.mxu0
    %v322 = vadd.f32 0.0, %v321
    %323 = vmatmul.bf16.gmra.mxu0 %v254
    %v324 = vpop.f32.mrf.mxu0
    %v325 = vadd.f32 0.0, %v324
    %v326 = vpop.f32.mrf.mxu0
    %v327 = vadd.f32 0.0, %v326
    %328 = vmatmul.bf16.gmra.mxu0 %v257
    %v329 = vpop.f32.mrf.mxu0
    %v330 = vadd.f32 0.0, %v329
    %v331 = vpop.f32.mrf.mxu0
    %v332 = vadd.f32 0.0, %v331
    %333 = vmatmul.bf16.gmra.mxu0 %v260
    %v334 = vpop.f32.mrf.mxu0
    %v335 = vadd.f32 0.0, %v334
    %v336 = vpop.f32.mrf.mxu0
    %v337 = vadd.f32 0.0, %v336
    %338 = vmatmul.bf16.gmra.mxu0 %v263
    %v339 = vpop.f32.mrf.mxu0
    %v340 = vadd.f32 0.0, %v339
    %v341 = vpop.f32.mrf.mxu0
    %v342 = vadd.f32 0.0, %v341
    %343 = vmatmul.bf16.gmra.mxu0 %v266
    %v344 = vpop.f32.mrf.mxu0
    %v345 = vadd.f32 0.0, %v344
    %v346 = vpop.f32.mrf.mxu0
    %v347 = vadd.f32 0.0, %v346
    %348 = vmatmul.bf16.gmra.mxu0 %v269
    %v349 = vpop.f32.mrf.mxu0
    %v350 = vadd.f32 0.0, %v349
    %v351 = vpop.f32.mrf.mxu0
    %v352 = vadd.f32 0.0, %v351
    %353 = vmatmul.bf16.gmra.mxu0 %v272
    %v354 = vpop.f32.mrf.mxu0
    %v355 = vadd.f32 0.0, %v354
    %v356 = vpop.f32.mrf.mxu0
    %v357 = vadd.f32 0.0, %v356
    %358 = vmatmul.bf16.gmra.mxu0 %v275
    %v359 = vpop.f32.mrf.mxu0
    %v360 = vadd.f32 0.0, %v359
    %v361 = vpop.f32.mrf.mxu0
    %v362 = vadd.f32 0.0, %v361
    %363 = vmatmul.bf16.gmra.mxu0 %v278
    %v364 = vpop.f32.mrf.mxu0
    %v365 = vadd.f32 0.0, %v364
    %v366 = vpop.f32.mrf.mxu0
    %v367 = vadd.f32 0.0, %v366
    %368 = vdwg.mxu0
    %v369 = vld [vmem:[#allocation7] sm:$0xf]
    %v370 = vld [vmem:[#allocation7 + $0x4] sm:$0xf]
    %v371 = vld [vmem:[#allocation7 + $0x8] sm:$0xf]
    %v372 = vld [vmem:[#allocation7 + $0xc] sm:$0xf]
    %v377 = vunpack.c.l.b16 %v369
    %v378 = vunpack.c.l.b16 %v370
    %v379 = vunpack.c.l.b16 %v371
    %v380 = vunpack.c.l.b16 %v372
    %v381 = vpack.c.b16 %v378, %v377
    %v382 = vpack.c.b16 %v380, %v379
    %385 = vmatpush.bf16.msra.mxu0 0
    %386 = vmatpush.bf16.msra.mxu0 0
    %387 = vmatpush.bf16.msra.mxu0 0
    %388 = vmatpush.bf16.msra.mxu0 0
    %389 = vmatpush.bf16.msra.mxu0 0
    %390 = vmatpush.bf16.msra.mxu0 0
    %391 = vmatpush.bf16.msra.mxu0 %v382
    %392 = vmatpush.bf16.msra.mxu0 %v381
    %393 = vmatmul.bf16.gmra.mxu0 %v233
    %v394 = vpop.f32.mrf.mxu0
    %v395 = vadd.f32 0.0, %v394
    %v396 = vpop.f32.mrf.mxu0
    %v397 = vadd.f32 0.0, %v396
    %398 = vmatmul.bf16.gmra.mxu0 %v236
    %v399 = vpop.f32.mrf.mxu0
    %v400 = vadd.f32 0.0, %v399
    %v401 = vpop.f32.mrf.mxu0
    %v402 = vadd.f32 0.0, %v401
    %403 = vmatmul.bf16.gmra.mxu0 %v239
    %v404 = vpop.f32.mrf.mxu0
    %v405 = vadd.f32 0.0, %v404
    %v406 = vpop.f32.mrf.mxu0
    %v407 = vadd.f32 0.0, %v406
    %408 = vmatmul.bf16.gmra.mxu0 %v242
    %v409 = vpop.f32.mrf.mxu0
    %v410 = vadd.f32 0.0, %v409
    %v411 = vpop.f32.mrf.mxu0
    %v412 = vadd.f32 0.0, %v411
    %413 = vmatmul.bf16.gmra.mxu0 %v245
    %v414 = vpop.f32.mrf.mxu0
    %v415 = vadd.f32 0.0, %v414
    %v416 = vpop.f32.mrf.mxu0
    %v417 = vadd.f32 0.0, %v416
    %418 = vmatmul.bf16.gmra.mxu0 %v248
    %v419 = vpop.f32.mrf.mxu0
    %v420 = vadd.f32 0.0, %v419
    %v421 = vpop.f32.mrf.mxu0
    %v422 = vadd.f32 0.0, %v421
    %423 = vmatmul.bf16.gmra.mxu0 %v251
    %v424 = vpop.f32.mrf.mxu0
    %v425 = vadd.f32 0.0, %v424
    %v426 = vpop.f32.mrf.mxu0
    %v427 = vadd.f32 0.0, %v426
    %428 = vmatmul.bf16.gmra.mxu0 %v254
    %v429 = vpop.f32.mrf.mxu0
    %v430 = vadd.f32 0.0, %v429
    %v431 = vpop.f32.mrf.mxu0
    %v432 = vadd.f32 0.0, %v431
    %433 = vmatmul.bf16.gmra.mxu0 %v257
    %v434 = vpop.f32.mrf.mxu0
    %v435 = vadd.f32 0.0, %v434
    %v436 = vpop.f32.mrf.mxu0
    %v437 = vadd.f32 0.0, %v436
    %438 = vmatmul.bf16.gmra.mxu0 %v260
    %v439 = vpop.f32.mrf.mxu0
    %v440 = vadd.f32 0.0, %v439
    %v441 = vpop.f32.mrf.mxu0
    %v442 = vadd.f32 0.0, %v441
    %443 = vmatmul.bf16.gmra.mxu0 %v263
    %v444 = vpop.f32.mrf.mxu0
    %v445 = vadd.f32 0.0, %v444
    %v446 = vpop.f32.mrf.mxu0
    %v447 = vadd.f32 0.0, %v446
    %448 = vmatmul.bf16.gmra.mxu0 %v266
    %v449 = vpop.f32.mrf.mxu0
    %v450 = vadd.f32 0.0, %v449
    %v451 = vpop.f32.mrf.mxu0
    %v452 = vadd.f32 0.0, %v451
    %453 = vmatmul.bf16.gmra.mxu0 %v269
    %v454 = vpop.f32.mrf.mxu0
    %v455 = vadd.f32 0.0, %v454
    %v456 = vpop.f32.mrf.mxu0
    %v457 = vadd.f32 0.0, %v456
    %458 = vmatmul.bf16.gmra.mxu0 %v272
    %v459 = vpop.f32.mrf.mxu0
    %v460 = vadd.f32 0.0, %v459
    %v461 = vpop.f32.mrf.mxu0
    %v462 = vadd.f32 0.0, %v461
    %463 = vmatmul.bf16.gmra.mxu0 %v275
    %v464 = vpop.f32.mrf.mxu0
    %v465 = vadd.f32 0.0, %v464
    %v466 = vpop.f32.mrf.mxu0
    %v467 = vadd.f32 0.0, %v466
    %468 = vmatmul.bf16.gmra.mxu0 %v278
    %v469 = vpop.f32.mrf.mxu0
    %v470 = vadd.f32 0.0, %v469
    %v471 = vpop.f32.mrf.mxu0
    %v472 = vadd.f32 0.0, %v471
    %473 = vdwg.mxu0
    %v474 = vld [vmem:[#allocation8] sm:$0xf]
    %v475 = vld [vmem:[#allocation8 + $0x4] sm:$0xf]
    %v476 = vld [vmem:[#allocation8 + $0x8] sm:$0xf]
    %v477 = vld [vmem:[#allocation8 + $0xc] sm:$0xf]
    %v482 = vunpack.c.l.b16 %v474
    %v483 = vunpack.c.l.b16 %v475
    %v484 = vunpack.c.l.b16 %v476
    %v485 = vunpack.c.l.b16 %v477
    %v486 = vpack.c.b16 %v483, %v482
    %v487 = vpack.c.b16 %v485, %v484
    %490 = vmatpush.bf16.msra.mxu0 0
    %491 = vmatpush.bf16.msra.mxu0 0
    %492 = vmatpush.bf16.msra.mxu0 0
    %493 = vmatpush.bf16.msra.mxu0 0
    %494 = vmatpush.bf16.msra.mxu0 0
    %495 = vmatpush.bf16.msra.mxu0 0
    %496 = vmatpush.bf16.msra.mxu0 %v487
    %497 = vmatpush.bf16.msra.mxu0 %v486
    %498 = vmatmul.bf16.gmra.mxu0 %v233
    %v499 = vpop.f32.mrf.mxu0
    %v500 = vadd.f32 0.0, %v499
    %v501 = vpop.f32.mrf.mxu0
    %v502 = vadd.f32 0.0, %v501
    %503 = vmatmul.bf16.gmra.mxu0 %v236
    %v504 = vpop.f32.mrf.mxu0
    %v505 = vadd.f32 0.0, %v504
    %v506 = vpop.f32.mrf.mxu0
    %v507 = vadd.f32 0.0, %v506
    %508 = vmatmul.bf16.gmra.mxu0 %v239
    %v509 = vpop.f32.mrf.mxu0
    %v510 = vadd.f32 0.0, %v509
    %v511 = vpop.f32.mrf.mxu0
    %v512 = vadd.f32 0.0, %v511
    %513 = vmatmul.bf16.gmra.mxu0 %v242
    %v514 = vpop.f32.mrf.mxu0
    %v515 = vadd.f32 0.0, %v514
    %v516 = vpop.f32.mrf.mxu0
    %v517 = vadd.f32 0.0, %v516
    %518 = vmatmul.bf16.gmra.mxu0 %v245
    %v519 = vpop.f32.mrf.mxu0
    %v520 = vadd.f32 0.0, %v519
    %v521 = vpop.f32.mrf.mxu0
    %v522 = vadd.f32 0.0, %v521
    %523 = vmatmul.bf16.gmra.mxu0 %v248
    %v524 = vpop.f32.mrf.mxu0
    %v525 = vadd.f32 0.0, %v524
    %v526 = vpop.f32.mrf.mxu0
    %v527 = vadd.f32 0.0, %v526
    %528 = vmatmul.bf16.gmra.mxu0 %v251
    %v529 = vpop.f32.mrf.mxu0
    %v530 = vadd.f32 0.0, %v529
    %v531 = vpop.f32.mrf.mxu0
    %v532 = vadd.f32 0.0, %v531
    %533 = vmatmul.bf16.gmra.mxu0 %v254
    %v534 = vpop.f32.mrf.mxu0
    %v535 = vadd.f32 0.0, %v534
    %v536 = vpop.f32.mrf.mxu0
    %v537 = vadd.f32 0.0, %v536
    %538 = vmatmul.bf16.gmra.mxu0 %v257
    %v539 = vpop.f32.mrf.mxu0
    %v540 = vadd.f32 0.0, %v539
    %v541 = vpop.f32.mrf.mxu0
    %v542 = vadd.f32 0.0, %v541
    %543 = vmatmul.bf16.gmra.mxu0 %v260
    %v544 = vpop.f32.mrf.mxu0
    %v545 = vadd.f32 0.0, %v544
    %v546 = vpop.f32.mrf.mxu0
    %v547 = vadd.f32 0.0, %v546
    %548 = vmatmul.bf16.gmra.mxu0 %v263
    %v549 = vpop.f32.mrf.mxu0
    %v550 = vadd.f32 0.0, %v549
    %v551 = vpop.f32.mrf.mxu0
    %v552 = vadd.f32 0.0, %v551
    %553 = vmatmul.bf16.gmra.mxu0 %v266
    %v554 = vpop.f32.mrf.mxu0
    %v555 = vadd.f32 0.0, %v554
    %v556 = vpop.f32.mrf.mxu0
    %v557 = vadd.f32 0.0, %v556
    %558 = vmatmul.bf16.gmra.mxu0 %v269
    %v559 = vpop.f32.mrf.mxu0
    %v560 = vadd.f32 0.0, %v559
    %v561 = vpop.f32.mrf.mxu0
    %v562 = vadd.f32 0.0, %v561
    %563 = vmatmul.bf16.gmra.mxu0 %v272
    %v564 = vpop.f32.mrf.mxu0
    %v565 = vadd.f32 0.0, %v564
    %v566 = vpop.f32.mrf.mxu0
    %v567 = vadd.f32 0.0, %v566
    %568 = vmatmul.bf16.gmra.mxu0 %v275
    %v569 = vpop.f32.mrf.mxu0
    %v570 = vadd.f32 0.0, %v569
    %v571 = vpop.f32.mrf.mxu0
    %v572 = vadd.f32 0.0, %v571
    %573 = vmatmul.bf16.gmra.mxu0 %v278
    %v574 = vpop.f32.mrf.mxu0
    %v575 = vadd.f32 0.0, %v574
    %v576 = vpop.f32.mrf.mxu0
    %v577 = vadd.f32 0.0, %v576
    %578 = vdwg.mxu0
    %v579 = vmul.f32 %v290, 0.35355338
    %v580 = vmul.f32 %v292, 0.35355338
    %v581 = vmul.f32 %v295, 0.35355338
    %v582 = vmul.f32 %v297, 0.35355338
    %v583 = vmul.f32 %v300, 0.35355338
    %v584 = vmul.f32 %v302, 0.35355338
    %v585 = vmul.f32 %v305, 0.35355338
    %v586 = vmul.f32 %v307, 0.35355338
    %v587 = vmul.f32 %v310, 0.35355338
    %v588 = vmul.f32 %v312, 0.35355338
    %v589 = vmul.f32 %v315, 0.35355338
    %v590 = vmul.f32 %v317, 0.35355338
    %v591 = vmul.f32 %v320, 0.35355338
    %v592 = vmul.f32 %v322, 0.35355338
    %v593 = vmul.f32 %v325, 0.35355338
    %v594 = vmul.f32 %v327, 0.35355338
    %v595 = vmul.f32 %v330, 0.35355338
    %v596 = vmul.f32 %v332, 0.35355338
    %v597 = vmul.f32 %v335, 0.35355338
    %v598 = vmul.f32 %v337, 0.35355338
    %v599 = vmul.f32 %v340, 0.35355338
    %v600 = vmul.f32 %v342, 0.35355338
    %v601 = vmul.f32 %v345, 0.35355338
    %v602 = vmul.f32 %v347, 0.35355338
    %v603 = vmul.f32 %v350, 0.35355338
    %v604 = vmul.f32 %v352, 0.35355338
    %v605 = vmul.f32 %v355, 0.35355338
    %v606 = vmul.f32 %v357, 0.35355338
    %v607 = vmul.f32 %v360, 0.35355338
    %v608 = vmul.f32 %v362, 0.35355338
    %v609 = vmul.f32 %v365, 0.35355338
    %v610 = vmul.f32 %v367, 0.35355338
    %v611 = vpack.c.bf16 %v579, %v579
    %v612 = vpack.c.bf16 %v580, %v580
    %v613 = vpack.c.bf16 %v581, %v581
    %v614 = vpack.c.bf16 %v582, %v582
    %v615 = vpack.c.bf16 %v583, %v583
    %v616 = vpack.c.bf16 %v584, %v584
    %v617 = vpack.c.bf16 %v585, %v585
    %v618 = vpack.c.bf16 %v586, %v586
    %v619 = vpack.c.bf16 %v587, %v587
    %v620 = vpack.c.bf16 %v588, %v588
    %v621 = vpack.c.bf16 %v589, %v589
    %v622 = vpack.c.bf16 %v590, %v590
    %v623 = vpack.c.bf16 %v591, %v591
    %v624 = vpack.c.bf16 %v592, %v592
    %v625 = vpack.c.bf16 %v593, %v593
    %v626 = vpack.c.bf16 %v594, %v594
    %v627 = vpack.c.bf16 %v595, %v595
    %v628 = vpack.c.bf16 %v596, %v596
    %v629 = vpack.c.bf16 %v597, %v597
    %v630 = vpack.c.bf16 %v598, %v598
    %v631 = vpack.c.bf16 %v599, %v599
    %v632 = vpack.c.bf16 %v600, %v600
    %v633 = vpack.c.bf16 %v601, %v601
    %v634 = vpack.c.bf16 %v602, %v602
    %v635 = vpack.c.bf16 %v603, %v603
    %v636 = vpack.c.bf16 %v604, %v604
    %v637 = vpack.c.bf16 %v605, %v605
    %v638 = vpack.c.bf16 %v606, %v606
    %v639 = vpack.c.bf16 %v607, %v607
    %v640 = vpack.c.bf16 %v608, %v608
    %v641 = vpack.c.bf16 %v609, %v609
    %v642 = vpack.c.bf16 %v610, %v610
    %v643 = vpack.c.bf16 %v395, %v395
    %v644 = vpack.c.bf16 %v397, %v397
    %v645 = vpack.c.bf16 %v400, %v400
    %v646 = vpack.c.bf16 %v402, %v402
    %v647 = vpack.c.bf16 %v405, %v405
    %v648 = vpack.c.bf16 %v407, %v407
    %v649 = vpack.c.bf16 %v410, %v410
    %v650 = vpack.c.bf16 %v412, %v412
    %v651 = vpack.c.bf16 %v415, %v415
    %v652 = vpack.c.bf16 %v417, %v417
    %v653 = vpack.c.bf16 %v420, %v420
    %v654 = vpack.c.bf16 %v422, %v422
    %v655 = vpack.c.bf16 %v425, %v425
    %v656 = vpack.c.bf16 %v427, %v427
    %v657 = vpack.c.bf16 %v430, %v430
    %v658 = vpack.c.bf16 %v432, %v432
    %v659 = vpack.c.bf16 %v435, %v435
    %v660 = vpack.c.bf16 %v437, %v437
    %v661 = vpack.c.bf16 %v440, %v440
    %v662 = vpack.c.bf16 %v442, %v442
    %v663 = vpack.c.bf16 %v445, %v445
    %v664 = vpack.c.bf16 %v447, %v447
    %v665 = vpack.c.bf16 %v450, %v450
    %v666 = vpack.c.bf16 %v452, %v452
    %v667 = vpack.c.bf16 %v455, %v455
    %v668 = vpack.c.bf16 %v457, %v457
    %v669 = vpack.c.bf16 %v460, %v460
    %v670 = vpack.c.bf16 %v462, %v462
    %v671 = vpack.c.bf16 %v465, %v465
    %v672 = vpack.c.bf16 %v467, %v467
    %v673 = vpack.c.bf16 %v470, %v470
    %v674 = vpack.c.bf16 %v472, %v472
    %v675 = vpack.c.bf16 %v500, %v500
    %v676 = vpack.c.bf16 %v502, %v502
    %v677 = vpack.c.bf16 %v505, %v505
    %v678 = vpack.c.bf16 %v507, %v507
    %v679 = vpack.c.bf16 %v510, %v510
    %v680 = vpack.c.bf16 %v512, %v512
    %v681 = vpack.c.bf16 %v515, %v515
    %v682 = vpack.c.bf16 %v517, %v517
    %v683 = vpack.c.bf16 %v520, %v520
    %v684 = vpack.c.bf16 %v522, %v522
    %v685 = vpack.c.bf16 %v525, %v525
    %v686 = vpack.c.bf16 %v527, %v527
    %v687 = vpack.c.bf16 %v530, %v530
    %v688 = vpack.c.bf16 %v532, %v532
    %v689 = vpack.c.bf16 %v535, %v535
    %v690 = vpack.c.bf16 %v537, %v537
    %v691 = vpack.c.bf16 %v540, %v540
    %v692 = vpack.c.bf16 %v542, %v542
    %v693 = vpack.c.bf16 %v545, %v545
    %v694 = vpack.c.bf16 %v547, %v547
    %v695 = vpack.c.bf16 %v550, %v550
    %v696 = vpack.c.bf16 %v552, %v552
    %v697 = vpack.c.bf16 %v555, %v555
    %v698 = vpack.c.bf16 %v557, %v557
    %v699 = vpack.c.bf16 %v560, %v560
    %v700 = vpack.c.bf16 %v562, %v562
    %v701 = vpack.c.bf16 %v565, %v565
    %v702 = vpack.c.bf16 %v567, %v567
    %v703 = vpack.c.bf16 %v570, %v570
    %v704 = vpack.c.bf16 %v572, %v572
    %v705 = vpack.c.bf16 %v575, %v575
    %v706 = vpack.c.bf16 %v577, %v577
    %739 = vrot.lane.b32.xlu0 %v611, 120
    %v740 = vpop.permute.xlu0 %739
    %741 = vrot.lane.b32.xlu0 %v612, 120
    %v742 = vpop.permute.xlu0 %741
    %743 = vrot.lane.b32.xlu0 %v613, 120
    %v744 = vpop.permute.xlu0 %743
    %745 = vrot.lane.b32.xlu0 %v614, 120
    %v746 = vpop.permute.xlu0 %745
    %747 = vrot.lane.b32.xlu0 %v615, 120
    %v748 = vpop.permute.xlu0 %747
    %749 = vrot.lane.b32.xlu0 %v616, 120
    %v750 = vpop.permute.xlu0 %749
    %751 = vrot.lane.b32.xlu0 %v617, 120
    %v752 = vpop.permute.xlu0 %751
    %753 = vrot.lane.b32.xlu0 %v618, 120
    %v754 = vpop.permute.xlu0 %753
    %755 = vrot.lane.b32.xlu0 %v619, 120
    %v756 = vpop.permute.xlu0 %755
    %757 = vrot.lane.b32.xlu0 %v620, 120
    %v758 = vpop.permute.xlu0 %757
    %759 = vrot.lane.b32.xlu0 %v621, 120
    %v760 = vpop.permute.xlu0 %759
    %761 = vrot.lane.b32.xlu0 %v622, 120
    %v762 = vpop.permute.xlu0 %761
    %763 = vrot.lane.b32.xlu0 %v623, 120
    %v764 = vpop.permute.xlu0 %763
    %765 = vrot.lane.b32.xlu0 %v624, 120
    %v766 = vpop.permute.xlu0 %765
    %767 = vrot.lane.b32.xlu0 %v625, 120
    %v768 = vpop.permute.xlu0 %767
    %769 = vrot.lane.b32.xlu0 %v626, 120
    %v770 = vpop.permute.xlu0 %769
    %771 = vrot.lane.b32.xlu0 %v627, 120
    %v772 = vpop.permute.xlu0 %771
    %773 = vrot.lane.b32.xlu0 %v628, 120
    %v774 = vpop.permute.xlu0 %773
    %775 = vrot.lane.b32.xlu0 %v629, 120
    %v776 = vpop.permute.xlu0 %775
    %777 = vrot.lane.b32.xlu0 %v630, 120
    %v778 = vpop.permute.xlu0 %777
    %779 = vrot.lane.b32.xlu0 %v631, 120
    %v780 = vpop.permute.xlu0 %779
    %781 = vrot.lane.b32.xlu0 %v632, 120
    %v782 = vpop.permute.xlu0 %781
    %783 = vrot.lane.b32.xlu0 %v633, 120
    %v784 = vpop.permute.xlu0 %783
    %785 = vrot.lane.b32.xlu0 %v634, 120
    %v786 = vpop.permute.xlu0 %785
    %787 = vrot.lane.b32.xlu0 %v635, 120
    %v788 = vpop.permute.xlu0 %787
    %789 = vrot.lane.b32.xlu0 %v636, 120
    %v790 = vpop.permute.xlu0 %789
    %791 = vrot.lane.b32.xlu0 %v637, 120
    %v792 = vpop.permute.xlu0 %791
    %793 = vrot.lane.b32.xlu0 %v638, 120
    %v794 = vpop.permute.xlu0 %793
    %795 = vrot.lane.b32.xlu0 %v639, 120
    %v796 = vpop.permute.xlu0 %795
    %797 = vrot.lane.b32.xlu0 %v640, 120
    %v798 = vpop.permute.xlu0 %797
    %799 = vrot.lane.b32.xlu0 %v641, 120
    %v800 = vpop.permute.xlu0 %799
    %801 = vrot.lane.b32.xlu0 %v642, 120
    %v802 = vpop.permute.xlu0 %801
    %803 = vrot.lane.b32.xlu0 %v611, 112
    %v804 = vpop.permute.xlu0 %803
    %805 = vrot.lane.b32.xlu0 %v612, 112
    %v806 = vpop.permute.xlu0 %805
    %807 = vrot.lane.b32.xlu0 %v613, 112
    %v808 = vpop.permute.xlu0 %807
    %809 = vrot.lane.b32.xlu0 %v614, 112
    %v810 = vpop.permute.xlu0 %809
    %811 = vrot.lane.b32.xlu0 %v615, 112
    %v812 = vpop.permute.xlu0 %811
    %813 = vrot.lane.b32.xlu0 %v616, 112
    %v814 = vpop.permute.xlu0 %813
    %815 = vrot.lane.b32.xlu0 %v617, 112
    %v816 = vpop.permute.xlu0 %815
    %817 = vrot.lane.b32.xlu0 %v618, 112
    %v818 = vpop.permute.xlu0 %817
    %819 = vrot.lane.b32.xlu0 %v619, 112
    %v820 = vpop.permute.xlu0 %819
    %821 = vrot.lane.b32.xlu0 %v620, 112
    %v822 = vpop.permute.xlu0 %821
    %823 = vrot.lane.b32.xlu0 %v621, 112
    %v824 = vpop.permute.xlu0 %823
    %825 = vrot.lane.b32.xlu0 %v622, 112
    %v826 = vpop.permute.xlu0 %825
    %827 = vrot.lane.b32.xlu0 %v623, 112
    %v828 = vpop.permute.xlu0 %827
    %829 = vrot.lane.b32.xlu0 %v624, 112
    %v830 = vpop.permute.xlu0 %829
    %831 = vrot.lane.b32.xlu0 %v625, 112
    %v832 = vpop.permute.xlu0 %831
    %833 = vrot.lane.b32.xlu0 %v626, 112
    %v834 = vpop.permute.xlu0 %833
    %835 = vrot.lane.b32.xlu0 %v627, 112
    %v836 = vpop.permute.xlu0 %835
    %837 = vrot.lane.b32.xlu0 %v628, 112
    %v838 = vpop.permute.xlu0 %837
    %839 = vrot.lane.b32.xlu0 %v629, 112
    %v840 = vpop.permute.xlu0 %839
    %841 = vrot.lane.b32.xlu0 %v630, 112
    %v842 = vpop.permute.xlu0 %841
    %843 = vrot.lane.b32.xlu0 %v631, 112
    %v844 = vpop.permute.xlu0 %843
    %845 = vrot.lane.b32.xlu0 %v632, 112
    %v846 = vpop.permute.xlu0 %845
    %847 = vrot.lane.b32.xlu0 %v633, 112
    %v848 = vpop.permute.xlu0 %847
    %849 = vrot.lane.b32.xlu0 %v634, 112
    %v850 = vpop.permute.xlu0 %849
    %851 = vrot.lane.b32.xlu0 %v635, 112
    %v852 = vpop.permute.xlu0 %851
    %853 = vrot.lane.b32.xlu0 %v636, 112
    %v854 = vpop.permute.xlu0 %853
    %855 = vrot.lane.b32.xlu0 %v637, 112
    %v856 = vpop.permute.xlu0 %855
    %857 = vrot.lane.b32.xlu0 %v638, 112
    %v858 = vpop.permute.xlu0 %857
    %859 = vrot.lane.b32.xlu0 %v639, 112
    %v860 = vpop.permute.xlu0 %859
    %861 = vrot.lane.b32.xlu0 %v640, 112
    %v862 = vpop.permute.xlu0 %861
    %863 = vrot.lane.b32.xlu0 %v641, 112
    %v864 = vpop.permute.xlu0 %863
    %865 = vrot.lane.b32.xlu0 %v642, 112
    %v866 = vpop.permute.xlu0 %865
    %867 = vrot.lane.b32.xlu0 %v611, 104
    %v868 = vpop.permute.xlu0 %867
    %869 = vrot.lane.b32.xlu0 %v612, 104
    %v870 = vpop.permute.xlu0 %869
    %871 = vrot.lane.b32.xlu0 %v613, 104
    %v872 = vpop.permute.xlu0 %871
    %873 = vrot.lane.b32.xlu0 %v614, 104
    %v874 = vpop.permute.xlu0 %873
    %875 = vrot.lane.b32.xlu0 %v615, 104
    %v876 = vpop.permute.xlu0 %875
    %877 = vrot.lane.b32.xlu0 %v616, 104
    %v878 = vpop.permute.xlu0 %877
    %879 = vrot.lane.b32.xlu0 %v617, 104
    %v880 = vpop.permute.xlu0 %879
    %881 = vrot.lane.b32.xlu0 %v618, 104
    %v882 = vpop.permute.xlu0 %881
    %883 = vrot.lane.b32.xlu0 %v619, 104
    %v884 = vpop.permute.xlu0 %883
    %885 = vrot.lane.b32.xlu0 %v620, 104
    %v886 = vpop.permute.xlu0 %885
    %887 = vrot.lane.b32.xlu0 %v621, 104
    %v888 = vpop.permute.xlu0 %887
    %889 = vrot.lane.b32.xlu0 %v622, 104
    %v890 = vpop.permute.xlu0 %889
    %891 = vrot.lane.b32.xlu0 %v623, 104
    %v892 = vpop.permute.xlu0 %891
    %893 = vrot.lane.b32.xlu0 %v624, 104
    %v894 = vpop.permute.xlu0 %893
    %895 = vrot.lane.b32.xlu0 %v625, 104
    %v896 = vpop.permute.xlu0 %895
    %897 = vrot.lane.b32.xlu0 %v626, 104
    %v898 = vpop.permute.xlu0 %897
    %899 = vrot.lane.b32.xlu0 %v627, 104
    %v900 = vpop.permute.xlu0 %899
    %901 = vrot.lane.b32.xlu0 %v628, 104
    %v902 = vpop.permute.xlu0 %901
    %903 = vrot.lane.b32.xlu0 %v629, 104
    %v904 = vpop.permute.xlu0 %903
    %905 = vrot.lane.b32.xlu0 %v630, 104
    %v906 = vpop.permute.xlu0 %905
    %907 = vrot.lane.b32.xlu0 %v631, 104
    %v908 = vpop.permute.xlu0 %907
    %909 = vrot.lane.b32.xlu0 %v632, 104
    %v910 = vpop.permute.xlu0 %909
    %911 = vrot.lane.b32.xlu0 %v633, 104
    %v912 = vpop.permute.xlu0 %911
    %913 = vrot.lane.b32.xlu0 %v634, 104
    %v914 = vpop.permute.xlu0 %913
    %915 = vrot.lane.b32.xlu0 %v635, 104
    %v916 = vpop.permute.xlu0 %915
    %917 = vrot.lane.b32.xlu0 %v636, 104
    %v918 = vpop.permute.xlu0 %917
    %919 = vrot.lane.b32.xlu0 %v637, 104
    %v920 = vpop.permute.xlu0 %919
    %921 = vrot.lane.b32.xlu0 %v638, 104
    %v922 = vpop.permute.xlu0 %921
    %923 = vrot.lane.b32.xlu0 %v639, 104
    %v924 = vpop.permute.xlu0 %923
    %925 = vrot.lane.b32.xlu0 %v640, 104
    %v926 = vpop.permute.xlu0 %925
    %927 = vrot.lane.b32.xlu0 %v641, 104
    %v928 = vpop.permute.xlu0 %927
    %929 = vrot.lane.b32.xlu0 %v642, 104
    %v930 = vpop.permute.xlu0 %929
    %963 = vrot.lane.b32.xlu0 %v643, 120
    %v964 = vpop.permute.xlu0 %963
    %965 = vrot.lane.b32.xlu0 %v644, 120
    %v966 = vpop.permute.xlu0 %965
    %967 = vrot.lane.b32.xlu0 %v645, 120
    %v968 = vpop.permute.xlu0 %967
    %969 = vrot.lane.b32.xlu0 %v646, 120
    %v970 = vpop.permute.xlu0 %969
    %971 = vrot.lane.b32.xlu0 %v647, 120
    %v972 = vpop.permute.xlu0 %971
    %973 = vrot.lane.b32.xlu0 %v648, 120
    %v974 = vpop.permute.xlu0 %973
    %975 = vrot.lane.b32.xlu0 %v649, 120
    %v976 = vpop.permute.xlu0 %975
    %977 = vrot.lane.b32.xlu0 %v650, 120
    %v978 = vpop.permute.xlu0 %977
    %979 = vrot.lane.b32.xlu0 %v651, 120
    %v980 = vpop.permute.xlu0 %979
    %981 = vrot.lane.b32.xlu0 %v652, 120
    %v982 = vpop.permute.xlu0 %981
    %983 = vrot.lane.b32.xlu0 %v653, 120
    %v984 = vpop.permute.xlu0 %983
    %985 = vrot.lane.b32.xlu0 %v654, 120
    %v986 = vpop.permute.xlu0 %985
    %987 = vrot.lane.b32.xlu0 %v655, 120
    %v988 = vpop.permute.xlu0 %987
    %989 = vrot.lane.b32.xlu0 %v656, 120
    %v990 = vpop.permute.xlu0 %989
    %991 = vrot.lane.b32.xlu0 %v657, 120
    %v992 = vpop.permute.xlu0 %991
    %993 = vrot.lane.b32.xlu0 %v658, 120
    %v994 = vpop.permute.xlu0 %993
    %995 = vrot.lane.b32.xlu0 %v659, 120
    %v996 = vpop.permute.xlu0 %995
    %997 = vrot.lane.b32.xlu0 %v660, 120
    %v998 = vpop.permute.xlu0 %997
    %999 = vrot.lane.b32.xlu0 %v661, 120
    %v1000 = vpop.permute.xlu0 %999
    %1001 = vrot.lane.b32.xlu0 %v662, 120
    %v1002 = vpop.permute.xlu0 %1001
    %1003 = vrot.lane.b32.xlu0 %v663, 120
    %v1004 = vpop.permute.xlu0 %1003
    %1005 = vrot.lane.b32.xlu0 %v664, 120
    %v1006 = vpop.permute.xlu0 %1005
    %1007 = vrot.lane.b32.xlu0 %v665, 120
    %v1008 = vpop.permute.xlu0 %1007
    %1009 = vrot.lane.b32.xlu0 %v666, 120
    %v1010 = vpop.permute.xlu0 %1009
    %1011 = vrot.lane.b32.xlu0 %v667, 120
    %v1012 = vpop.permute.xlu0 %1011
    %1013 = vrot.lane.b32.xlu0 %v668, 120
    %v1014 = vpop.permute.xlu0 %1013
    %1015 = vrot.lane.b32.xlu0 %v669, 120
    %v1016 = vpop.permute.xlu0 %1015
    %1017 = vrot.lane.b32.xlu0 %v670, 120
    %v1018 = vpop.permute.xlu0 %1017
    %1019 = vrot.lane.b32.xlu0 %v671, 120
    %v1020 = vpop.permute.xlu0 %1019
    %1021 = vrot.lane.b32.xlu0 %v672, 120
    %v1022 = vpop.permute.xlu0 %1021
    %1023 = vrot.lane.b32.xlu0 %v673, 120
    %v1024 = vpop.permute.xlu0 %1023
    %1025 = vrot.lane.b32.xlu0 %v674, 120
    %v1026 = vpop.permute.xlu0 %1025
    %1027 = vrot.lane.b32.xlu0 %v643, 112
    %v1028 = vpop.permute.xlu0 %1027
    %1029 = vrot.lane.b32.xlu0 %v644, 112
    %v1030 = vpop.permute.xlu0 %1029
    %1031 = vrot.lane.b32.xlu0 %v645, 112
    %v1032 = vpop.permute.xlu0 %1031
    %1033 = vrot.lane.b32.xlu0 %v646, 112
    %v1034 = vpop.permute.xlu0 %1033
    %1035 = vrot.lane.b32.xlu0 %v647, 112
    %v1036 = vpop.permute.xlu0 %1035
    %1037 = vrot.lane.b32.xlu0 %v648, 112
    %v1038 = vpop.permute.xlu0 %1037
    %1039 = vrot.lane.b32.xlu0 %v649, 112
    %v1040 = vpop.permute.xlu0 %1039
    %1041 = vrot.lane.b32.xlu0 %v650, 112
    %v1042 = vpop.permute.xlu0 %1041
    %1043 = vrot.lane.b32.xlu0 %v651, 112
    %v1044 = vpop.permute.xlu0 %1043
    %1045 = vrot.lane.b32.xlu0 %v652, 112
    %v1046 = vpop.permute.xlu0 %1045
    %1047 = vrot.lane.b32.xlu0 %v653, 112
    %v1048 = vpop.permute.xlu0 %1047
    %1049 = vrot.lane.b32.xlu0 %v654, 112
    %v1050 = vpop.permute.xlu0 %1049
    %1051 = vrot.lane.b32.xlu0 %v655, 112
    %v1052 = vpop.permute.xlu0 %1051
    %1053 = vrot.lane.b32.xlu0 %v656, 112
    %v1054 = vpop.permute.xlu0 %1053
    %1055 = vrot.lane.b32.xlu0 %v657, 112
    %v1056 = vpop.permute.xlu0 %1055
    %1057 = vrot.lane.b32.xlu0 %v658, 112
    %v1058 = vpop.permute.xlu0 %1057
    %1059 = vrot.lane.b32.xlu0 %v659, 112
    %v1060 = vpop.permute.xlu0 %1059
    %1061 = vrot.lane.b32.xlu0 %v660, 112
    %v1062 = vpop.permute.xlu0 %1061
    %1063 = vrot.lane.b32.xlu0 %v661, 112
    %v1064 = vpop.permute.xlu0 %1063
    %1065 = vrot.lane.b32.xlu0 %v662, 112
    %v1066 = vpop.permute.xlu0 %1065
    %1067 = vrot.lane.b32.xlu0 %v663, 112
    %v1068 = vpop.permute.xlu0 %1067
    %1069 = vrot.lane.b32.xlu0 %v664, 112
    %v1070 = vpop.permute.xlu0 %1069
    %1071 = vrot.lane.b32.xlu0 %v665, 112
    %v1072 = vpop.permute.xlu0 %1071
    %1073 = vrot.lane.b32.xlu0 %v666, 112
    %v1074 = vpop.permute.xlu0 %1073
    %1075 = vrot.lane.b32.xlu0 %v667, 112
    %v1076 = vpop.permute.xlu0 %1075
    %1077 = vrot.lane.b32.xlu0 %v668, 112
    %v1078 = vpop.permute.xlu0 %1077
    %1079 = vrot.lane.b32.xlu0 %v669, 112
    %v1080 = vpop.permute.xlu0 %1079
    %1081 = vrot.lane.b32.xlu0 %v670, 112
    %v1082 = vpop.permute.xlu0 %1081
    %1083 = vrot.lane.b32.xlu0 %v671, 112
    %v1084 = vpop.permute.xlu0 %1083
    %1085 = vrot.lane.b32.xlu0 %v672, 112
    %v1086 = vpop.permute.xlu0 %1085
    %1087 = vrot.lane.b32.xlu0 %v673, 112
    %v1088 = vpop.permute.xlu0 %1087
    %1089 = vrot.lane.b32.xlu0 %v674, 112
    %v1090 = vpop.permute.xlu0 %1089
    %1091 = vrot.lane.b32.xlu0 %v643, 104
    %v1092 = vpop.permute.xlu0 %1091
    %1093 = vrot.lane.b32.xlu0 %v644, 104
    %v1094 = vpop.permute.xlu0 %1093
    %1095 = vrot.lane.b32.xlu0 %v645, 104
    %v1096 = vpop.permute.xlu0 %1095
    %1097 = vrot.lane.b32.xlu0 %v646, 104
    %v1098 = vpop.permute.xlu0 %1097
    %1099 = vrot.lane.b32.xlu0 %v647, 104
    %v1100 = vpop.permute.xlu0 %1099
    %1101 = vrot.lane.b32.xlu0 %v648, 104
    %v1102 = vpop.permute.xlu0 %1101
    %1103 = vrot.lane.b32.xlu0 %v649, 104
    %v1104 = vpop.permute.xlu0 %1103
    %1105 = vrot.lane.b32.xlu0 %v650, 104
    %v1106 = vpop.permute.xlu0 %1105
    %1107 = vrot.lane.b32.xlu0 %v651, 104
    %v1108 = vpop.permute.xlu0 %1107
    %1109 = vrot.lane.b32.xlu0 %v652, 104
    %v1110 = vpop.permute.xlu0 %1109
    %1111 = vrot.lane.b32.xlu0 %v653, 104
    %v1112 = vpop.permute.xlu0 %1111
    %1113 = vrot.lane.b32.xlu0 %v654, 104
    %v1114 = vpop.permute.xlu0 %1113
    %1115 = vrot.lane.b32.xlu0 %v655, 104
    %v1116 = vpop.permute.xlu0 %1115
    %1117 = vrot.lane.b32.xlu0 %v656, 104
    %v1118 = vpop.permute.xlu0 %1117
    %1119 = vrot.lane.b32.xlu0 %v657, 104
    %v1120 = vpop.permute.xlu0 %1119
    %1121 = vrot.lane.b32.xlu0 %v658, 104
    %v1122 = vpop.permute.xlu0 %1121
    %1123 = vrot.lane.b32.xlu0 %v659, 104
    %v1124 = vpop.permute.xlu0 %1123
    %1125 = vrot.lane.b32.xlu0 %v660, 104
    %v1126 = vpop.permute.xlu0 %1125
    %1127 = vrot.lane.b32.xlu0 %v661, 104
    %v1128 = vpop.permute.xlu0 %1127
    %1129 = vrot.lane.b32.xlu0 %v662, 104
    %v1130 = vpop.permute.xlu0 %1129
    %1131 = vrot.lane.b32.xlu0 %v663, 104
    %v1132 = vpop.permute.xlu0 %1131
    %1133 = vrot.lane.b32.xlu0 %v664, 104
    %v1134 = vpop.permute.xlu0 %1133
    %1135 = vrot.lane.b32.xlu0 %v665, 104
    %v1136 = vpop.permute.xlu0 %1135
    %1137 = vrot.lane.b32.xlu0 %v666, 104
    %v1138 = vpop.permute.xlu0 %1137
    %1139 = vrot.lane.b32.xlu0 %v667, 104
    %v1140 = vpop.permute.xlu0 %1139
    %1141 = vrot.lane.b32.xlu0 %v668, 104
    %v1142 = vpop.permute.xlu0 %1141
    %1143 = vrot.lane.b32.xlu0 %v669, 104
    %v1144 = vpop.permute.xlu0 %1143
    %1145 = vrot.lane.b32.xlu0 %v670, 104
    %v1146 = vpop.permute.xlu0 %1145
    %1147 = vrot.lane.b32.xlu0 %v671, 104
    %v1148 = vpop.permute.xlu0 %1147
    %1149 = vrot.lane.b32.xlu0 %v672, 104
    %v1150 = vpop.permute.xlu0 %1149
    %1151 = vrot.lane.b32.xlu0 %v673, 104
    %v1152 = vpop.permute.xlu0 %1151
    %1153 = vrot.lane.b32.xlu0 %v674, 104
    %v1154 = vpop.permute.xlu0 %1153
    %1187 = vrot.lane.b32.xlu0 %v675, 120
    %v1188 = vpop.permute.xlu0 %1187
    %1189 = vrot.lane.b32.xlu0 %v676, 120
    %v1190 = vpop.permute.xlu0 %1189
    %1191 = vrot.lane.b32.xlu0 %v677, 120
    %v1192 = vpop.permute.xlu0 %1191
    %1193 = vrot.lane.b32.xlu0 %v678, 120
    %v1194 = vpop.permute.xlu0 %1193
    %1195 = vrot.lane.b32.xlu0 %v679, 120
    %v1196 = vpop.permute.xlu0 %1195
    %1197 = vrot.lane.b32.xlu0 %v680, 120
    %v1198 = vpop.permute.xlu0 %1197
    %1199 = vrot.lane.b32.xlu0 %v681, 120
    %v1200 = vpop.permute.xlu0 %1199
    %1201 = vrot.lane.b32.xlu0 %v682, 120
    %v1202 = vpop.permute.xlu0 %1201
    %1203 = vrot.lane.b32.xlu0 %v683, 120
    %v1204 = vpop.permute.xlu0 %1203
    %1205 = vrot.lane.b32.xlu0 %v684, 120
    %v1206 = vpop.permute.xlu0 %1205
    %1207 = vrot.lane.b32.xlu0 %v685, 120
    %v1208 = vpop.permute.xlu0 %1207
    %1209 = vrot.lane.b32.xlu0 %v686, 120
    %v1210 = vpop.permute.xlu0 %1209
    %1211 = vrot.lane.b32.xlu0 %v687, 120
    %v1212 = vpop.permute.xlu0 %1211
    %1213 = vrot.lane.b32.xlu0 %v688, 120
    %v1214 = vpop.permute.xlu0 %1213
    %1215 = vrot.lane.b32.xlu0 %v689, 120
    %v1216 = vpop.permute.xlu0 %1215
    %1217 = vrot.lane.b32.xlu0 %v690, 120
    %v1218 = vpop.permute.xlu0 %1217
    %1219 = vrot.lane.b32.xlu0 %v691, 120
    %v1220 = vpop.permute.xlu0 %1219
    %1221 = vrot.lane.b32.xlu0 %v692, 120
    %v1222 = vpop.permute.xlu0 %1221
    %1223 = vrot.lane.b32.xlu0 %v693, 120
    %v1224 = vpop.permute.xlu0 %1223
    %1225 = vrot.lane.b32.xlu0 %v694, 120
    %v1226 = vpop.permute.xlu0 %1225
    %1227 = vrot.lane.b32.xlu0 %v695, 120
    %v1228 = vpop.permute.xlu0 %1227
    %1229 = vrot.lane.b32.xlu0 %v696, 120
    %v1230 = vpop.permute.xlu0 %1229
    %1231 = vrot.lane.b32.xlu0 %v697, 120
    %v1232 = vpop.permute.xlu0 %1231
    %1233 = vrot.lane.b32.xlu0 %v698, 120
    %v1234 = vpop.permute.xlu0 %1233
    %1235 = vrot.lane.b32.xlu0 %v699, 120
    %v1236 = vpop.permute.xlu0 %1235
    %1237 = vrot.lane.b32.xlu0 %v700, 120
    %v1238 = vpop.permute.xlu0 %1237
    %1239 = vrot.lane.b32.xlu0 %v701, 120
    %v1240 = vpop.permute.xlu0 %1239
    %1241 = vrot.lane.b32.xlu0 %v702, 120
    %v1242 = vpop.permute.xlu0 %1241
    %1243 = vrot.lane.b32.xlu0 %v703, 120
    %v1244 = vpop.permute.xlu0 %1243
    %1245 = vrot.lane.b32.xlu0 %v704, 120
    %v1246 = vpop.permute.xlu0 %1245
    %1247 = vrot.lane.b32.xlu0 %v705, 120
    %v1248 = vpop.permute.xlu0 %1247
    %1249 = vrot.lane.b32.xlu0 %v706, 120
    %v1250 = vpop.permute.xlu0 %1249
    %1251 = vrot.lane.b32.xlu0 %v675, 112
    %v1252 = vpop.permute.xlu0 %1251
    %1253 = vrot.lane.b32.xlu0 %v676, 112
    %v1254 = vpop.permute.xlu0 %1253
    %1255 = vrot.lane.b32.xlu0 %v677, 112
    %v1256 = vpop.permute.xlu0 %1255
    %1257 = vrot.lane.b32.xlu0 %v678, 112
    %v1258 = vpop.permute.xlu0 %1257
    %1259 = vrot.lane.b32.xlu0 %v679, 112
    %v1260 = vpop.permute.xlu0 %1259
    %1261 = vrot.lane.b32.xlu0 %v680, 112
    %v1262 = vpop.permute.xlu0 %1261
    %1263 = vrot.lane.b32.xlu0 %v681, 112
    %v1264 = vpop.permute.xlu0 %1263
    %1265 = vrot.lane.b32.xlu0 %v682, 112
    %v1266 = vpop.permute.xlu0 %1265
    %1267 = vrot.lane.b32.xlu0 %v683, 112
    %v1268 = vpop.permute.xlu0 %1267
    %1269 = vrot.lane.b32.xlu0 %v684, 112
    %v1270 = vpop.permute.xlu0 %1269
    %1271 = vrot.lane.b32.xlu0 %v685, 112
    %v1272 = vpop.permute.xlu0 %1271
    %1273 = vrot.lane.b32.xlu0 %v686, 112
    %v1274 = vpop.permute.xlu0 %1273
    %1275 = vrot.lane.b32.xlu0 %v687, 112
    %v1276 = vpop.permute.xlu0 %1275
    %1277 = vrot.lane.b32.xlu0 %v688, 112
    %v1278 = vpop.permute.xlu0 %1277
    %1279 = vrot.lane.b32.xlu0 %v689, 112
    %v1280 = vpop.permute.xlu0 %1279
    %1281 = vrot.lane.b32.xlu0 %v690, 112
    %v1282 = vpop.permute.xlu0 %1281
    %1283 = vrot.lane.b32.xlu0 %v691, 112
    %v1284 = vpop.permute.xlu0 %1283
    %1285 = vrot.lane.b32.xlu0 %v692, 112
    %v1286 = vpop.permute.xlu0 %1285
    %1287 = vrot.lane.b32.xlu0 %v693, 112
    %v1288 = vpop.permute.xlu0 %1287
    %1289 = vrot.lane.b32.xlu0 %v694, 112
    %v1290 = vpop.permute.xlu0 %1289
    %1291 = vrot.lane.b32.xlu0 %v695, 112
    %v1292 = vpop.permute.xlu0 %1291
    %1293 = vrot.lane.b32.xlu0 %v696, 112
    %v1294 = vpop.permute.xlu0 %1293
    %1295 = vrot.lane.b32.xlu0 %v697, 112
    %v1296 = vpop.permute.xlu0 %1295
    %1297 = vrot.lane.b32.xlu0 %v698, 112
    %v1298 = vpop.permute.xlu0 %1297
    %1299 = vrot.lane.b32.xlu0 %v699, 112
    %v1300 = vpop.permute.xlu0 %1299
    %1301 = vrot.lane.b32.xlu0 %v700, 112
    %v1302 = vpop.permute.xlu0 %1301
    %1303 = vrot.lane.b32.xlu0 %v701, 112
    %v1304 = vpop.permute.xlu0 %1303
    %1305 = vrot.lane.b32.xlu0 %v702, 112
    %v1306 = vpop.permute.xlu0 %1305
    %1307 = vrot.lane.b32.xlu0 %v703, 112
    %v1308 = vpop.permute.xlu0 %1307
    %1309 = vrot.lane.b32.xlu0 %v704, 112
    %v1310 = vpop.permute.xlu0 %1309
    %1311 = vrot.lane.b32.xlu0 %v705, 112
    %v1312 = vpop.permute.xlu0 %1311
    %1313 = vrot.lane.b32.xlu0 %v706, 112
    %v1314 = vpop.permute.xlu0 %1313
    %1315 = vrot.lane.b32.xlu0 %v675, 104
    %v1316 = vpop.permute.xlu0 %1315
    %1317 = vrot.lane.b32.xlu0 %v676, 104
    %v1318 = vpop.permute.xlu0 %1317
    %1319 = vrot.lane.b32.xlu0 %v677, 104
    %v1320 = vpop.permute.xlu0 %1319
    %1321 = vrot.lane.b32.xlu0 %v678, 104
    %v1322 = vpop.permute.xlu0 %1321
    %1323 = vrot.lane.b32.xlu0 %v679, 104
    %v1324 = vpop.permute.xlu0 %1323
    %1325 = vrot.lane.b32.xlu0 %v680, 104
    %v1326 = vpop.permute.xlu0 %1325
    %1327 = vrot.lane.b32.xlu0 %v681, 104
    %v1328 = vpop.permute.xlu0 %1327
    %1329 = vrot.lane.b32.xlu0 %v682, 104
    %v1330 = vpop.permute.xlu0 %1329
    %1331 = vrot.lane.b32.xlu0 %v683, 104
    %v1332 = vpop.permute.xlu0 %1331
    %1333 = vrot.lane.b32.xlu0 %v684, 104
    %v1334 = vpop.permute.xlu0 %1333
    %1335 = vrot.lane.b32.xlu0 %v685, 104
    %v1336 = vpop.permute.xlu0 %1335
    %1337 = vrot.lane.b32.xlu0 %v686, 104
    %v1338 = vpop.permute.xlu0 %1337
    %1339 = vrot.lane.b32.xlu0 %v687, 104
    %v1340 = vpop.permute.xlu0 %1339
    %1341 = vrot.lane.b32.xlu0 %v688, 104
    %v1342 = vpop.permute.xlu0 %1341
    %1343 = vrot.lane.b32.xlu0 %v689, 104
    %v1344 = vpop.permute.xlu0 %1343
    %1345 = vrot.lane.b32.xlu0 %v690, 104
    %v1346 = vpop.permute.xlu0 %1345
    %1347 = vrot.lane.b32.xlu0 %v691, 104
    %v1348 = vpop.permute.xlu0 %1347
    %1349 = vrot.lane.b32.xlu0 %v692, 104
    %v1350 = vpop.permute.xlu0 %1349
    %1351 = vrot.lane.b32.xlu0 %v693, 104
    %v1352 = vpop.permute.xlu0 %1351
    %1353 = vrot.lane.b32.xlu0 %v694, 104
    %v1354 = vpop.permute.xlu0 %1353
    %1355 = vrot.lane.b32.xlu0 %v695, 104
    %v1356 = vpop.permute.xlu0 %1355
    %1357 = vrot.lane.b32.xlu0 %v696, 104
    %v1358 = vpop.permute.xlu0 %1357
    %1359 = vrot.lane.b32.xlu0 %v697, 104
    %v1360 = vpop.permute.xlu0 %1359
    %1361 = vrot.lane.b32.xlu0 %v698, 104
    %v1362 = vpop.permute.xlu0 %1361
    %1363 = vrot.lane.b32.xlu0 %v699, 104
    %v1364 = vpop.permute.xlu0 %1363
    %1365 = vrot.lane.b32.xlu0 %v700, 104
    %v1366 = vpop.permute.xlu0 %1365
    %1367 = vrot.lane.b32.xlu0 %v701, 104
    %v1368 = vpop.permute.xlu0 %1367
    %1369 = vrot.lane.b32.xlu0 %v702, 104
    %v1370 = vpop.permute.xlu0 %1369
    %1371 = vrot.lane.b32.xlu0 %v703, 104
    %v1372 = vpop.permute.xlu0 %1371
    %1373 = vrot.lane.b32.xlu0 %v704, 104
    %v1374 = vpop.permute.xlu0 %1373
    %1375 = vrot.lane.b32.xlu0 %v705, 104
    %v1376 = vpop.permute.xlu0 %1375
    %1377 = vrot.lane.b32.xlu0 %v706, 104
    %v1378 = vpop.permute.xlu0 %1377
    %v1379 = vunpack.c.l.b16 %v611
    %v1380 = vunpack.c.l.b16 %v612
    %v1381 = vunpack.c.l.b16 %v613
    %v1382 = vunpack.c.l.b16 %v614
    %v1383 = vpack.c.b16 %v1380, %v1379
    %v1384 = vpack.c.b16 %v1382, %v1381
    %v1385 = vunpack.c.l.b16 %v643
    %v1386 = vunpack.c.l.b16 %v644
    %v1387 = vunpack.c.l.b16 %v645
    %v1388 = vunpack.c.l.b16 %v646
    %v1389 = vpack.c.b16 %v1386, %v1385
    %v1390 = vpack.c.b16 %v1388, %v1387
    %vm1391 = vcmask 64512
    %v1393 = vsel %vm1391, %v1383, 0
    %v1396 = vsel %vm1391, %v1384, 0
    %v1399 = vsel %vm1391, %v1389, 0
    %v1402 = vsel %vm1391, %v1390, 0
    %1404 = vmatpush.bf16.xpose.msra.mxu0 0
    %1405 = vmatpush.bf16.xpose.msra.mxu0 0
    %1406 = vmatpush.bf16.xpose.msra.mxu0 0
    %1407 = vmatpush.bf16.xpose.msra.mxu0 0
    %1408 = vmatpush.bf16.xpose.msra.mxu0 0
    %1409 = vmatpush.bf16.xpose.msra.mxu0 0
    %1410 = vmatpush.bf16.xpose.msra.mxu0 %v1402
    %1411 = vmatpush.bf16.xpose.msra.mxu0 %v1399
    %1412 = vmatmul.bf16.gmra.mxu0 %v1393
    %v1413 = vpop.f32.mrf.mxu0
    %v1414 = vadd.f32 0.0, %v1413
    %v1415 = vpop.f32.mrf.mxu0
    %v1416 = vadd.f32 0.0, %v1415
    %1417 = vmatmul.bf16.gmra.mxu0 %v1396
    %v1418 = vpop.f32.mrf.mxu0
    %v1419 = vadd.f32 0.0, %v1418
    %v1420 = vpop.f32.mrf.mxu0
    %v1421 = vadd.f32 0.0, %v1420
    %1422 = vdwg.mxu0
    %v1423 = vunpack.c.l.b16 %v615
    %v1424 = vunpack.c.l.b16 %v616
    %v1425 = vunpack.c.l.b16 %v617
    %v1426 = vunpack.c.l.b16 %v618
    %v1427 = vpack.c.b16 %v1424, %v1423
    %v1428 = vpack.c.b16 %v1426, %v1425
    %v1429 = vunpack.c.l.b16 %v647
    %v1430 = vunpack.c.l.b16 %v648
    %v1431 = vunpack.c.l.b16 %v649
    %v1432 = vunpack.c.l.b16 %v650
    %v1433 = vpack.c.b16 %v1430, %v1429
    %v1434 = vpack.c.b16 %v1432, %v1431
    %v1436 = vsel %vm1391, %v1427, 0
    %v1439 = vsel %vm1391, %v1428, 0
    %v1442 = vsel %vm1391, %v1433, 0
    %v1445 = vsel %vm1391, %v1434, 0
    %1447 = vmatpush.bf16.xpose.msra.mxu0 0
    %1448 = vmatpush.bf16.xpose.msra.mxu0 0
    %1449 = vmatpush.bf16.xpose.msra.mxu0 0
    %1450 = vmatpush.bf16.xpose.msra.mxu0 0
    %1451 = vmatpush.bf16.xpose.msra.mxu0 0
    %1452 = vmatpush.bf16.xpose.msra.mxu0 0
    %1453 = vmatpush.bf16.xpose.msra.mxu0 %v1445
    %1454 = vmatpush.bf16.xpose.msra.mxu0 %v1442
    %1455 = vmatmul.bf16.gmra.mxu0 %v1436
    %v1456 = vpop.f32.mrf.mxu0
    %v1457 = vadd.f32 0.0, %v1456
    %v1458 = vpop.f32.mrf.mxu0
    %v1459 = vadd.f32 0.0, %v1458
    %1460 = vmatmul.bf16.gmra.mxu0 %v1439
    %v1461 = vpop.f32.mrf.mxu0
    %v1462 = vadd.f32 0.0, %v1461
    %v1463 = vpop.f32.mrf.mxu0
    %v1464 = vadd.f32 0.0, %v1463
    %1465 = vdwg.mxu0
    %v1466 = vunpack.c.l.b16 %v619
    %v1467 = vunpack.c.l.b16 %v620
    %v1468 = vunpack.c.l.b16 %v621
    %v1469 = vunpack.c.l.b16 %v622
    %v1470 = vpack.c.b16 %v1467, %v1466
    %v1471 = vpack.c.b16 %v1469, %v1468
    %v1472 = vunpack.c.l.b16 %v651
    %v1473 = vunpack.c.l.b16 %v652
    %v1474 = vunpack.c.l.b16 %v653
    %v1475 = vunpack.c.l.b16 %v654
    %v1476 = vpack.c.b16 %v1473, %v1472
    %v1477 = vpack.c.b16 %v1475, %v1474
    %v1479 = vsel %vm1391, %v1470, 0
    %v1482 = vsel %vm1391, %v1471, 0
    %v1485 = vsel %vm1391, %v1476, 0
    %v1488 = vsel %vm1391, %v1477, 0
    %1490 = vmatpush.bf16.xpose.msra.mxu0 0
    %1491 = vmatpush.bf16.xpose.msra.mxu0 0
    %1492 = vmatpush.bf16.xpose.msra.mxu0 0
    %1493 = vmatpush.bf16.xpose.msra.mxu0 0
    %1494 = vmatpush.bf16.xpose.msra.mxu0 0
    %1495 = vmatpush.bf16.xpose.msra.mxu0 0
    %1496 = vmatpush.bf16.xpose.msra.mxu0 %v1488
    %1497 = vmatpush.bf16.xpose.msra.mxu0 %v1485
    %1498 = vmatmul.bf16.gmra.mxu0 %v1479
    %v1499 = vpop.f32.mrf.mxu0
    %v1500 = vadd.f32 0.0, %v1499
    %v1501 = vpop.f32.mrf.mxu0
    %v1502 = vadd.f32 0.0, %v1501
    %1503 = vmatmul.bf16.gmra.mxu0 %v1482
    %v1504 = vpop.f32.mrf.mxu0
    %v1505 = vadd.f32 0.0, %v1504
    %v1506 = vpop.f32.mrf.mxu0
    %v1507 = vadd.f32 0.0, %v1506
    %1508 = vdwg.mxu0
    %v1509 = vunpack.c.l.b16 %v623
    %v1510 = vunpack.c.l.b16 %v624
    %v1511 = vunpack.c.l.b16 %v625
    %v1512 = vunpack.c.l.b16 %v626
    %v1513 = vpack.c.b16 %v1510, %v1509
    %v1514 = vpack.c.b16 %v1512, %v1511
    %v1515 = vunpack.c.l.b16 %v655
    %v1516 = vunpack.c.l.b16 %v656
    %v1517 = vunpack.c.l.b16 %v657
    %v1518 = vunpack.c.l.b16 %v658
    %v1519 = vpack.c.b16 %v1516, %v1515
    %v1520 = vpack.c.b16 %v1518, %v1517
    %v1522 = vsel %vm1391, %v1513, 0
    %v1525 = vsel %vm1391, %v1514, 0
    %v1528 = vsel %vm1391, %v1519, 0
    %v1531 = vsel %vm1391, %v1520, 0
    %1533 = vmatpush.bf16.xpose.msra.mxu0 0
    %1534 = vmatpush.bf16.xpose.msra.mxu0 0
    %1535 = vmatpush.bf16.xpose.msra.mxu0 0
    %1536 = vmatpush.bf16.xpose.msra.mxu0 0
    %1537 = vmatpush.bf16.xpose.msra.mxu0 0
    %1538 = vmatpush.bf16.xpose.msra.mxu0 0
    %1539 = vmatpush.bf16.xpose.msra.mxu0 %v1531
    %1540 = vmatpush.bf16.xpose.msra.mxu0 %v1528
    %1541 = vmatmul.bf16.gmra.mxu0 %v1522
    %v1542 = vpop.f32.mrf.mxu0
    %v1543 = vadd.f32 0.0, %v1542
    %v1544 = vpop.f32.mrf.mxu0
    %v1545 = vadd.f32 0.0, %v1544
    %1546 = vmatmul.bf16.gmra.mxu0 %v1525
    %v1547 = vpop.f32.mrf.mxu0
    %v1548 = vadd.f32 0.0, %v1547
    %v1549 = vpop.f32.mrf.mxu0
    %v1550 = vadd.f32 0.0, %v1549
    %1551 = vdwg.mxu0
    %v1552 = vunpack.c.l.b16 %v627
    %v1553 = vunpack.c.l.b16 %v628
    %v1554 = vunpack.c.l.b16 %v629
    %v1555 = vunpack.c.l.b16 %v630
    %v1556 = vpack.c.b16 %v1553, %v1552
    %v1557 = vpack.c.b16 %v1555, %v1554
    %v1558 = vunpack.c.l.b16 %v659
    %v1559 = vunpack.c.l.b16 %v660
    %v1560 = vunpack.c.l.b16 %v661
    %v1561 = vunpack.c.l.b16 %v662
    %v1562 = vpack.c.b16 %v1559, %v1558
    %v1563 = vpack.c.b16 %v1561, %v1560
    %v1565 = vsel %vm1391, %v1556, 0
    %v1568 = vsel %vm1391, %v1557, 0
    %v1571 = vsel %vm1391, %v1562, 0
    %v1574 = vsel %vm1391, %v1563, 0
    %1576 = vmatpush.bf16.xpose.msra.mxu0 0
    %1577 = vmatpush.bf16.xpose.msra.mxu0 0
    %1578 = vmatpush.bf16.xpose.msra.mxu0 0
    %1579 = vmatpush.bf16.xpose.msra.mxu0 0
    %1580 = vmatpush.bf16.xpose.msra.mxu0 0
    %1581 = vmatpush.bf16.xpose.msra.mxu0 0
    %1582 = vmatpush.bf16.xpose.msra.mxu0 %v1574
    %1583 = vmatpush.bf16.xpose.msra.mxu0 %v1571
    %1584 = vmatmul.bf16.gmra.mxu0 %v1565
    %v1585 = vpop.f32.mrf.mxu0
    %v1586 = vadd.f32 0.0, %v1585
    %v1587 = vpop.f32.mrf.mxu0
    %v1588 = vadd.f32 0.0, %v1587
    %1589 = vmatmul.bf16.gmra.mxu0 %v1568
    %v1590 = vpop.f32.mrf.mxu0
    %v1591 = vadd.f32 0.0, %v1590
    %v1592 = vpop.f32.mrf.mxu0
    %v1593 = vadd.f32 0.0, %v1592
    %1594 = vdwg.mxu0
    %v1595 = vunpack.c.l.b16 %v631
    %v1596 = vunpack.c.l.b16 %v632
    %v1597 = vunpack.c.l.b16 %v633
    %v1598 = vunpack.c.l.b16 %v634
    %v1599 = vpack.c.b16 %v1596, %v1595
    %v1600 = vpack.c.b16 %v1598, %v1597
    %v1601 = vunpack.c.l.b16 %v663
    %v1602 = vunpack.c.l.b16 %v664
    %v1603 = vunpack.c.l.b16 %v665
    %v1604 = vunpack.c.l.b16 %v666
    %v1605 = vpack.c.b16 %v1602, %v1601
    %v1606 = vpack.c.b16 %v1604, %v1603
    %v1608 = vsel %vm1391, %v1599, 0
    %v1611 = vsel %vm1391, %v1600, 0
    %v1614 = vsel %vm1391, %v1605, 0
    %v1617 = vsel %vm1391, %v1606, 0
    %1619 = vmatpush.bf16.xpose.msra.mxu0 0
    %1620 = vmatpush.bf16.xpose.msra.mxu0 0
    %1621 = vmatpush.bf16.xpose.msra.mxu0 0
    %1622 = vmatpush.bf16.xpose.msra.mxu0 0
    %1623 = vmatpush.bf16.xpose.msra.mxu0 0
    %1624 = vmatpush.bf16.xpose.msra.mxu0 0
    %1625 = vmatpush.bf16.xpose.msra.mxu0 %v1617
    %1626 = vmatpush.bf16.xpose.msra.mxu0 %v1614
    %1627 = vmatmul.bf16.gmra.mxu0 %v1608
    %v1628 = vpop.f32.mrf.mxu0
    %v1629 = vadd.f32 0.0, %v1628
    %v1630 = vpop.f32.mrf.mxu0
    %v1631 = vadd.f32 0.0, %v1630
    %1632 = vmatmul.bf16.gmra.mxu0 %v1611
    %v1633 = vpop.f32.mrf.mxu0
    %v1634 = vadd.f32 0.0, %v1633
    %v1635 = vpop.f32.mrf.mxu0
    %v1636 = vadd.f32 0.0, %v1635
    %1637 = vdwg.mxu0
    %v1638 = vunpack.c.l.b16 %v635
    %v1639 = vunpack.c.l.b16 %v636
    %v1640 = vunpack.c.l.b16 %v637
    %v1641 = vunpack.c.l.b16 %v638
    %v1642 = vpack.c.b16 %v1639, %v1638
    %v1643 = vpack.c.b16 %v1641, %v1640
    %v1644 = vunpack.c.l.b16 %v667
    %v1645 = vunpack.c.l.b16 %v668
    %v1646 = vunpack.c.l.b16 %v669
    %v1647 = vunpack.c.l.b16 %v670
    %v1648 = vpack.c.b16 %v1645, %v1644
    %v1649 = vpack.c.b16 %v1647, %v1646
    %v1651 = vsel %vm1391, %v1642, 0
    %v1654 = vsel %vm1391, %v1643, 0
    %v1657 = vsel %vm1391, %v1648, 0
    %v1660 = vsel %vm1391, %v1649, 0
    %1662 = vmatpush.bf16.xpose.msra.mxu0 0
    %1663 = vmatpush.bf16.xpose.msra.mxu0 0
    %1664 = vmatpush.bf16.xpose.msra.mxu0 0
    %1665 = vmatpush.bf16.xpose.msra.mxu0 0
    %1666 = vmatpush.bf16.xpose.msra.mxu0 0
    %1667 = vmatpush.bf16.xpose.msra.mxu0 0
    %1668 = vmatpush.bf16.xpose.msra.mxu0 %v1660
    %1669 = vmatpush.bf16.xpose.msra.mxu0 %v1657
    %1670 = vmatmul.bf16.gmra.mxu0 %v1651
    %v1671 = vpop.f32.mrf.mxu0
    %v1672 = vadd.f32 0.0, %v1671
    %v1673 = vpop.f32.mrf.mxu0
    %v1674 = vadd.f32 0.0, %v1673
    %1675 = vmatmul.bf16.gmra.mxu0 %v1654
    %v1676 = vpop.f32.mrf.mxu0
    %v1677 = vadd.f32 0.0, %v1676
    %v1678 = vpop.f32.mrf.mxu0
    %v1679 = vadd.f32 0.0, %v1678
    %1680 = vdwg.mxu0
    %v1681 = vunpack.c.l.b16 %v639
    %v1682 = vunpack.c.l.b16 %v640
    %v1683 = vunpack.c.l.b16 %v641
    %v1684 = vunpack.c.l.b16 %v642
    %v1685 = vpack.c.b16 %v1682, %v1681
    %v1686 = vpack.c.b16 %v1684, %v1683
    %v1687 = vunpack.c.l.b16 %v671
    %v1688 = vunpack.c.l.b16 %v672
    %v1689 = vunpack.c.l.b16 %v673
    %v1690 = vunpack.c.l.b16 %v674
    %v1691 = vpack.c.b16 %v1688, %v1687
    %v1692 = vpack.c.b16 %v1690, %v1689
    %v1694 = vsel %vm1391, %v1685, 0
    %v1697 = vsel %vm1391, %v1686, 0
    %v1700 = vsel %vm1391, %v1691, 0
    %v1703 = vsel %vm1391, %v1692, 0
    %1705 = vmatpush.bf16.xpose.msra.mxu0 0
    %1706 = vmatpush.bf16.xpose.msra.mxu0 0
    %1707 = vmatpush.bf16.xpose.msra.mxu0 0
    %1708 = vmatpush.bf16.xpose.msra.mxu0 0
    %1709 = vmatpush.bf16.xpose.msra.mxu0 0
    %1710 = vmatpush.bf16.xpose.msra.mxu0 0
    %1711 = vmatpush.bf16.xpose.msra.mxu0 %v1703
    %1712 = vmatpush.bf16.xpose.msra.mxu0 %v1700
    %1713 = vmatmul.bf16.gmra.mxu0 %v1694
    %v1714 = vpop.f32.mrf.mxu0
    %v1715 = vadd.f32 0.0, %v1714
    %v1716 = vpop.f32.mrf.mxu0
    %v1717 = vadd.f32 0.0, %v1716
    %1718 = vmatmul.bf16.gmra.mxu0 %v1697
    %v1719 = vpop.f32.mrf.mxu0
    %v1720 = vadd.f32 0.0, %v1719
    %v1721 = vpop.f32.mrf.mxu0
    %v1722 = vadd.f32 0.0, %v1721
    %1723 = vdwg.mxu0
    %v1724 = vunpack.c.l.b16 %v740
    %v1725 = vunpack.c.l.b16 %v742
    %v1726 = vunpack.c.l.b16 %v744
    %v1727 = vunpack.c.l.b16 %v746
    %v1728 = vpack.c.b16 %v1725, %v1724
    %v1729 = vpack.c.b16 %v1727, %v1726
    %v1730 = vunpack.c.l.b16 %v964
    %v1731 = vunpack.c.l.b16 %v966
    %v1732 = vunpack.c.l.b16 %v968
    %v1733 = vunpack.c.l.b16 %v970
    %v1734 = vpack.c.b16 %v1731, %v1730
    %v1735 = vpack.c.b16 %v1733, %v1732
    %v1737 = vsel %vm1391, %v1728, 0
    %v1740 = vsel %vm1391, %v1729, 0
    %v1743 = vsel %vm1391, %v1734, 0
    %v1746 = vsel %vm1391, %v1735, 0
    %1748 = vmatpush.bf16.xpose.msra.mxu0 0
    %1749 = vmatpush.bf16.xpose.msra.mxu0 0
    %1750 = vmatpush.bf16.xpose.msra.mxu0 0
    %1751 = vmatpush.bf16.xpose.msra.mxu0 0
    %1752 = vmatpush.bf16.xpose.msra.mxu0 0
    %1753 = vmatpush.bf16.xpose.msra.mxu0 0
    %1754 = vmatpush.bf16.xpose.msra.mxu0 %v1746
    %1755 = vmatpush.bf16.xpose.msra.mxu0 %v1743
    %1756 = vmatmul.bf16.gmra.mxu0 %v1737
    %v1757 = vpop.f32.mrf.mxu0
    %v1758 = vadd.f32 0.0, %v1757
    %v1759 = vpop.f32.mrf.mxu0
    %v1760 = vadd.f32 0.0, %v1759
    %1761 = vmatmul.bf16.gmra.mxu0 %v1740
    %v1762 = vpop.f32.mrf.mxu0
    %v1763 = vadd.f32 0.0, %v1762
    %v1764 = vpop.f32.mrf.mxu0
    %v1765 = vadd.f32 0.0, %v1764
    %1766 = vdwg.mxu0
    %v1767 = vunpack.c.l.b16 %v748
    %v1768 = vunpack.c.l.b16 %v750
    %v1769 = vunpack.c.l.b16 %v752
    %v1770 = vunpack.c.l.b16 %v754
    %v1771 = vpack.c.b16 %v1768, %v1767
    %v1772 = vpack.c.b16 %v1770, %v1769
    %v1773 = vunpack.c.l.b16 %v972
    %v1774 = vunpack.c.l.b16 %v974
    %v1775 = vunpack.c.l.b16 %v976
    %v1776 = vunpack.c.l.b16 %v978
    %v1777 = vpack.c.b16 %v1774, %v1773
    %v1778 = vpack.c.b16 %v1776, %v1775
    %v1780 = vsel %vm1391, %v1771, 0
    %v1783 = vsel %vm1391, %v1772, 0
    %v1786 = vsel %vm1391, %v1777, 0
    %v1789 = vsel %vm1391, %v1778, 0
    %1791 = vmatpush.bf16.xpose.msra.mxu0 0
    %1792 = vmatpush.bf16.xpose.msra.mxu0 0
    %1793 = vmatpush.bf16.xpose.msra.mxu0 0
    %1794 = vmatpush.bf16.xpose.msra.mxu0 0
    %1795 = vmatpush.bf16.xpose.msra.mxu0 0
    %1796 = vmatpush.bf16.xpose.msra.mxu0 0
    %1797 = vmatpush.bf16.xpose.msra.mxu0 %v1789
    %1798 = vmatpush.bf16.xpose.msra.mxu0 %v1786
    %1799 = vmatmul.bf16.gmra.mxu0 %v1780
    %v1800 = vpop.f32.mrf.mxu0
    %v1801 = vadd.f32 0.0, %v1800
    %v1802 = vpop.f32.mrf.mxu0
    %v1803 = vadd.f32 0.0, %v1802
    %1804 = vmatmul.bf16.gmra.mxu0 %v1783
    %v1805 = vpop.f32.mrf.mxu0
    %v1806 = vadd.f32 0.0, %v1805
    %v1807 = vpop.f32.mrf.mxu0
    %v1808 = vadd.f32 0.0, %v1807
    %1809 = vdwg.mxu0
    %v1810 = vunpack.c.l.b16 %v756
    %v1811 = vunpack.c.l.b16 %v758
    %v1812 = vunpack.c.l.b16 %v760
    %v1813 = vunpack.c.l.b16 %v762
    %v1814 = vpack.c.b16 %v1811, %v1810
    %v1815 = vpack.c.b16 %v1813, %v1812
    %v1816 = vunpack.c.l.b16 %v980
    %v1817 = vunpack.c.l.b16 %v982
    %v1818 = vunpack.c.l.b16 %v984
    %v1819 = vunpack.c.l.b16 %v986
    %v1820 = vpack.c.b16 %v1817, %v1816
    %v1821 = vpack.c.b16 %v1819, %v1818
    %v1823 = vsel %vm1391, %v1814, 0
    %v1826 = vsel %vm1391, %v1815, 0
    %v1829 = vsel %vm1391, %v1820, 0
    %v1832 = vsel %vm1391, %v1821, 0
    %1834 = vmatpush.bf16.xpose.msra.mxu0 0
    %1835 = vmatpush.bf16.xpose.msra.mxu0 0
    %1836 = vmatpush.bf16.xpose.msra.mxu0 0
    %1837 = vmatpush.bf16.xpose.msra.mxu0 0
    %1838 = vmatpush.bf16.xpose.msra.mxu0 0
    %1839 = vmatpush.bf16.xpose.msra.mxu0 0
    %1840 = vmatpush.bf16.xpose.msra.mxu0 %v1832
    %1841 = vmatpush.bf16.xpose.msra.mxu0 %v1829
    %1842 = vmatmul.bf16.gmra.mxu0 %v1823
    %v1843 = vpop.f32.mrf.mxu0
    %v1844 = vadd.f32 0.0, %v1843
    %v1845 = vpop.f32.mrf.mxu0
    %v1846 = vadd.f32 0.0, %v1845
    %1847 = vmatmul.bf16.gmra.mxu0 %v1826
    %v1848 = vpop.f32.mrf.mxu0
    %v1849 = vadd.f32 0.0, %v1848
    %v1850 = vpop.f32.mrf.mxu0
    %v1851 = vadd.f32 0.0, %v1850
    %1852 = vdwg.mxu0
    %v1853 = vunpack.c.l.b16 %v764
    %v1854 = vunpack.c.l.b16 %v766
    %v1855 = vunpack.c.l.b16 %v768
    %v1856 = vunpack.c.l.b16 %v770
    %v1857 = vpack.c.b16 %v1854, %v1853
    %v1858 = vpack.c.b16 %v1856, %v1855
    %v1859 = vunpack.c.l.b16 %v988
    %v1860 = vunpack.c.l.b16 %v990
    %v1861 = vunpack.c.l.b16 %v992
    %v1862 = vunpack.c.l.b16 %v994
    %v1863 = vpack.c.b16 %v1860, %v1859
    %v1864 = vpack.c.b16 %v1862, %v1861
    %v1866 = vsel %vm1391, %v1857, 0
    %v1869 = vsel %vm1391, %v1858, 0
    %v1872 = vsel %vm1391, %v1863, 0
    %v1875 = vsel %vm1391, %v1864, 0
    %1877 = vmatpush.bf16.xpose.msra.mxu0 0
    %1878 = vmatpush.bf16.xpose.msra.mxu0 0
    %1879 = vmatpush.bf16.xpose.msra.mxu0 0
    %1880 = vmatpush.bf16.xpose.msra.mxu0 0
    %1881 = vmatpush.bf16.xpose.msra.mxu0 0
    %1882 = vmatpush.bf16.xpose.msra.mxu0 0
    %1883 = vmatpush.bf16.xpose.msra.mxu0 %v1875
    %1884 = vmatpush.bf16.xpose.msra.mxu0 %v1872
    %1885 = vmatmul.bf16.gmra.mxu0 %v1866
    %v1886 = vpop.f32.mrf.mxu0
    %v1887 = vadd.f32 0.0, %v1886
    %v1888 = vpop.f32.mrf.mxu0
    %v1889 = vadd.f32 0.0, %v1888
    %1890 = vmatmul.bf16.gmra.mxu0 %v1869
    %v1891 = vpop.f32.mrf.mxu0
    %v1892 = vadd.f32 0.0, %v1891
    %v1893 = vpop.f32.mrf.mxu0
    %v1894 = vadd.f32 0.0, %v1893
    %1895 = vdwg.mxu0
    %v1896 = vunpack.c.l.b16 %v772
    %v1897 = vunpack.c.l.b16 %v774
    %v1898 = vunpack.c.l.b16 %v776
    %v1899 = vunpack.c.l.b16 %v778
    %v1900 = vpack.c.b16 %v1897, %v1896
    %v1901 = vpack.c.b16 %v1899, %v1898
    %v1902 = vunpack.c.l.b16 %v996
    %v1903 = vunpack.c.l.b16 %v998
    %v1904 = vunpack.c.l.b16 %v1000
    %v1905 = vunpack.c.l.b16 %v1002
    %v1906 = vpack.c.b16 %v1903, %v1902
    %v1907 = vpack.c.b16 %v1905, %v1904
    %v1909 = vsel %vm1391, %v1900, 0
    %v1912 = vsel %vm1391, %v1901, 0
    %v1915 = vsel %vm1391, %v1906, 0
    %v1918 = vsel %vm1391, %v1907, 0
    %1920 = vmatpush.bf16.xpose.msra.mxu0 0
    %1921 = vmatpush.bf16.xpose.msra.mxu0 0
    %1922 = vmatpush.bf16.xpose.msra.mxu0 0
    %1923 = vmatpush.bf16.xpose.msra.mxu0 0
    %1924 = vmatpush.bf16.xpose.msra.mxu0 0
    %1925 = vmatpush.bf16.xpose.msra.mxu0 0
    %1926 = vmatpush.bf16.xpose.msra.mxu0 %v1918
    %1927 = vmatpush.bf16.xpose.msra.mxu0 %v1915
    %1928 = vmatmul.bf16.gmra.mxu0 %v1909
    %v1929 = vpop.f32.mrf.mxu0
    %v1930 = vadd.f32 0.0, %v1929
    %v1931 = vpop.f32.mrf.mxu0
    %v1932 = vadd.f32 0.0, %v1931
    %1933 = vmatmul.bf16.gmra.mxu0 %v1912
    %v1934 = vpop.f32.mrf.mxu0
    %v1935 = vadd.f32 0.0, %v1934
    %v1936 = vpop.f32.mrf.mxu0
    %v1937 = vadd.f32 0.0, %v1936
    %1938 = vdwg.mxu0
    %v1939 = vunpack.c.l.b16 %v780
    %v1940 = vunpack.c.l.b16 %v782
    %v1941 = vunpack.c.l.b16 %v784
    %v1942 = vunpack.c.l.b16 %v786
    %v1943 = vpack.c.b16 %v1940, %v1939
    %v1944 = vpack.c.b16 %v1942, %v1941
    %v1945 = vunpack.c.l.b16 %v1004
    %v1946 = vunpack.c.l.b16 %v1006
    %v1947 = vunpack.c.l.b16 %v1008
    %v1948 = vunpack.c.l.b16 %v1010
    %v1949 = vpack.c.b16 %v1946, %v1945
    %v1950 = vpack.c.b16 %v1948, %v1947
    %v1952 = vsel %vm1391, %v1943, 0
    %v1955 = vsel %vm1391, %v1944, 0
    %v1958 = vsel %vm1391, %v1949, 0
    %v1961 = vsel %vm1391, %v1950, 0
    %1963 = vmatpush.bf16.xpose.msra.mxu0 0
    %1964 = vmatpush.bf16.xpose.msra.mxu0 0
    %1965 = vmatpush.bf16.xpose.msra.mxu0 0
    %1966 = vmatpush.bf16.xpose.msra.mxu0 0
    %1967 = vmatpush.bf16.xpose.msra.mxu0 0
    %1968 = vmatpush.bf16.xpose.msra.mxu0 0
    %1969 = vmatpush.bf16.xpose.msra.mxu0 %v1961
    %1970 = vmatpush.bf16.xpose.msra.mxu0 %v1958
    %1971 = vmatmul.bf16.gmra.mxu0 %v1952
    %v1972 = vpop.f32.mrf.mxu0
    %v1973 = vadd.f32 0.0, %v1972
    %v1974 = vpop.f32.mrf.mxu0
    %v1975 = vadd.f32 0.0, %v1974
    %1976 = vmatmul.bf16.gmra.mxu0 %v1955
    %v1977 = vpop.f32.mrf.mxu0
    %v1978 = vadd.f32 0.0, %v1977
    %v1979 = vpop.f32.mrf.mxu0
    %v1980 = vadd.f32 0.0, %v1979
    %1981 = vdwg.mxu0
    %v1982 = vunpack.c.l.b16 %v788
    %v1983 = vunpack.c.l.b16 %v790
    %v1984 = vunpack.c.l.b16 %v792
    %v1985 = vunpack.c.l.b16 %v794
    %v1986 = vpack.c.b16 %v1983, %v1982
    %v1987 = vpack.c.b16 %v1985, %v1984
    %v1988 = vunpack.c.l.b16 %v1012
    %v1989 = vunpack.c.l.b16 %v1014
    %v1990 = vunpack.c.l.b16 %v1016
    %v1991 = vunpack.c.l.b16 %v1018
    %v1992 = vpack.c.b16 %v1989, %v1988
    %v1993 = vpack.c.b16 %v1991, %v1990
    %v1995 = vsel %vm1391, %v1986, 0
    %v1998 = vsel %vm1391, %v1987, 0
    %v2001 = vsel %vm1391, %v1992, 0
    %v2004 = vsel %vm1391, %v1993, 0
    %2006 = vmatpush.bf16.xpose.msra.mxu0 0
    %2007 = vmatpush.bf16.xpose.msra.mxu0 0
    %2008 = vmatpush.bf16.xpose.msra.mxu0 0
    %2009 = vmatpush.bf16.xpose.msra.mxu0 0
    %2010 = vmatpush.bf16.xpose.msra.mxu0 0
    %2011 = vmatpush.bf16.xpose.msra.mxu0 0
    %2012 = vmatpush.bf16.xpose.msra.mxu0 %v2004
    %2013 = vmatpush.bf16.xpose.msra.mxu0 %v2001
    %2014 = vmatmul.bf16.gmra.mxu0 %v1995
    %v2015 = vpop.f32.mrf.mxu0
    %v2016 = vadd.f32 0.0, %v2015
    %v2017 = vpop.f32.mrf.mxu0
    %v2018 = vadd.f32 0.0, %v2017
    %2019 = vmatmul.bf16.gmra.mxu0 %v1998
    %v2020 = vpop.f32.mrf.mxu0
    %v2021 = vadd.f32 0.0, %v2020
    %v2022 = vpop.f32.mrf.mxu0
    %v2023 = vadd.f32 0.0, %v2022
    %2024 = vdwg.mxu0
    %v2025 = vunpack.c.l.b16 %v796
    %v2026 = vunpack.c.l.b16 %v798
    %v2027 = vunpack.c.l.b16 %v800
    %v2028 = vunpack.c.l.b16 %v802
    %v2029 = vpack.c.b16 %v2026, %v2025
    %v2030 = vpack.c.b16 %v2028, %v2027
    %v2031 = vunpack.c.l.b16 %v1020
    %v2032 = vunpack.c.l.b16 %v1022
    %v2033 = vunpack.c.l.b16 %v1024
    %v2034 = vunpack.c.l.b16 %v1026
    %v2035 = vpack.c.b16 %v2032, %v2031
    %v2036 = vpack.c.b16 %v2034, %v2033
    %v2038 = vsel %vm1391, %v2029, 0
    %v2041 = vsel %vm1391, %v2030, 0
    %v2044 = vsel %vm1391, %v2035, 0
    %v2047 = vsel %vm1391, %v2036, 0
    %2049 = vmatpush.bf16.xpose.msra.mxu0 0
    %2050 = vmatpush.bf16.xpose.msra.mxu0 0
    %2051 = vmatpush.bf16.xpose.msra.mxu0 0
    %2052 = vmatpush.bf16.xpose.msra.mxu0 0
    %2053 = vmatpush.bf16.xpose.msra.mxu0 0
    %2054 = vmatpush.bf16.xpose.msra.mxu0 0
    %2055 = vmatpush.bf16.xpose.msra.mxu0 %v2047
    %2056 = vmatpush.bf16.xpose.msra.mxu0 %v2044
    %2057 = vmatmul.bf16.gmra.mxu0 %v2038
    %v2058 = vpop.f32.mrf.mxu0
    %v2059 = vadd.f32 0.0, %v2058
    %v2060 = vpop.f32.mrf.mxu0
    %v2061 = vadd.f32 0.0, %v2060
    %2062 = vmatmul.bf16.gmra.mxu0 %v2041
    %v2063 = vpop.f32.mrf.mxu0
    %v2064 = vadd.f32 0.0, %v2063
    %v2065 = vpop.f32.mrf.mxu0
    %v2066 = vadd.f32 0.0, %v2065
    %2067 = vdwg.mxu0
    %v2068 = vunpack.c.l.b16 %v804
    %v2069 = vunpack.c.l.b16 %v806
    %v2070 = vunpack.c.l.b16 %v808
    %v2071 = vunpack.c.l.b16 %v810
    %v2072 = vpack.c.b16 %v2069, %v2068
    %v2073 = vpack.c.b16 %v2071, %v2070
    %v2074 = vunpack.c.l.b16 %v1028
    %v2075 = vunpack.c.l.b16 %v1030
    %v2076 = vunpack.c.l.b16 %v1032
    %v2077 = vunpack.c.l.b16 %v1034
    %v2078 = vpack.c.b16 %v2075, %v2074
    %v2079 = vpack.c.b16 %v2077, %v2076
    %v2081 = vsel %vm1391, %v2072, 0
    %v2084 = vsel %vm1391, %v2073, 0
    %v2087 = vsel %vm1391, %v2078, 0
    %v2090 = vsel %vm1391, %v2079, 0
    %2092 = vmatpush.bf16.xpose.msra.mxu0 0
    %2093 = vmatpush.bf16.xpose.msra.mxu0 0
    %2094 = vmatpush.bf16.xpose.msra.mxu0 0
    %2095 = vmatpush.bf16.xpose.msra.mxu0 0
    %2096 = vmatpush.bf16.xpose.msra.mxu0 0
    %2097 = vmatpush.bf16.xpose.msra.mxu0 0
    %2098 = vmatpush.bf16.xpose.msra.mxu0 %v2090
    %2099 = vmatpush.bf16.xpose.msra.mxu0 %v2087
    %2100 = vmatmul.bf16.gmra.mxu0 %v2081
    %v2101 = vpop.f32.mrf.mxu0
    %v2102 = vadd.f32 0.0, %v2101
    %v2103 = vpop.f32.mrf.mxu0
    %v2104 = vadd.f32 0.0, %v2103
    %2105 = vmatmul.bf16.gmra.mxu0 %v2084
    %v2106 = vpop.f32.mrf.mxu0
    %v2107 = vadd.f32 0.0, %v2106
    %v2108 = vpop.f32.mrf.mxu0
    %v2109 = vadd.f32 0.0, %v2108
    %2110 = vdwg.mxu0
    %v2111 = vunpack.c.l.b16 %v812
    %v2112 = vunpack.c.l.b16 %v814
    %v2113 = vunpack.c.l.b16 %v816
    %v2114 = vunpack.c.l.b16 %v818
    %v2115 = vpack.c.b16 %v2112, %v2111
    %v2116 = vpack.c.b16 %v2114, %v2113
    %v2117 = vunpack.c.l.b16 %v1036
    %v2118 = vunpack.c.l.b16 %v1038
    %v2119 = vunpack.c.l.b16 %v1040
    %v2120 = vunpack.c.l.b16 %v1042
    %v2121 = vpack.c.b16 %v2118, %v2117
    %v2122 = vpack.c.b16 %v2120, %v2119
    %v2124 = vsel %vm1391, %v2115, 0
    %v2127 = vsel %vm1391, %v2116, 0
    %v2130 = vsel %vm1391, %v2121, 0
    %v2133 = vsel %vm1391, %v2122, 0
    %2135 = vmatpush.bf16.xpose.msra.mxu0 0
    %2136 = vmatpush.bf16.xpose.msra.mxu0 0
    %2137 = vmatpush.bf16.xpose.msra.mxu0 0
    %2138 = vmatpush.bf16.xpose.msra.mxu0 0
    %2139 = vmatpush.bf16.xpose.msra.mxu0 0
    %2140 = vmatpush.bf16.xpose.msra.mxu0 0
    %2141 = vmatpush.bf16.xpose.msra.mxu0 %v2133
    %2142 = vmatpush.bf16.xpose.msra.mxu0 %v2130
    %2143 = vmatmul.bf16.gmra.mxu0 %v2124
    %v2144 = vpop.f32.mrf.mxu0
    %v2145 = vadd.f32 0.0, %v2144
    %v2146 = vpop.f32.mrf.mxu0
    %v2147 = vadd.f32 0.0, %v2146
    %2148 = vmatmul.bf16.gmra.mxu0 %v2127
    %v2149 = vpop.f32.mrf.mxu0
    %v2150 = vadd.f32 0.0, %v2149
    %v2151 = vpop.f32.mrf.mxu0
    %v2152 = vadd.f32 0.0, %v2151
    %2153 = vdwg.mxu0
    %v2154 = vunpack.c.l.b16 %v820
    %v2155 = vunpack.c.l.b16 %v822
    %v2156 = vunpack.c.l.b16 %v824
    %v2157 = vunpack.c.l.b16 %v826
    %v2158 = vpack.c.b16 %v2155, %v2154
    %v2159 = vpack.c.b16 %v2157, %v2156
    %v2160 = vunpack.c.l.b16 %v1044
    %v2161 = vunpack.c.l.b16 %v1046
    %v2162 = vunpack.c.l.b16 %v1048
    %v2163 = vunpack.c.l.b16 %v1050
    %v2164 = vpack.c.b16 %v2161, %v2160
    %v2165 = vpack.c.b16 %v2163, %v2162
    %v2167 = vsel %vm1391, %v2158, 0
    %v2170 = vsel %vm1391, %v2159, 0
    %v2173 = vsel %vm1391, %v2164, 0
    %v2176 = vsel %vm1391, %v2165, 0
    %2178 = vmatpush.bf16.xpose.msra.mxu0 0
    %2179 = vmatpush.bf16.xpose.msra.mxu0 0
    %2180 = vmatpush.bf16.xpose.msra.mxu0 0
    %2181 = vmatpush.bf16.xpose.msra.mxu0 0
    %2182 = vmatpush.bf16.xpose.msra.mxu0 0
    %2183 = vmatpush.bf16.xpose.msra.mxu0 0
    %2184 = vmatpush.bf16.xpose.msra.mxu0 %v2176
    %2185 = vmatpush.bf16.xpose.msra.mxu0 %v2173
    %2186 = vmatmul.bf16.gmra.mxu0 %v2167
    %v2187 = vpop.f32.mrf.mxu0
    %v2188 = vadd.f32 0.0, %v2187
    %v2189 = vpop.f32.mrf.mxu0
    %v2190 = vadd.f32 0.0, %v2189
    %2191 = vmatmul.bf16.gmra.mxu0 %v2170
    %v2192 = vpop.f32.mrf.mxu0
    %v2193 = vadd.f32 0.0, %v2192
    %v2194 = vpop.f32.mrf.mxu0
    %v2195 = vadd.f32 0.0, %v2194
    %2196 = vdwg.mxu0
    %v2197 = vunpack.c.l.b16 %v828
    %v2198 = vunpack.c.l.b16 %v830
    %v2199 = vunpack.c.l.b16 %v832
    %v2200 = vunpack.c.l.b16 %v834
    %v2201 = vpack.c.b16 %v2198, %v2197
    %v2202 = vpack.c.b16 %v2200, %v2199
    %v2203 = vunpack.c.l.b16 %v1052
    %v2204 = vunpack.c.l.b16 %v1054
    %v2205 = vunpack.c.l.b16 %v1056
    %v2206 = vunpack.c.l.b16 %v1058
    %v2207 = vpack.c.b16 %v2204, %v2203
    %v2208 = vpack.c.b16 %v2206, %v2205
    %v2210 = vsel %vm1391, %v2201, 0
    %v2213 = vsel %vm1391, %v2202, 0
    %v2216 = vsel %vm1391, %v2207, 0
    %v2219 = vsel %vm1391, %v2208, 0
    %2221 = vmatpush.bf16.xpose.msra.mxu0 0
    %2222 = vmatpush.bf16.xpose.msra.mxu0 0
    %2223 = vmatpush.bf16.xpose.msra.mxu0 0
    %2224 = vmatpush.bf16.xpose.msra.mxu0 0
    %2225 = vmatpush.bf16.xpose.msra.mxu0 0
    %2226 = vmatpush.bf16.xpose.msra.mxu0 0
    %2227 = vmatpush.bf16.xpose.msra.mxu0 %v2219
    %2228 = vmatpush.bf16.xpose.msra.mxu0 %v2216
    %2229 = vmatmul.bf16.gmra.mxu0 %v2210
    %v2230 = vpop.f32.mrf.mxu0
    %v2231 = vadd.f32 0.0, %v2230
    %v2232 = vpop.f32.mrf.mxu0
    %v2233 = vadd.f32 0.0, %v2232
    %2234 = vmatmul.bf16.gmra.mxu0 %v2213
    %v2235 = vpop.f32.mrf.mxu0
    %v2236 = vadd.f32 0.0, %v2235
    %v2237 = vpop.f32.mrf.mxu0
    %v2238 = vadd.f32 0.0, %v2237
    %2239 = vdwg.mxu0
    %v2240 = vunpack.c.l.b16 %v836
    %v2241 = vunpack.c.l.b16 %v838
    %v2242 = vunpack.c.l.b16 %v840
    %v2243 = vunpack.c.l.b16 %v842
    %v2244 = vpack.c.b16 %v2241, %v2240
    %v2245 = vpack.c.b16 %v2243, %v2242
    %v2246 = vunpack.c.l.b16 %v1060
    %v2247 = vunpack.c.l.b16 %v1062
    %v2248 = vunpack.c.l.b16 %v1064
    %v2249 = vunpack.c.l.b16 %v1066
    %v2250 = vpack.c.b16 %v2247, %v2246
    %v2251 = vpack.c.b16 %v2249, %v2248
    %v2253 = vsel %vm1391, %v2244, 0
    %v2256 = vsel %vm1391, %v2245, 0
    %v2259 = vsel %vm1391, %v2250, 0
    %v2262 = vsel %vm1391, %v2251, 0
    %2264 = vmatpush.bf16.xpose.msra.mxu0 0
    %2265 = vmatpush.bf16.xpose.msra.mxu0 0
    %2266 = vmatpush.bf16.xpose.msra.mxu0 0
    %2267 = vmatpush.bf16.xpose.msra.mxu0 0
    %2268 = vmatpush.bf16.xpose.msra.mxu0 0
    %2269 = vmatpush.bf16.xpose.msra.mxu0 0
    %2270 = vmatpush.bf16.xpose.msra.mxu0 %v2262
    %2271 = vmatpush.bf16.xpose.msra.mxu0 %v2259
    %2272 = vmatmul.bf16.gmra.mxu0 %v2253
    %v2273 = vpop.f32.mrf.mxu0
    %v2274 = vadd.f32 0.0, %v2273
    %v2275 = vpop.f32.mrf.mxu0
    %v2276 = vadd.f32 0.0, %v2275
    %2277 = vmatmul.bf16.gmra.mxu0 %v2256
    %v2278 = vpop.f32.mrf.mxu0
    %v2279 = vadd.f32 0.0, %v2278
    %v2280 = vpop.f32.mrf.mxu0
    %v2281 = vadd.f32 0.0, %v2280
    %2282 = vdwg.mxu0
    %v2283 = vunpack.c.l.b16 %v844
    %v2284 = vunpack.c.l.b16 %v846
    %v2285 = vunpack.c.l.b16 %v848
    %v2286 = vunpack.c.l.b16 %v850
    %v2287 = vpack.c.b16 %v2284, %v2283
    %v2288 = vpack.c.b16 %v2286, %v2285
    %v2289 = vunpack.c.l.b16 %v1068
    %v2290 = vunpack.c.l.b16 %v1070
    %v2291 = vunpack.c.l.b16 %v1072
    %v2292 = vunpack.c.l.b16 %v1074
    %v2293 = vpack.c.b16 %v2290, %v2289
    %v2294 = vpack.c.b16 %v2292, %v2291
    %v2296 = vsel %vm1391, %v2287, 0
    %v2299 = vsel %vm1391, %v2288, 0
    %v2302 = vsel %vm1391, %v2293, 0
    %v2305 = vsel %vm1391, %v2294, 0
    %2307 = vmatpush.bf16.xpose.msra.mxu0 0
    %2308 = vmatpush.bf16.xpose.msra.mxu0 0
    %2309 = vmatpush.bf16.xpose.msra.mxu0 0
    %2310 = vmatpush.bf16.xpose.msra.mxu0 0
    %2311 = vmatpush.bf16.xpose.msra.mxu0 0
    %2312 = vmatpush.bf16.xpose.msra.mxu0 0
    %2313 = vmatpush.bf16.xpose.msra.mxu0 %v2305
    %2314 = vmatpush.bf16.xpose.msra.mxu0 %v2302
    %2315 = vmatmul.bf16.gmra.mxu0 %v2296
    %v2316 = vpop.f32.mrf.mxu0
    %v2317 = vadd.f32 0.0, %v2316
    %v2318 = vpop.f32.mrf.mxu0
    %v2319 = vadd.f32 0.0, %v2318
    %2320 = vmatmul.bf16.gmra.mxu0 %v2299
    %v2321 = vpop.f32.mrf.mxu0
    %v2322 = vadd.f32 0.0, %v2321
    %v2323 = vpop.f32.mrf.mxu0
    %v2324 = vadd.f32 0.0, %v2323
    %2325 = vdwg.mxu0
    %v2326 = vunpack.c.l.b16 %v852
    %v2327 = vunpack.c.l.b16 %v854
    %v2328 = vunpack.c.l.b16 %v856
    %v2329 = vunpack.c.l.b16 %v858
    %v2330 = vpack.c.b16 %v2327, %v2326
    %v2331 = vpack.c.b16 %v2329, %v2328
    %v2332 = vunpack.c.l.b16 %v1076
    %v2333 = vunpack.c.l.b16 %v1078
    %v2334 = vunpack.c.l.b16 %v1080
    %v2335 = vunpack.c.l.b16 %v1082
    %v2336 = vpack.c.b16 %v2333, %v2332
    %v2337 = vpack.c.b16 %v2335, %v2334
    %v2339 = vsel %vm1391, %v2330, 0
    %v2342 = vsel %vm1391, %v2331, 0
    %v2345 = vsel %vm1391, %v2336, 0
    %v2348 = vsel %vm1391, %v2337, 0
    %2350 = vmatpush.bf16.xpose.msra.mxu0 0
    %2351 = vmatpush.bf16.xpose.msra.mxu0 0
    %2352 = vmatpush.bf16.xpose.msra.mxu0 0
    %2353 = vmatpush.bf16.xpose.msra.mxu0 0
    %2354 = vmatpush.bf16.xpose.msra.mxu0 0
    %2355 = vmatpush.bf16.xpose.msra.mxu0 0
    %2356 = vmatpush.bf16.xpose.msra.mxu0 %v2348
    %2357 = vmatpush.bf16.xpose.msra.mxu0 %v2345
    %2358 = vmatmul.bf16.gmra.mxu0 %v2339
    %v2359 = vpop.f32.mrf.mxu0
    %v2360 = vadd.f32 0.0, %v2359
    %v2361 = vpop.f32.mrf.mxu0
    %v2362 = vadd.f32 0.0, %v2361
    %2363 = vmatmul.bf16.gmra.mxu0 %v2342
    %v2364 = vpop.f32.mrf.mxu0
    %v2365 = vadd.f32 0.0, %v2364
    %v2366 = vpop.f32.mrf.mxu0
    %v2367 = vadd.f32 0.0, %v2366
    %2368 = vdwg.mxu0
    %v2369 = vunpack.c.l.b16 %v860
    %v2370 = vunpack.c.l.b16 %v862
    %v2371 = vunpack.c.l.b16 %v864
    %v2372 = vunpack.c.l.b16 %v866
    %v2373 = vpack.c.b16 %v2370, %v2369
    %v2374 = vpack.c.b16 %v2372, %v2371
    %v2375 = vunpack.c.l.b16 %v1084
    %v2376 = vunpack.c.l.b16 %v1086
    %v2377 = vunpack.c.l.b16 %v1088
    %v2378 = vunpack.c.l.b16 %v1090
    %v2379 = vpack.c.b16 %v2376, %v2375
    %v2380 = vpack.c.b16 %v2378, %v2377
    %v2382 = vsel %vm1391, %v2373, 0
    %v2385 = vsel %vm1391, %v2374, 0
    %v2388 = vsel %vm1391, %v2379, 0
    %v2391 = vsel %vm1391, %v2380, 0
    %2393 = vmatpush.bf16.xpose.msra.mxu0 0
    %2394 = vmatpush.bf16.xpose.msra.mxu0 0
    %2395 = vmatpush.bf16.xpose.msra.mxu0 0
    %2396 = vmatpush.bf16.xpose.msra.mxu0 0
    %2397 = vmatpush.bf16.xpose.msra.mxu0 0
    %2398 = vmatpush.bf16.xpose.msra.mxu0 0
    %2399 = vmatpush.bf16.xpose.msra.mxu0 %v2391
    %2400 = vmatpush.bf16.xpose.msra.mxu0 %v2388
    %2401 = vmatmul.bf16.gmra.mxu0 %v2382
    %v2402 = vpop.f32.mrf.mxu0
    %v2403 = vadd.f32 0.0, %v2402
    %v2404 = vpop.f32.mrf.mxu0
    %v2405 = vadd.f32 0.0, %v2404
    %2406 = vmatmul.bf16.gmra.mxu0 %v2385
    %v2407 = vpop.f32.mrf.mxu0
    %v2408 = vadd.f32 0.0, %v2407
    %v2409 = vpop.f32.mrf.mxu0
    %v2410 = vadd.f32 0.0, %v2409
    %2411 = vdwg.mxu0
    %v2412 = vunpack.c.l.b16 %v868
    %v2413 = vunpack.c.l.b16 %v870
    %v2414 = vunpack.c.l.b16 %v872
    %v2415 = vunpack.c.l.b16 %v874
    %v2416 = vpack.c.b16 %v2413, %v2412
    %v2417 = vpack.c.b16 %v2415, %v2414
    %v2418 = vunpack.c.l.b16 %v1092
    %v2419 = vunpack.c.l.b16 %v1094
    %v2420 = vunpack.c.l.b16 %v1096
    %v2421 = vunpack.c.l.b16 %v1098
    %v2422 = vpack.c.b16 %v2419, %v2418
    %v2423 = vpack.c.b16 %v2421, %v2420
    %v2425 = vsel %vm1391, %v2416, 0
    %v2428 = vsel %vm1391, %v2417, 0
    %v2431 = vsel %vm1391, %v2422, 0
    %v2434 = vsel %vm1391, %v2423, 0
    %2436 = vmatpush.bf16.xpose.msra.mxu0 0
    %2437 = vmatpush.bf16.xpose.msra.mxu0 0
    %2438 = vmatpush.bf16.xpose.msra.mxu0 0
    %2439 = vmatpush.bf16.xpose.msra.mxu0 0
    %2440 = vmatpush.bf16.xpose.msra.mxu0 0
    %2441 = vmatpush.bf16.xpose.msra.mxu0 0
    %2442 = vmatpush.bf16.xpose.msra.mxu0 %v2434
    %2443 = vmatpush.bf16.xpose.msra.mxu0 %v2431
    %2444 = vmatmul.bf16.gmra.mxu0 %v2425
    %v2445 = vpop.f32.mrf.mxu0
    %v2446 = vadd.f32 0.0, %v2445
    %v2447 = vpop.f32.mrf.mxu0
    %v2448 = vadd.f32 0.0, %v2447
    %2449 = vmatmul.bf16.gmra.mxu0 %v2428
    %v2450 = vpop.f32.mrf.mxu0
    %v2451 = vadd.f32 0.0, %v2450
    %v2452 = vpop.f32.mrf.mxu0
    %v2453 = vadd.f32 0.0, %v2452
    %2454 = vdwg.mxu0
    %v2455 = vunpack.c.l.b16 %v876
    %v2456 = vunpack.c.l.b16 %v878
    %v2457 = vunpack.c.l.b16 %v880
    %v2458 = vunpack.c.l.b16 %v882
    %v2459 = vpack.c.b16 %v2456, %v2455
    %v2460 = vpack.c.b16 %v2458, %v2457
    %v2461 = vunpack.c.l.b16 %v1100
    %v2462 = vunpack.c.l.b16 %v1102
    %v2463 = vunpack.c.l.b16 %v1104
    %v2464 = vunpack.c.l.b16 %v1106
    %v2465 = vpack.c.b16 %v2462, %v2461
    %v2466 = vpack.c.b16 %v2464, %v2463
    %v2468 = vsel %vm1391, %v2459, 0
    %v2471 = vsel %vm1391, %v2460, 0
    %v2474 = vsel %vm1391, %v2465, 0
    %v2477 = vsel %vm1391, %v2466, 0
    %2479 = vmatpush.bf16.xpose.msra.mxu0 0
    %2480 = vmatpush.bf16.xpose.msra.mxu0 0
    %2481 = vmatpush.bf16.xpose.msra.mxu0 0
    %2482 = vmatpush.bf16.xpose.msra.mxu0 0
    %2483 = vmatpush.bf16.xpose.msra.mxu0 0
    %2484 = vmatpush.bf16.xpose.msra.mxu0 0
    %2485 = vmatpush.bf16.xpose.msra.mxu0 %v2477
    %2486 = vmatpush.bf16.xpose.msra.mxu0 %v2474
    %2487 = vmatmul.bf16.gmra.mxu0 %v2468
    %v2488 = vpop.f32.mrf.mxu0
    %v2489 = vadd.f32 0.0, %v2488
    %v2490 = vpop.f32.mrf.mxu0
    %v2491 = vadd.f32 0.0, %v2490
    %2492 = vmatmul.bf16.gmra.mxu0 %v2471
    %v2493 = vpop.f32.mrf.mxu0
    %v2494 = vadd.f32 0.0, %v2493
    %v2495 = vpop.f32.mrf.mxu0
    %v2496 = vadd.f32 0.0, %v2495
    %2497 = vdwg.mxu0
    %v2498 = vunpack.c.l.b16 %v884
    %v2499 = vunpack.c.l.b16 %v886
    %v2500 = vunpack.c.l.b16 %v888
    %v2501 = vunpack.c.l.b16 %v890
    %v2502 = vpack.c.b16 %v2499, %v2498
    %v2503 = vpack.c.b16 %v2501, %v2500
    %v2504 = vunpack.c.l.b16 %v1108
    %v2505 = vunpack.c.l.b16 %v1110
    %v2506 = vunpack.c.l.b16 %v1112
    %v2507 = vunpack.c.l.b16 %v1114
    %v2508 = vpack.c.b16 %v2505, %v2504
    %v2509 = vpack.c.b16 %v2507, %v2506
    %v2511 = vsel %vm1391, %v2502, 0
    %v2514 = vsel %vm1391, %v2503, 0
    %v2517 = vsel %vm1391, %v2508, 0
    %v2520 = vsel %vm1391, %v2509, 0
    %2522 = vmatpush.bf16.xpose.msra.mxu0 0
    %2523 = vmatpush.bf16.xpose.msra.mxu0 0
    %2524 = vmatpush.bf16.xpose.msra.mxu0 0
    %2525 = vmatpush.bf16.xpose.msra.mxu0 0
    %2526 = vmatpush.bf16.xpose.msra.mxu0 0
    %2527 = vmatpush.bf16.xpose.msra.mxu0 0
    %2528 = vmatpush.bf16.xpose.msra.mxu0 %v2520
    %2529 = vmatpush.bf16.xpose.msra.mxu0 %v2517
    %2530 = vmatmul.bf16.gmra.mxu0 %v2511
    %v2531 = vpop.f32.mrf.mxu0
    %v2532 = vadd.f32 0.0, %v2531
    %v2533 = vpop.f32.mrf.mxu0
    %v2534 = vadd.f32 0.0, %v2533
    %2535 = vmatmul.bf16.gmra.mxu0 %v2514
    %v2536 = vpop.f32.mrf.mxu0
    %v2537 = vadd.f32 0.0, %v2536
    %v2538 = vpop.f32.mrf.mxu0
    %v2539 = vadd.f32 0.0, %v2538
    %2540 = vdwg.mxu0
    %v2541 = vunpack.c.l.b16 %v892
    %v2542 = vunpack.c.l.b16 %v894
    %v2543 = vunpack.c.l.b16 %v896
    %v2544 = vunpack.c.l.b16 %v898
    %v2545 = vpack.c.b16 %v2542, %v2541
    %v2546 = vpack.c.b16 %v2544, %v2543
    %v2547 = vunpack.c.l.b16 %v1116
    %v2548 = vunpack.c.l.b16 %v1118
    %v2549 = vunpack.c.l.b16 %v1120
    %v2550 = vunpack.c.l.b16 %v1122
    %v2551 = vpack.c.b16 %v2548, %v2547
    %v2552 = vpack.c.b16 %v2550, %v2549
    %v2554 = vsel %vm1391, %v2545, 0
    %v2557 = vsel %vm1391, %v2546, 0
    %v2560 = vsel %vm1391, %v2551, 0
    %v2563 = vsel %vm1391, %v2552, 0
    %2565 = vmatpush.bf16.xpose.msra.mxu0 0
    %2566 = vmatpush.bf16.xpose.msra.mxu0 0
    %2567 = vmatpush.bf16.xpose.msra.mxu0 0
    %2568 = vmatpush.bf16.xpose.msra.mxu0 0
    %2569 = vmatpush.bf16.xpose.msra.mxu0 0
    %2570 = vmatpush.bf16.xpose.msra.mxu0 0
    %2571 = vmatpush.bf16.xpose.msra.mxu0 %v2563
    %2572 = vmatpush.bf16.xpose.msra.mxu0 %v2560
    %2573 = vmatmul.bf16.gmra.mxu0 %v2554
    %v2574 = vpop.f32.mrf.mxu0
    %v2575 = vadd.f32 0.0, %v2574
    %v2576 = vpop.f32.mrf.mxu0
    %v2577 = vadd.f32 0.0, %v2576
    %2578 = vmatmul.bf16.gmra.mxu0 %v2557
    %v2579 = vpop.f32.mrf.mxu0
    %v2580 = vadd.f32 0.0, %v2579
    %v2581 = vpop.f32.mrf.mxu0
    %v2582 = vadd.f32 0.0, %v2581
    %2583 = vdwg.mxu0
    %v2584 = vunpack.c.l.b16 %v900
    %v2585 = vunpack.c.l.b16 %v902
    %v2586 = vunpack.c.l.b16 %v904
    %v2587 = vunpack.c.l.b16 %v906
    %v2588 = vpack.c.b16 %v2585, %v2584
    %v2589 = vpack.c.b16 %v2587, %v2586
    %v2590 = vunpack.c.l.b16 %v1124
    %v2591 = vunpack.c.l.b16 %v1126
    %v2592 = vunpack.c.l.b16 %v1128
    %v2593 = vunpack.c.l.b16 %v1130
    %v2594 = vpack.c.b16 %v2591, %v2590
    %v2595 = vpack.c.b16 %v2593, %v2592
    %v2597 = vsel %vm1391, %v2588, 0
    %v2600 = vsel %vm1391, %v2589, 0
    %v2603 = vsel %vm1391, %v2594, 0
    %v2606 = vsel %vm1391, %v2595, 0
    %2608 = vmatpush.bf16.xpose.msra.mxu0 0
    %2609 = vmatpush.bf16.xpose.msra.mxu0 0
    %2610 = vmatpush.bf16.xpose.msra.mxu0 0
    %2611 = vmatpush.bf16.xpose.msra.mxu0 0
    %2612 = vmatpush.bf16.xpose.msra.mxu0 0
    %2613 = vmatpush.bf16.xpose.msra.mxu0 0
    %2614 = vmatpush.bf16.xpose.msra.mxu0 %v2606
    %2615 = vmatpush.bf16.xpose.msra.mxu0 %v2603
    %2616 = vmatmul.bf16.gmra.mxu0 %v2597
    %v2617 = vpop.f32.mrf.mxu0
    %v2618 = vadd.f32 0.0, %v2617
    %v2619 = vpop.f32.mrf.mxu0
    %v2620 = vadd.f32 0.0, %v2619
    %2621 = vmatmul.bf16.gmra.mxu0 %v2600
    %v2622 = vpop.f32.mrf.mxu0
    %v2623 = vadd.f32 0.0, %v2622
    %v2624 = vpop.f32.mrf.mxu0
    %v2625 = vadd.f32 0.0, %v2624
    %2626 = vdwg.mxu0
    %v2627 = vunpack.c.l.b16 %v908
    %v2628 = vunpack.c.l.b16 %v910
    %v2629 = vunpack.c.l.b16 %v912
    %v2630 = vunpack.c.l.b16 %v914
    %v2631 = vpack.c.b16 %v2628, %v2627
    %v2632 = vpack.c.b16 %v2630, %v2629
    %v2633 = vunpack.c.l.b16 %v1132
    %v2634 = vunpack.c.l.b16 %v1134
    %v2635 = vunpack.c.l.b16 %v1136
    %v2636 = vunpack.c.l.b16 %v1138
    %v2637 = vpack.c.b16 %v2634, %v2633
    %v2638 = vpack.c.b16 %v2636, %v2635
    %v2640 = vsel %vm1391, %v2631, 0
    %v2643 = vsel %vm1391, %v2632, 0
    %v2646 = vsel %vm1391, %v2637, 0
    %v2649 = vsel %vm1391, %v2638, 0
    %2651 = vmatpush.bf16.xpose.msra.mxu0 0
    %2652 = vmatpush.bf16.xpose.msra.mxu0 0
    %2653 = vmatpush.bf16.xpose.msra.mxu0 0
    %2654 = vmatpush.bf16.xpose.msra.mxu0 0
    %2655 = vmatpush.bf16.xpose.msra.mxu0 0
    %2656 = vmatpush.bf16.xpose.msra.mxu0 0
    %2657 = vmatpush.bf16.xpose.msra.mxu0 %v2649
    %2658 = vmatpush.bf16.xpose.msra.mxu0 %v2646
    %2659 = vmatmul.bf16.gmra.mxu0 %v2640
    %v2660 = vpop.f32.mrf.mxu0
    %v2661 = vadd.f32 0.0, %v2660
    %v2662 = vpop.f32.mrf.mxu0
    %v2663 = vadd.f32 0.0, %v2662
    %2664 = vmatmul.bf16.gmra.mxu0 %v2643
    %v2665 = vpop.f32.mrf.mxu0
    %v2666 = vadd.f32 0.0, %v2665
    %v2667 = vpop.f32.mrf.mxu0
    %v2668 = vadd.f32 0.0, %v2667
    %2669 = vdwg.mxu0
    %v2670 = vunpack.c.l.b16 %v916
    %v2671 = vunpack.c.l.b16 %v918
    %v2672 = vunpack.c.l.b16 %v920
    %v2673 = vunpack.c.l.b16 %v922
    %v2674 = vpack.c.b16 %v2671, %v2670
    %v2675 = vpack.c.b16 %v2673, %v2672
    %v2676 = vunpack.c.l.b16 %v1140
    %v2677 = vunpack.c.l.b16 %v1142
    %v2678 = vunpack.c.l.b16 %v1144
    %v2679 = vunpack.c.l.b16 %v1146
    %v2680 = vpack.c.b16 %v2677, %v2676
    %v2681 = vpack.c.b16 %v2679, %v2678
    %v2683 = vsel %vm1391, %v2674, 0
    %v2686 = vsel %vm1391, %v2675, 0
    %v2689 = vsel %vm1391, %v2680, 0
    %v2692 = vsel %vm1391, %v2681, 0
    %2694 = vmatpush.bf16.xpose.msra.mxu0 0
    %2695 = vmatpush.bf16.xpose.msra.mxu0 0
    %2696 = vmatpush.bf16.xpose.msra.mxu0 0
    %2697 = vmatpush.bf16.xpose.msra.mxu0 0
    %2698 = vmatpush.bf16.xpose.msra.mxu0 0
    %2699 = vmatpush.bf16.xpose.msra.mxu0 0
    %2700 = vmatpush.bf16.xpose.msra.mxu0 %v2692
    %2701 = vmatpush.bf16.xpose.msra.mxu0 %v2689
    %2702 = vmatmul.bf16.gmra.mxu0 %v2683
    %v2703 = vpop.f32.mrf.mxu0
    %v2704 = vadd.f32 0.0, %v2703
    %v2705 = vpop.f32.mrf.mxu0
    %v2706 = vadd.f32 0.0, %v2705
    %2707 = vmatmul.bf16.gmra.mxu0 %v2686
    %v2708 = vpop.f32.mrf.mxu0
    %v2709 = vadd.f32 0.0, %v2708
    %v2710 = vpop.f32.mrf.mxu0
    %v2711 = vadd.f32 0.0, %v2710
    %2712 = vdwg.mxu0
    %v2713 = vunpack.c.l.b16 %v924
    %v2714 = vunpack.c.l.b16 %v926
    %v2715 = vunpack.c.l.b16 %v928
    %v2716 = vunpack.c.l.b16 %v930
    %v2717 = vpack.c.b16 %v2714, %v2713
    %v2718 = vpack.c.b16 %v2716, %v2715
    %v2719 = vunpack.c.l.b16 %v1148
    %v2720 = vunpack.c.l.b16 %v1150
    %v2721 = vunpack.c.l.b16 %v1152
    %v2722 = vunpack.c.l.b16 %v1154
    %v2723 = vpack.c.b16 %v2720, %v2719
    %v2724 = vpack.c.b16 %v2722, %v2721
    %v2726 = vsel %vm1391, %v2717, 0
    %v2729 = vsel %vm1391, %v2718, 0
    %v2732 = vsel %vm1391, %v2723, 0
    %v2735 = vsel %vm1391, %v2724, 0
    %2737 = vmatpush.bf16.xpose.msra.mxu0 0
    %2738 = vmatpush.bf16.xpose.msra.mxu0 0
    %2739 = vmatpush.bf16.xpose.msra.mxu0 0
    %2740 = vmatpush.bf16.xpose.msra.mxu0 0
    %2741 = vmatpush.bf16.xpose.msra.mxu0 0
    %2742 = vmatpush.bf16.xpose.msra.mxu0 0
    %2743 = vmatpush.bf16.xpose.msra.mxu0 %v2735
    %2744 = vmatpush.bf16.xpose.msra.mxu0 %v2732
    %2745 = vmatmul.bf16.gmra.mxu0 %v2726
    %v2746 = vpop.f32.mrf.mxu0
    %v2747 = vadd.f32 0.0, %v2746
    %v2748 = vpop.f32.mrf.mxu0
    %v2749 = vadd.f32 0.0, %v2748
    %2750 = vmatmul.bf16.gmra.mxu0 %v2729
    %v2751 = vpop.f32.mrf.mxu0
    %v2752 = vadd.f32 0.0, %v2751
    %v2753 = vpop.f32.mrf.mxu0
    %v2754 = vadd.f32 0.0, %v2753
    %2755 = vdwg.mxu0
    %v2756 = vsel %vm231, %v1414, -inf
    %2757 = vmax.xlane.f32.xlu0 %v2756
    %v2758 = vpop.xlane.xlu0 %2757
    %v2759 = vsel %vm231, %v1416, -inf
    %2760 = vmax.xlane.f32.xlu0 %v2759
    %v2761 = vpop.xlane.xlu0 %2760
    %v2762 = vsel %vm231, %v1419, -inf
    %2763 = vmax.xlane.f32.xlu0 %v2762
    %v2764 = vpop.xlane.xlu0 %2763
    %v2765 = vsel %vm231, %v1421, -inf
    %2766 = vmax.xlane.f32.xlu0 %v2765
    %v2767 = vpop.xlane.xlu0 %2766
    %v2768 = vsel %vm231, %v1457, -inf
    %2769 = vmax.xlane.f32.xlu0 %v2768
    %v2770 = vpop.xlane.xlu0 %2769
    %v2771 = vsel %vm231, %v1459, -inf
    %2772 = vmax.xlane.f32.xlu0 %v2771
    %v2773 = vpop.xlane.xlu0 %2772
    %v2774 = vsel %vm231, %v1462, -inf
    %2775 = vmax.xlane.f32.xlu0 %v2774
    %v2776 = vpop.xlane.xlu0 %2775
    %v2777 = vsel %vm231, %v1464, -inf
    %2778 = vmax.xlane.f32.xlu0 %v2777
    %v2779 = vpop.xlane.xlu0 %2778
    %v2780 = vsel %vm231, %v1500, -inf
    %2781 = vmax.xlane.f32.xlu0 %v2780
    %v2782 = vpop.xlane.xlu0 %2781
    %v2783 = vsel %vm231, %v1502, -inf
    %2784 = vmax.xlane.f32.xlu0 %v2783
    %v2785 = vpop.xlane.xlu0 %2784
    %v2786 = vsel %vm231, %v1505, -inf
    %2787 = vmax.xlane.f32.xlu0 %v2786
    %v2788 = vpop.xlane.xlu0 %2787
    %v2789 = vsel %vm231, %v1507, -inf
    %2790 = vmax.xlane.f32.xlu0 %v2789
    %v2791 = vpop.xlane.xlu0 %2790
    %v2792 = vsel %vm231, %v1543, -inf
    %2793 = vmax.xlane.f32.xlu0 %v2792
    %v2794 = vpop.xlane.xlu0 %2793
    %v2795 = vsel %vm231, %v1545, -inf
    %2796 = vmax.xlane.f32.xlu0 %v2795
    %v2797 = vpop.xlane.xlu0 %2796
    %v2798 = vsel %vm231, %v1548, -inf
    %2799 = vmax.xlane.f32.xlu0 %v2798
    %v2800 = vpop.xlane.xlu0 %2799
    %v2801 = vsel %vm231, %v1550, -inf
    %2802 = vmax.xlane.f32.xlu0 %v2801
    %v2803 = vpop.xlane.xlu0 %2802
    %v2804 = vsel %vm231, %v1586, -inf
    %2805 = vmax.xlane.f32.xlu0 %v2804
    %v2806 = vpop.xlane.xlu0 %2805
    %v2807 = vsel %vm231, %v1588, -inf
    %2808 = vmax.xlane.f32.xlu0 %v2807
    %v2809 = vpop.xlane.xlu0 %2808
    %v2810 = vsel %vm231, %v1591, -inf
    %2811 = vmax.xlane.f32.xlu0 %v2810
    %v2812 = vpop.xlane.xlu0 %2811
    %v2813 = vsel %vm231, %v1593, -inf
    %2814 = vmax.xlane.f32.xlu0 %v2813
    %v2815 = vpop.xlane.xlu0 %2814
    %v2816 = vsel %vm231, %v1629, -inf
    %2817 = vmax.xlane.f32.xlu0 %v2816
    %v2818 = vpop.xlane.xlu0 %2817
    %v2819 = vsel %vm231, %v1631, -inf
    %2820 = vmax.xlane.f32.xlu0 %v2819
    %v2821 = vpop.xlane.xlu0 %2820
    %v2822 = vsel %vm231, %v1634, -inf
    %2823 = vmax.xlane.f32.xlu0 %v2822
    %v2824 = vpop.xlane.xlu0 %2823
    %v2825 = vsel %vm231, %v1636, -inf
    %2826 = vmax.xlane.f32.xlu0 %v2825
    %v2827 = vpop.xlane.xlu0 %2826
    %v2828 = vsel %vm231, %v1672, -inf
    %2829 = vmax.xlane.f32.xlu0 %v2828
    %v2830 = vpop.xlane.xlu0 %2829
    %v2831 = vsel %vm231, %v1674, -inf
    %2832 = vmax.xlane.f32.xlu0 %v2831
    %v2833 = vpop.xlane.xlu0 %2832
    %v2834 = vsel %vm231, %v1677, -inf
    %2835 = vmax.xlane.f32.xlu0 %v2834
    %v2836 = vpop.xlane.xlu0 %2835
    %v2837 = vsel %vm231, %v1679, -inf
    %2838 = vmax.xlane.f32.xlu0 %v2837
    %v2839 = vpop.xlane.xlu0 %2838
    %v2840 = vsel %vm231, %v1715, -inf
    %2841 = vmax.xlane.f32.xlu0 %v2840
    %v2842 = vpop.xlane.xlu0 %2841
    %v2843 = vsel %vm231, %v1717, -inf
    %2844 = vmax.xlane.f32.xlu0 %v2843
    %v2845 = vpop.xlane.xlu0 %2844
    %v2846 = vsel %vm231, %v1720, -inf
    %2847 = vmax.xlane.f32.xlu0 %v2846
    %v2848 = vpop.xlane.xlu0 %2847
    %v2849 = vsel %vm231, %v1722, -inf
    %2850 = vmax.xlane.f32.xlu0 %v2849
    %v2851 = vpop.xlane.xlu0 %2850
    %v2852 = vsel %vm231, %v1758, -inf
    %2853 = vmax.xlane.f32.xlu0 %v2852
    %v2854 = vpop.xlane.xlu0 %2853
    %v2855 = vsel %vm231, %v1760, -inf
    %2856 = vmax.xlane.f32.xlu0 %v2855
    %v2857 = vpop.xlane.xlu0 %2856
    %v2858 = vsel %vm231, %v1763, -inf
    %2859 = vmax.xlane.f32.xlu0 %v2858
    %v2860 = vpop.xlane.xlu0 %2859
    %v2861 = vsel %vm231, %v1765, -inf
    %2862 = vmax.xlane.f32.xlu0 %v2861
    %v2863 = vpop.xlane.xlu0 %2862
    %v2864 = vsel %vm231, %v1801, -inf
    %2865 = vmax.xlane.f32.xlu0 %v2864
    %v2866 = vpop.xlane.xlu0 %2865
    %v2867 = vsel %vm231, %v1803, -inf
    %2868 = vmax.xlane.f32.xlu0 %v2867
    %v2869 = vpop.xlane.xlu0 %2868
    %v2870 = vsel %vm231, %v1806, -inf
    %2871 = vmax.xlane.f32.xlu0 %v2870
    %v2872 = vpop.xlane.xlu0 %2871
    %v2873 = vsel %vm231, %v1808, -inf
    %2874 = vmax.xlane.f32.xlu0 %v2873
    %v2875 = vpop.xlane.xlu0 %2874
    %v2876 = vsel %vm231, %v1844, -inf
    %2877 = vmax.xlane.f32.xlu0 %v2876
    %v2878 = vpop.xlane.xlu0 %2877
    %v2879 = vsel %vm231, %v1846, -inf
    %2880 = vmax.xlane.f32.xlu0 %v2879
    %v2881 = vpop.xlane.xlu0 %2880
    %v2882 = vsel %vm231, %v1849, -inf
    %2883 = vmax.xlane.f32.xlu0 %v2882
    %v2884 = vpop.xlane.xlu0 %2883
    %v2885 = vsel %vm231, %v1851, -inf
    %2886 = vmax.xlane.f32.xlu0 %v2885
    %v2887 = vpop.xlane.xlu0 %2886
    %v2888 = vsel %vm231, %v1887, -inf
    %2889 = vmax.xlane.f32.xlu0 %v2888
    %v2890 = vpop.xlane.xlu0 %2889
    %v2891 = vsel %vm231, %v1889, -inf
    %2892 = vmax.xlane.f32.xlu0 %v2891
    %v2893 = vpop.xlane.xlu0 %2892
    %v2894 = vsel %vm231, %v1892, -inf
    %2895 = vmax.xlane.f32.xlu0 %v2894
    %v2896 = vpop.xlane.xlu0 %2895
    %v2897 = vsel %vm231, %v1894, -inf
    %2898 = vmax.xlane.f32.xlu0 %v2897
    %v2899 = vpop.xlane.xlu0 %2898
    %v2900 = vsel %vm231, %v1930, -inf
    %2901 = vmax.xlane.f32.xlu0 %v2900
    %v2902 = vpop.xlane.xlu0 %2901
    %v2903 = vsel %vm231, %v1932, -inf
    %2904 = vmax.xlane.f32.xlu0 %v2903
    %v2905 = vpop.xlane.xlu0 %2904
    %v2906 = vsel %vm231, %v1935, -inf
    %2907 = vmax.xlane.f32.xlu0 %v2906
    %v2908 = vpop.xlane.xlu0 %2907
    %v2909 = vsel %vm231, %v1937, -inf
    %2910 = vmax.xlane.f32.xlu0 %v2909
    %v2911 = vpop.xlane.xlu0 %2910
    %v2912 = vsel %vm231, %v1973, -inf
    %2913 = vmax.xlane.f32.xlu0 %v2912
    %v2914 = vpop.xlane.xlu0 %2913
    %v2915 = vsel %vm231, %v1975, -inf
    %2916 = vmax.xlane.f32.xlu0 %v2915
    %v2917 = vpop.xlane.xlu0 %2916
    %v2918 = vsel %vm231, %v1978, -inf
    %2919 = vmax.xlane.f32.xlu0 %v2918
    %v2920 = vpop.xlane.xlu0 %2919
    %v2921 = vsel %vm231, %v1980, -inf
    %2922 = vmax.xlane.f32.xlu0 %v2921
    %v2923 = vpop.xlane.xlu0 %2922
    %v2924 = vsel %vm231, %v2016, -inf
    %2925 = vmax.xlane.f32.xlu0 %v2924
    %v2926 = vpop.xlane.xlu0 %2925
    %v2927 = vsel %vm231, %v2018, -inf
    %2928 = vmax.xlane.f32.xlu0 %v2927
    %v2929 = vpop.xlane.xlu0 %2928
    %v2930 = vsel %vm231, %v2021, -inf
    %2931 = vmax.xlane.f32.xlu0 %v2930
    %v2932 = vpop.xlane.xlu0 %2931
    %v2933 = vsel %vm231, %v2023, -inf
    %2934 = vmax.xlane.f32.xlu0 %v2933
    %v2935 = vpop.xlane.xlu0 %2934
    %v2936 = vsel %vm231, %v2059, -inf
    %2937 = vmax.xlane.f32.xlu0 %v2936
    %v2938 = vpop.xlane.xlu0 %2937
    %v2939 = vsel %vm231, %v2061, -inf
    %2940 = vmax.xlane.f32.xlu0 %v2939
    %v2941 = vpop.xlane.xlu0 %2940
    %v2942 = vsel %vm231, %v2064, -inf
    %2943 = vmax.xlane.f32.xlu0 %v2942
    %v2944 = vpop.xlane.xlu0 %2943
    %v2945 = vsel %vm231, %v2066, -inf
    %2946 = vmax.xlane.f32.xlu0 %v2945
    %v2947 = vpop.xlane.xlu0 %2946
    %v2948 = vsel %vm231, %v2102, -inf
    %2949 = vmax.xlane.f32.xlu0 %v2948
    %v2950 = vpop.xlane.xlu0 %2949
    %v2951 = vsel %vm231, %v2104, -inf
    %2952 = vmax.xlane.f32.xlu0 %v2951
    %v2953 = vpop.xlane.xlu0 %2952
    %v2954 = vsel %vm231, %v2107, -inf
    %2955 = vmax.xlane.f32.xlu0 %v2954
    %v2956 = vpop.xlane.xlu0 %2955
    %v2957 = vsel %vm231, %v2109, -inf
    %2958 = vmax.xlane.f32.xlu0 %v2957
    %v2959 = vpop.xlane.xlu0 %2958
    %v2960 = vsel %vm231, %v2145, -inf
    %2961 = vmax.xlane.f32.xlu0 %v2960
    %v2962 = vpop.xlane.xlu0 %2961
    %v2963 = vsel %vm231, %v2147, -inf
    %2964 = vmax.xlane.f32.xlu0 %v2963
    %v2965 = vpop.xlane.xlu0 %2964
    %v2966 = vsel %vm231, %v2150, -inf
    %2967 = vmax.xlane.f32.xlu0 %v2966
    %v2968 = vpop.xlane.xlu0 %2967
    %v2969 = vsel %vm231, %v2152, -inf
    %2970 = vmax.xlane.f32.xlu0 %v2969
    %v2971 = vpop.xlane.xlu0 %2970
    %v2972 = vsel %vm231, %v2188, -inf
    %2973 = vmax.xlane.f32.xlu0 %v2972
    %v2974 = vpop.xlane.xlu0 %2973
    %v2975 = vsel %vm231, %v2190, -inf
    %2976 = vmax.xlane.f32.xlu0 %v2975
    %v2977 = vpop.xlane.xlu0 %2976
    %v2978 = vsel %vm231, %v2193, -inf
    %2979 = vmax.xlane.f32.xlu0 %v2978
    %v2980 = vpop.xlane.xlu0 %2979
    %v2981 = vsel %vm231, %v2195, -inf
    %2982 = vmax.xlane.f32.xlu0 %v2981
    %v2983 = vpop.xlane.xlu0 %2982
    %v2984 = vsel %vm231, %v2231, -inf
    %2985 = vmax.xlane.f32.xlu0 %v2984
    %v2986 = vpop.xlane.xlu0 %2985
    %v2987 = vsel %vm231, %v2233, -inf
    %2988 = vmax.xlane.f32.xlu0 %v2987
    %v2989 = vpop.xlane.xlu0 %2988
    %v2990 = vsel %vm231, %v2236, -inf
    %2991 = vmax.xlane.f32.xlu0 %v2990
    %v2992 = vpop.xlane.xlu0 %2991
    %v2993 = vsel %vm231, %v2238, -inf
    %2994 = vmax.xlane.f32.xlu0 %v2993
    %v2995 = vpop.xlane.xlu0 %2994
    %v2996 = vsel %vm231, %v2274, -inf
    %2997 = vmax.xlane.f32.xlu0 %v2996
    %v2998 = vpop.xlane.xlu0 %2997
    %v2999 = vsel %vm231, %v2276, -inf
    %3000 = vmax.xlane.f32.xlu0 %v2999
    %v3001 = vpop.xlane.xlu0 %3000
    %v3002 = vsel %vm231, %v2279, -inf
    %3003 = vmax.xlane.f32.xlu0 %v3002
    %v3004 = vpop.xlane.xlu0 %3003
    %v3005 = vsel %vm231, %v2281, -inf
    %3006 = vmax.xlane.f32.xlu0 %v3005
    %v3007 = vpop.xlane.xlu0 %3006
    %v3008 = vsel %vm231, %v2317, -inf
    %3009 = vmax.xlane.f32.xlu0 %v3008
    %v3010 = vpop.xlane.xlu0 %3009
    %v3011 = vsel %vm231, %v2319, -inf
    %3012 = vmax.xlane.f32.xlu0 %v3011
    %v3013 = vpop.xlane.xlu0 %3012
    %v3014 = vsel %vm231, %v2322, -inf
    %3015 = vmax.xlane.f32.xlu0 %v3014
    %v3016 = vpop.xlane.xlu0 %3015
    %v3017 = vsel %vm231, %v2324, -inf
    %3018 = vmax.xlane.f32.xlu0 %v3017
    %v3019 = vpop.xlane.xlu0 %3018
    %v3020 = vsel %vm231, %v2360, -inf
    %3021 = vmax.xlane.f32.xlu0 %v3020
    %v3022 = vpop.xlane.xlu0 %3021
    %v3023 = vsel %vm231, %v2362, -inf
    %3024 = vmax.xlane.f32.xlu0 %v3023
    %v3025 = vpop.xlane.xlu0 %3024
    %v3026 = vsel %vm231, %v2365, -inf
    %3027 = vmax.xlane.f32.xlu0 %v3026
    %v3028 = vpop.xlane.xlu0 %3027
    %v3029 = vsel %vm231, %v2367, -inf
    %3030 = vmax.xlane.f32.xlu0 %v3029
    %v3031 = vpop.xlane.xlu0 %3030
    %v3032 = vsel %vm231, %v2403, -inf
    %3033 = vmax.xlane.f32.xlu0 %v3032
    %v3034 = vpop.xlane.xlu0 %3033
    %v3035 = vsel %vm231, %v2405, -inf
    %3036 = vmax.xlane.f32.xlu0 %v3035
    %v3037 = vpop.xlane.xlu0 %3036
    %v3038 = vsel %vm231, %v2408, -inf
    %3039 = vmax.xlane.f32.xlu0 %v3038
    %v3040 = vpop.xlane.xlu0 %3039
    %v3041 = vsel %vm231, %v2410, -inf
    %3042 = vmax.xlane.f32.xlu0 %v3041
    %v3043 = vpop.xlane.xlu0 %3042
    %v3044 = vsel %vm231, %v2446, -inf
    %3045 = vmax.xlane.f32.xlu0 %v3044
    %v3046 = vpop.xlane.xlu0 %3045
    %v3047 = vsel %vm231, %v2448, -inf
    %3048 = vmax.xlane.f32.xlu0 %v3047
    %v3049 = vpop.xlane.xlu0 %3048
    %v3050 = vsel %vm231, %v2451, -inf
    %3051 = vmax.xlane.f32.xlu0 %v3050
    %v3052 = vpop.xlane.xlu0 %3051
    %v3053 = vsel %vm231, %v2453, -inf
    %3054 = vmax.xlane.f32.xlu0 %v3053
    %v3055 = vpop.xlane.xlu0 %3054
    %v3056 = vsel %vm231, %v2489, -inf
    %3057 = vmax.xlane.f32.xlu0 %v3056
    %v3058 = vpop.xlane.xlu0 %3057
    %v3059 = vsel %vm231, %v2491, -inf
    %3060 = vmax.xlane.f32.xlu0 %v3059
    %v3061 = vpop.xlane.xlu0 %3060
    %v3062 = vsel %vm231, %v2494, -inf
    %3063 = vmax.xlane.f32.xlu0 %v3062
    %v3064 = vpop.xlane.xlu0 %3063
    %v3065 = vsel %vm231, %v2496, -inf
    %3066 = vmax.xlane.f32.xlu0 %v3065
    %v3067 = vpop.xlane.xlu0 %3066
    %v3068 = vsel %vm231, %v2532, -inf
    %3069 = vmax.xlane.f32.xlu0 %v3068
    %v3070 = vpop.xlane.xlu0 %3069
    %v3071 = vsel %vm231, %v2534, -inf
    %3072 = vmax.xlane.f32.xlu0 %v3071
    %v3073 = vpop.xlane.xlu0 %3072
    %v3074 = vsel %vm231, %v2537, -inf
    %3075 = vmax.xlane.f32.xlu0 %v3074
    %v3076 = vpop.xlane.xlu0 %3075
    %v3077 = vsel %vm231, %v2539, -inf
    %3078 = vmax.xlane.f32.xlu0 %v3077
    %v3079 = vpop.xlane.xlu0 %3078
    %v3080 = vsel %vm231, %v2575, -inf
    %3081 = vmax.xlane.f32.xlu0 %v3080
    %v3082 = vpop.xlane.xlu0 %3081
    %v3083 = vsel %vm231, %v2577, -inf
    %3084 = vmax.xlane.f32.xlu0 %v3083
    %v3085 = vpop.xlane.xlu0 %3084
    %v3086 = vsel %vm231, %v2580, -inf
    %3087 = vmax.xlane.f32.xlu0 %v3086
    %v3088 = vpop.xlane.xlu0 %3087
    %v3089 = vsel %vm231, %v2582, -inf
    %3090 = vmax.xlane.f32.xlu0 %v3089
    %v3091 = vpop.xlane.xlu0 %3090
    %v3092 = vsel %vm231, %v2618, -inf
    %3093 = vmax.xlane.f32.xlu0 %v3092
    %v3094 = vpop.xlane.xlu0 %3093
    %v3095 = vsel %vm231, %v2620, -inf
    %3096 = vmax.xlane.f32.xlu0 %v3095
    %v3097 = vpop.xlane.xlu0 %3096
    %v3098 = vsel %vm231, %v2623, -inf
    %3099 = vmax.xlane.f32.xlu0 %v3098
    %v3100 = vpop.xlane.xlu0 %3099
    %v3101 = vsel %vm231, %v2625, -inf
    %3102 = vmax.xlane.f32.xlu0 %v3101
    %v3103 = vpop.xlane.xlu0 %3102
    %v3104 = vsel %vm231, %v2661, -inf
    %3105 = vmax.xlane.f32.xlu0 %v3104
    %v3106 = vpop.xlane.xlu0 %3105
    %v3107 = vsel %vm231, %v2663, -inf
    %3108 = vmax.xlane.f32.xlu0 %v3107
    %v3109 = vpop.xlane.xlu0 %3108
    %v3110 = vsel %vm231, %v2666, -inf
    %3111 = vmax.xlane.f32.xlu0 %v3110
    %v3112 = vpop.xlane.xlu0 %3111
    %v3113 = vsel %vm231, %v2668, -inf
    %3114 = vmax.xlane.f32.xlu0 %v3113
    %v3115 = vpop.xlane.xlu0 %3114
    %v3116 = vsel %vm231, %v2704, -inf
    %3117 = vmax.xlane.f32.xlu0 %v3116
    %v3118 = vpop.xlane.xlu0 %3117
    %v3119 = vsel %vm231, %v2706, -inf
    %3120 = vmax.xlane.f32.xlu0 %v3119
    %v3121 = vpop.xlane.xlu0 %3120
    %v3122 = vsel %vm231, %v2709, -inf
    %3123 = vmax.xlane.f32.xlu0 %v3122
    %v3124 = vpop.xlane.xlu0 %3123
    %v3125 = vsel %vm231, %v2711, -inf
    %3126 = vmax.xlane.f32.xlu0 %v3125
    %v3127 = vpop.xlane.xlu0 %3126
    %v3128 = vsel %vm231, %v2747, -inf
    %3129 = vmax.xlane.f32.xlu0 %v3128
    %v3130 = vpop.xlane.xlu0 %3129
    %v3131 = vsel %vm231, %v2749, -inf
    %3132 = vmax.xlane.f32.xlu0 %v3131
    %v3133 = vpop.xlane.xlu0 %3132
    %v3134 = vsel %vm231, %v2752, -inf
    %3135 = vmax.xlane.f32.xlu0 %v3134
    %v3136 = vpop.xlane.xlu0 %3135
    %v3137 = vsel %vm231, %v2754, -inf
    %3138 = vmax.xlane.f32.xlu0 %v3137
    %v3139 = vpop.xlane.xlu0 %3138
    %v3140 = vsub.f32 %v1414, %v2758
    %v3141 = vsub.f32 %v1416, %v2761
    %v3142 = vsub.f32 %v1419, %v2764
    %v3143 = vsub.f32 %v1421, %v2767
    %v3144 = vsub.f32 %v1457, %v2770
    %v3145 = vsub.f32 %v1459, %v2773
    %v3146 = vsub.f32 %v1462, %v2776
    %v3147 = vsub.f32 %v1464, %v2779
    %v3148 = vsub.f32 %v1500, %v2782
    %v3149 = vsub.f32 %v1502, %v2785
    %v3150 = vsub.f32 %v1505, %v2788
    %v3151 = vsub.f32 %v1507, %v2791
    %v3152 = vsub.f32 %v1543, %v2794
    %v3153 = vsub.f32 %v1545, %v2797
    %v3154 = vsub.f32 %v1548, %v2800
    %v3155 = vsub.f32 %v1550, %v2803
    %v3156 = vsub.f32 %v1586, %v2806
    %v3157 = vsub.f32 %v1588, %v2809
    %v3158 = vsub.f32 %v1591, %v2812
    %v3159 = vsub.f32 %v1593, %v2815
    %v3160 = vsub.f32 %v1629, %v2818
    %v3161 = vsub.f32 %v1631, %v2821
    %v3162 = vsub.f32 %v1634, %v2824
    %v3163 = vsub.f32 %v1636, %v2827
    %v3164 = vsub.f32 %v1672, %v2830
    %v3165 = vsub.f32 %v1674, %v2833
    %v3166 = vsub.f32 %v1677, %v2836
    %v3167 = vsub.f32 %v1679, %v2839
    %v3168 = vsub.f32 %v1715, %v2842
    %v3169 = vsub.f32 %v1717, %v2845
    %v3170 = vsub.f32 %v1720, %v2848
    %v3171 = vsub.f32 %v1722, %v2851
    %v3172 = vsub.f32 %v1758, %v2854
    %v3173 = vsub.f32 %v1760, %v2857
    %v3174 = vsub.f32 %v1763, %v2860
    %v3175 = vsub.f32 %v1765, %v2863
    %v3176 = vsub.f32 %v1801, %v2866
    %v3177 = vsub.f32 %v1803, %v2869
    %v3178 = vsub.f32 %v1806, %v2872
    %v3179 = vsub.f32 %v1808, %v2875
    %v3180 = vsub.f32 %v1844, %v2878
    %v3181 = vsub.f32 %v1846, %v2881
    %v3182 = vsub.f32 %v1849, %v2884
    %v3183 = vsub.f32 %v1851, %v2887
    %v3184 = vsub.f32 %v1887, %v2890
    %v3185 = vsub.f32 %v1889, %v2893
    %v3186 = vsub.f32 %v1892, %v2896
    %v3187 = vsub.f32 %v1894, %v2899
    %v3188 = vsub.f32 %v1930, %v2902
    %v3189 = vsub.f32 %v1932, %v2905
    %v3190 = vsub.f32 %v1935, %v2908
    %v3191 = vsub.f32 %v1937, %v2911
    %v3192 = vsub.f32 %v1973, %v2914
    %v3193 = vsub.f32 %v1975, %v2917
    %v3194 = vsub.f32 %v1978, %v2920
    %v3195 = vsub.f32 %v1980, %v2923
    %v3196 = vsub.f32 %v2016, %v2926
    %v3197 = vsub.f32 %v2018, %v2929
    %v3198 = vsub.f32 %v2021, %v2932
    %v3199 = vsub.f32 %v2023, %v2935
    %v3200 = vsub.f32 %v2059, %v2938
    %v3201 = vsub.f32 %v2061, %v2941
    %v3202 = vsub.f32 %v2064, %v2944
    %v3203 = vsub.f32 %v2066, %v2947
    %v3204 = vsub.f32 %v2102, %v2950
    %v3205 = vsub.f32 %v2104, %v2953
    %v3206 = vsub.f32 %v2107, %v2956
    %v3207 = vsub.f32 %v2109, %v2959
    %v3208 = vsub.f32 %v2145, %v2962
    %v3209 = vsub.f32 %v2147, %v2965
    %v3210 = vsub.f32 %v2150, %v2968
    %v3211 = vsub.f32 %v2152, %v2971
    %v3212 = vsub.f32 %v2188, %v2974
    %v3213 = vsub.f32 %v2190, %v2977
    %v3214 = vsub.f32 %v2193, %v2980
    %v3215 = vsub.f32 %v2195, %v2983
    %v3216 = vsub.f32 %v2231, %v2986
    %v3217 = vsub.f32 %v2233, %v2989
    %v3218 = vsub.f32 %v2236, %v2992
    %v3219 = vsub.f32 %v2238, %v2995
    %v3220 = vsub.f32 %v2274, %v2998
    %v3221 = vsub.f32 %v2276, %v3001
    %v3222 = vsub.f32 %v2279, %v3004
    %v3223 = vsub.f32 %v2281, %v3007
    %v3224 = vsub.f32 %v2317, %v3010
    %v3225 = vsub.f32 %v2319, %v3013
    %v3226 = vsub.f32 %v2322, %v3016
    %v3227 = vsub.f32 %v2324, %v3019
    %v3228 = vsub.f32 %v2360, %v3022
    %v3229 = vsub.f32 %v2362, %v3025
    %v3230 = vsub.f32 %v2365, %v3028
    %v3231 = vsub.f32 %v2367, %v3031
    %v3232 = vsub.f32 %v2403, %v3034
    %v3233 = vsub.f32 %v2405, %v3037
    %v3234 = vsub.f32 %v2408, %v3040
    %v3235 = vsub.f32 %v2410, %v3043
    %v3236 = vsub.f32 %v2446, %v3046
    %v3237 = vsub.f32 %v2448, %v3049
    %v3238 = vsub.f32 %v2451, %v3052
    %v3239 = vsub.f32 %v2453, %v3055
    %v3240 = vsub.f32 %v2489, %v3058
    %v3241 = vsub.f32 %v2491, %v3061
    %v3242 = vsub.f32 %v2494, %v3064
    %v3243 = vsub.f32 %v2496, %v3067
    %v3244 = vsub.f32 %v2532, %v3070
    %v3245 = vsub.f32 %v2534, %v3073
    %v3246 = vsub.f32 %v2537, %v3076
    %v3247 = vsub.f32 %v2539, %v3079
    %v3248 = vsub.f32 %v2575, %v3082
    %v3249 = vsub.f32 %v2577, %v3085
    %v3250 = vsub.f32 %v2580, %v3088
    %v3251 = vsub.f32 %v2582, %v3091
    %v3252 = vsub.f32 %v2618, %v3094
    %v3253 = vsub.f32 %v2620, %v3097
    %v3254 = vsub.f32 %v2623, %v3100
    %v3255 = vsub.f32 %v2625, %v3103
    %v3256 = vsub.f32 %v2661, %v3106
    %v3257 = vsub.f32 %v2663, %v3109
    %v3258 = vsub.f32 %v2666, %v3112
    %v3259 = vsub.f32 %v2668, %v3115
    %v3260 = vsub.f32 %v2704, %v3118
    %v3261 = vsub.f32 %v2706, %v3121
    %v3262 = vsub.f32 %v2709, %v3124
    %v3263 = vsub.f32 %v2711, %v3127
    %v3264 = vsub.f32 %v2747, %v3130
    %v3265 = vsub.f32 %v2749, %v3133
    %v3266 = vsub.f32 %v2752, %v3136
    %v3267 = vsub.f32 %v2754, %v3139
    %v3268 = vmul.f32 %v3140, 1.442695
    %v3269 = vpow.pop %v3268
    %v3270 = vmul.f32 %v3141, 1.442695
    %v3271 = vpow.pop %v3270
    %v3272 = vmul.f32 %v3142, 1.442695
    %v3273 = vpow.pop %v3272
    %v3274 = vmul.f32 %v3143, 1.442695
    %v3275 = vpow.pop %v3274
    %v3276 = vmul.f32 %v3144, 1.442695
    %v3277 = vpow.pop %v3276
    %v3278 = vmul.f32 %v3145, 1.442695
    %v3279 = vpow.pop %v3278
    %v3280 = vmul.f32 %v3146, 1.442695
    %v3281 = vpow.pop %v3280
    %v3282 = vmul.f32 %v3147, 1.442695
    %v3283 = vpow.pop %v3282
    %v3284 = vmul.f32 %v3148, 1.442695
    %v3285 = vpow.pop %v3284
    %v3286 = vmul.f32 %v3149, 1.442695
    %v3287 = vpow.pop %v3286
    %v3288 = vmul.f32 %v3150, 1.442695
    %v3289 = vpow.pop %v3288
    %v3290 = vmul.f32 %v3151, 1.442695
    %v3291 = vpow.pop %v3290
    %v3292 = vmul.f32 %v3152, 1.442695
    %v3293 = vpow.pop %v3292
    %v3294 = vmul.f32 %v3153, 1.442695
    %v3295 = vpow.pop %v3294
    %v3296 = vmul.f32 %v3154, 1.442695
    %v3297 = vpow.pop %v3296
    %v3298 = vmul.f32 %v3155, 1.442695
    %v3299 = vpow.pop %v3298
    %v3300 = vmul.f32 %v3156, 1.442695
    %v3301 = vpow.pop %v3300
    %v3302 = vmul.f32 %v3157, 1.442695
    %v3303 = vpow.pop %v3302
    %v3304 = vmul.f32 %v3158, 1.442695
    %v3305 = vpow.pop %v3304
    %v3306 = vmul.f32 %v3159, 1.442695
    %v3307 = vpow.pop %v3306
    %v3308 = vmul.f32 %v3160, 1.442695
    %v3309 = vpow.pop %v3308
    %v3310 = vmul.f32 %v3161, 1.442695
    %v3311 = vpow.pop %v3310
    %v3312 = vmul.f32 %v3162, 1.442695
    %v3313 = vpow.pop %v3312
    %v3314 = vmul.f32 %v3163, 1.442695
    %v3315 = vpow.pop %v3314
    %v3316 = vmul.f32 %v3164, 1.442695
    %v3317 = vpow.pop %v3316
    %v3318 = vmul.f32 %v3165, 1.442695
    %v3319 = vpow.pop %v3318
    %v3320 = vmul.f32 %v3166, 1.442695
    %v3321 = vpow.pop %v3320
    %v3322 = vmul.f32 %v3167, 1.442695
    %v3323 = vpow.pop %v3322
    %v3324 = vmul.f32 %v3168, 1.442695
    %v3325 = vpow.pop %v3324
    %v3326 = vmul.f32 %v3169, 1.442695
    %v3327 = vpow.pop %v3326
    %v3328 = vmul.f32 %v3170, 1.442695
    %v3329 = vpow.pop %v3328
    %v3330 = vmul.f32 %v3171, 1.442695
    %v3331 = vpow.pop %v3330
    %v3332 = vmul.f32 %v3172, 1.442695
    %v3333 = vpow.pop %v3332
    %v3334 = vmul.f32 %v3173, 1.442695
    %v3335 = vpow.pop %v3334
    %v3336 = vmul.f32 %v3174, 1.442695
    %v3337 = vpow.pop %v3336
    %v3338 = vmul.f32 %v3175, 1.442695
    %v3339 = vpow.pop %v3338
    %v3340 = vmul.f32 %v3176, 1.442695
    %v3341 = vpow.pop %v3340
    %v3342 = vmul.f32 %v3177, 1.442695
    %v3343 = vpow.pop %v3342
    %v3344 = vmul.f32 %v3178, 1.442695
    %v3345 = vpow.pop %v3344
    %v3346 = vmul.f32 %v3179, 1.442695
    %v3347 = vpow.pop %v3346
    %v3348 = vmul.f32 %v3180, 1.442695
    %v3349 = vpow.pop %v3348
    %v3350 = vmul.f32 %v3181, 1.442695
    %v3351 = vpow.pop %v3350
    %v3352 = vmul.f32 %v3182, 1.442695
    %v3353 = vpow.pop %v3352
    %v3354 = vmul.f32 %v3183, 1.442695
    %v3355 = vpow.pop %v3354
    %v3356 = vmul.f32 %v3184, 1.442695
    %v3357 = vpow.pop %v3356
    %v3358 = vmul.f32 %v3185, 1.442695
    %v3359 = vpow.pop %v3358
    %v3360 = vmul.f32 %v3186, 1.442695
    %v3361 = vpow.pop %v3360
    %v3362 = vmul.f32 %v3187, 1.442695
    %v3363 = vpow.pop %v3362
    %v3364 = vmul.f32 %v3188, 1.442695
    %v3365 = vpow.pop %v3364
    %v3366 = vmul.f32 %v3189, 1.442695
    %v3367 = vpow.pop %v3366
    %v3368 = vmul.f32 %v3190, 1.442695
    %v3369 = vpow.pop %v3368
    %v3370 = vmul.f32 %v3191, 1.442695
    %v3371 = vpow.pop %v3370
    %v3372 = vmul.f32 %v3192, 1.442695
    %v3373 = vpow.pop %v3372
    %v3374 = vmul.f32 %v3193, 1.442695
    %v3375 = vpow.pop %v3374
    %v3376 = vmul.f32 %v3194, 1.442695
    %v3377 = vpow.pop %v3376
    %v3378 = vmul.f32 %v3195, 1.442695
    %v3379 = vpow.pop %v3378
    %v3380 = vmul.f32 %v3196, 1.442695
    %v3381 = vpow.pop %v3380
    %v3382 = vmul.f32 %v3197, 1.442695
    %v3383 = vpow.pop %v3382
    %v3384 = vmul.f32 %v3198, 1.442695
    %v3385 = vpow.pop %v3384
    %v3386 = vmul.f32 %v3199, 1.442695
    %v3387 = vpow.pop %v3386
    %v3388 = vmul.f32 %v3200, 1.442695
    %v3389 = vpow.pop %v3388
    %v3390 = vmul.f32 %v3201, 1.442695
    %v3391 = vpow.pop %v3390
    %v3392 = vmul.f32 %v3202, 1.442695
    %v3393 = vpow.pop %v3392
    %v3394 = vmul.f32 %v3203, 1.442695
    %v3395 = vpow.pop %v3394
    %v3396 = vmul.f32 %v3204, 1.442695
    %v3397 = vpow.pop %v3396
    %v3398 = vmul.f32 %v3205, 1.442695
    %v3399 = vpow.pop %v3398
    %v3400 = vmul.f32 %v3206, 1.442695
    %v3401 = vpow.pop %v3400
    %v3402 = vmul.f32 %v3207, 1.442695
    %v3403 = vpow.pop %v3402
    %v3404 = vmul.f32 %v3208, 1.442695
    %v3405 = vpow.pop %v3404
    %v3406 = vmul.f32 %v3209, 1.442695
    %v3407 = vpow.pop %v3406
    %v3408 = vmul.f32 %v3210, 1.442695
    %v3409 = vpow.pop %v3408
    %v3410 = vmul.f32 %v3211, 1.442695
    %v3411 = vpow.pop %v3410
    %v3412 = vmul.f32 %v3212, 1.442695
    %v3413 = vpow.pop %v3412
    %v3414 = vmul.f32 %v3213, 1.442695
    %v3415 = vpow.pop %v3414
    %v3416 = vmul.f32 %v3214, 1.442695
    %v3417 = vpow.pop %v3416
    %v3418 = vmul.f32 %v3215, 1.442695
    %v3419 = vpow.pop %v3418
    %v3420 = vmul.f32 %v3216, 1.442695
    %v3421 = vpow.pop %v3420
    %v3422 = vmul.f32 %v3217, 1.442695
    %v3423 = vpow.pop %v3422
    %v3424 = vmul.f32 %v3218, 1.442695
    %v3425 = vpow.pop %v3424
    %v3426 = vmul.f32 %v3219, 1.442695
    %v3427 = vpow.pop %v3426
    %v3428 = vmul.f32 %v3220, 1.442695
    %v3429 = vpow.pop %v3428
    %v3430 = vmul.f32 %v3221, 1.442695
    %v3431 = vpow.pop %v3430
    %v3432 = vmul.f32 %v3222, 1.442695
    %v3433 = vpow.pop %v3432
    %v3434 = vmul.f32 %v3223, 1.442695
    %v3435 = vpow.pop %v3434
    %v3436 = vmul.f32 %v3224, 1.442695
    %v3437 = vpow.pop %v3436
    %v3438 = vmul.f32 %v3225, 1.442695
    %v3439 = vpow.pop %v3438
    %v3440 = vmul.f32 %v3226, 1.442695
    %v3441 = vpow.pop %v3440
    %v3442 = vmul.f32 %v3227, 1.442695
    %v3443 = vpow.pop %v3442
    %v3444 = vmul.f32 %v3228, 1.442695
    %v3445 = vpow.pop %v3444
    %v3446 = vmul.f32 %v3229, 1.442695
    %v3447 = vpow.pop %v3446
    %v3448 = vmul.f32 %v3230, 1.442695
    %v3449 = vpow.pop %v3448
    %v3450 = vmul.f32 %v3231, 1.442695
    %v3451 = vpow.pop %v3450
    %v3452 = vmul.f32 %v3232, 1.442695
    %v3453 = vpow.pop %v3452
    %v3454 = vmul.f32 %v3233, 1.442695
    %v3455 = vpow.pop %v3454
    %v3456 = vmul.f32 %v3234, 1.442695
    %v3457 = vpow.pop %v3456
    %v3458 = vmul.f32 %v3235, 1.442695
    %v3459 = vpow.pop %v3458
    %v3460 = vmul.f32 %v3236, 1.442695
    %v3461 = vpow.pop %v3460
    %v3462 = vmul.f32 %v3237, 1.442695
    %v3463 = vpow.pop %v3462
    %v3464 = vmul.f32 %v3238, 1.442695
    %v3465 = vpow.pop %v3464
    %v3466 = vmul.f32 %v3239, 1.442695
    %v3467 = vpow.pop %v3466
    %v3468 = vmul.f32 %v3240, 1.442695
    %v3469 = vpow.pop %v3468
    %v3470 = vmul.f32 %v3241, 1.442695
    %v3471 = vpow.pop %v3470
    %v3472 = vmul.f32 %v3242, 1.442695
    %v3473 = vpow.pop %v3472
    %v3474 = vmul.f32 %v3243, 1.442695
    %v3475 = vpow.pop %v3474
    %v3476 = vmul.f32 %v3244, 1.442695
    %v3477 = vpow.pop %v3476
    %v3478 = vmul.f32 %v3245, 1.442695
    %v3479 = vpow.pop %v3478
    %v3480 = vmul.f32 %v3246, 1.442695
    %v3481 = vpow.pop %v3480
    %v3482 = vmul.f32 %v3247, 1.442695
    %v3483 = vpow.pop %v3482
    %v3484 = vmul.f32 %v3248, 1.442695
    %v3485 = vpow.pop %v3484
    %v3486 = vmul.f32 %v3249, 1.442695
    %v3487 = vpow.pop %v3486
    %v3488 = vmul.f32 %v3250, 1.442695
    %v3489 = vpow.pop %v3488
    %v3490 = vmul.f32 %v3251, 1.442695
    %v3491 = vpow.pop %v3490
    %v3492 = vmul.f32 %v3252, 1.442695
    %v3493 = vpow.pop %v3492
    %v3494 = vmul.f32 %v3253, 1.442695
    %v3495 = vpow.pop %v3494
    %v3496 = vmul.f32 %v3254, 1.442695
    %v3497 = vpow.pop %v3496
    %v3498 = vmul.f32 %v3255, 1.442695
    %v3499 = vpow.pop %v3498
    %v3500 = vmul.f32 %v3256, 1.442695
    %v3501 = vpow.pop %v3500
    %v3502 = vmul.f32 %v3257, 1.442695
    %v3503 = vpow.pop %v3502
    %v3504 = vmul.f32 %v3258, 1.442695
    %v3505 = vpow.pop %v3504
    %v3506 = vmul.f32 %v3259, 1.442695
    %v3507 = vpow.pop %v3506
    %v3508 = vmul.f32 %v3260, 1.442695
    %v3509 = vpow.pop %v3508
    %v3510 = vmul.f32 %v3261, 1.442695
    %v3511 = vpow.pop %v3510
    %v3512 = vmul.f32 %v3262, 1.442695
    %v3513 = vpow.pop %v3512
    %v3514 = vmul.f32 %v3263, 1.442695
    %v3515 = vpow.pop %v3514
    %v3516 = vmul.f32 %v3264, 1.442695
    %v3517 = vpow.pop %v3516
    %v3518 = vmul.f32 %v3265, 1.442695
    %v3519 = vpow.pop %v3518
    %v3520 = vmul.f32 %v3266, 1.442695
    %v3521 = vpow.pop %v3520
    %v3522 = vmul.f32 %v3267, 1.442695
    %v3523 = vpow.pop %v3522
    %v3524 = vsel %vm231, %v3269, 0.0
    %3525 = vadd.xlane.f32.xlu0 %v3524
    %v3526 = vpop.xlane.xlu0 %3525
    %v3527 = vsel %vm231, %v3271, 0.0
    %3528 = vadd.xlane.f32.xlu0 %v3527
    %v3529 = vpop.xlane.xlu0 %3528
    %v3530 = vsel %vm231, %v3273, 0.0
    %3531 = vadd.xlane.f32.xlu0 %v3530
    %v3532 = vpop.xlane.xlu0 %3531
    %v3533 = vsel %vm231, %v3275, 0.0
    %3534 = vadd.xlane.f32.xlu0 %v3533
    %v3535 = vpop.xlane.xlu0 %3534
    %v3536 = vsel %vm231, %v3277, 0.0
    %3537 = vadd.xlane.f32.xlu0 %v3536
    %v3538 = vpop.xlane.xlu0 %3537
    %v3539 = vsel %vm231, %v3279, 0.0
    %3540 = vadd.xlane.f32.xlu0 %v3539
    %v3541 = vpop.xlane.xlu0 %3540
    %v3542 = vsel %vm231, %v3281, 0.0
    %3543 = vadd.xlane.f32.xlu0 %v3542
    %v3544 = vpop.xlane.xlu0 %3543
    %v3545 = vsel %vm231, %v3283, 0.0
    %3546 = vadd.xlane.f32.xlu0 %v3545
    %v3547 = vpop.xlane.xlu0 %3546
    %v3548 = vsel %vm231, %v3285, 0.0
    %3549 = vadd.xlane.f32.xlu0 %v3548
    %v3550 = vpop.xlane.xlu0 %3549
    %v3551 = vsel %vm231, %v3287, 0.0
    %3552 = vadd.xlane.f32.xlu0 %v3551
    %v3553 = vpop.xlane.xlu0 %3552
    %v3554 = vsel %vm231, %v3289, 0.0
    %3555 = vadd.xlane.f32.xlu0 %v3554
    %v3556 = vpop.xlane.xlu0 %3555
    %v3557 = vsel %vm231, %v3291, 0.0
    %3558 = vadd.xlane.f32.xlu0 %v3557
    %v3559 = vpop.xlane.xlu0 %3558
    %v3560 = vsel %vm231, %v3293, 0.0
    %3561 = vadd.xlane.f32.xlu0 %v3560
    %v3562 = vpop.xlane.xlu0 %3561
    %v3563 = vsel %vm231, %v3295, 0.0
    %3564 = vadd.xlane.f32.xlu0 %v3563
    %v3565 = vpop.xlane.xlu0 %3564
    %v3566 = vsel %vm231, %v3297, 0.0
    %3567 = vadd.xlane.f32.xlu0 %v3566
    %v3568 = vpop.xlane.xlu0 %3567
    %v3569 = vsel %vm231, %v3299, 0.0
    %3570 = vadd.xlane.f32.xlu0 %v3569
    %v3571 = vpop.xlane.xlu0 %3570
    %v3572 = vsel %vm231, %v3301, 0.0
    %3573 = vadd.xlane.f32.xlu0 %v3572
    %v3574 = vpop.xlane.xlu0 %3573
    %v3575 = vsel %vm231, %v3303, 0.0
    %3576 = vadd.xlane.f32.xlu0 %v3575
    %v3577 = vpop.xlane.xlu0 %3576
    %v3578 = vsel %vm231, %v3305, 0.0
    %3579 = vadd.xlane.f32.xlu0 %v3578
    %v3580 = vpop.xlane.xlu0 %3579
    %v3581 = vsel %vm231, %v3307, 0.0
    %3582 = vadd.xlane.f32.xlu0 %v3581
    %v3583 = vpop.xlane.xlu0 %3582
    %v3584 = vsel %vm231, %v3309, 0.0
    %3585 = vadd.xlane.f32.xlu0 %v3584
    %v3586 = vpop.xlane.xlu0 %3585
    %v3587 = vsel %vm231, %v3311, 0.0
    %3588 = vadd.xlane.f32.xlu0 %v3587
    %v3589 = vpop.xlane.xlu0 %3588
    %v3590 = vsel %vm231, %v3313, 0.0
    %3591 = vadd.xlane.f32.xlu0 %v3590
    %v3592 = vpop.xlane.xlu0 %3591
    %v3593 = vsel %vm231, %v3315, 0.0
    %3594 = vadd.xlane.f32.xlu0 %v3593
    %v3595 = vpop.xlane.xlu0 %3594
    %v3596 = vsel %vm231, %v3317, 0.0
    %3597 = vadd.xlane.f32.xlu0 %v3596
    %v3598 = vpop.xlane.xlu0 %3597
    %v3599 = vsel %vm231, %v3319, 0.0
    %3600 = vadd.xlane.f32.xlu0 %v3599
    %v3601 = vpop.xlane.xlu0 %3600
    %v3602 = vsel %vm231, %v3321, 0.0
    %3603 = vadd.xlane.f32.xlu0 %v3602
    %v3604 = vpop.xlane.xlu0 %3603
    %v3605 = vsel %vm231, %v3323, 0.0
    %3606 = vadd.xlane.f32.xlu0 %v3605
    %v3607 = vpop.xlane.xlu0 %3606
    %v3608 = vsel %vm231, %v3325, 0.0
    %3609 = vadd.xlane.f32.xlu0 %v3608
    %v3610 = vpop.xlane.xlu0 %3609
    %v3611 = vsel %vm231, %v3327, 0.0
    %3612 = vadd.xlane.f32.xlu0 %v3611
    %v3613 = vpop.xlane.xlu0 %3612
    %v3614 = vsel %vm231, %v3329, 0.0
    %3615 = vadd.xlane.f32.xlu0 %v3614
    %v3616 = vpop.xlane.xlu0 %3615
    %v3617 = vsel %vm231, %v3331, 0.0
    %3618 = vadd.xlane.f32.xlu0 %v3617
    %v3619 = vpop.xlane.xlu0 %3618
    %v3620 = vsel %vm231, %v3333, 0.0
    %3621 = vadd.xlane.f32.xlu0 %v3620
    %v3622 = vpop.xlane.xlu0 %3621
    %v3623 = vsel %vm231, %v3335, 0.0
    %3624 = vadd.xlane.f32.xlu0 %v3623
    %v3625 = vpop.xlane.xlu0 %3624
    %v3626 = vsel %vm231, %v3337, 0.0
    %3627 = vadd.xlane.f32.xlu0 %v3626
    %v3628 = vpop.xlane.xlu0 %3627
    %v3629 = vsel %vm231, %v3339, 0.0
    %3630 = vadd.xlane.f32.xlu0 %v3629
    %v3631 = vpop.xlane.xlu0 %3630
    %v3632 = vsel %vm231, %v3341, 0.0
    %3633 = vadd.xlane.f32.xlu0 %v3632
    %v3634 = vpop.xlane.xlu0 %3633
    %v3635 = vsel %vm231, %v3343, 0.0
    %3636 = vadd.xlane.f32.xlu0 %v3635
    %v3637 = vpop.xlane.xlu0 %3636
    %v3638 = vsel %vm231, %v3345, 0.0
    %3639 = vadd.xlane.f32.xlu0 %v3638
    %v3640 = vpop.xlane.xlu0 %3639
    %v3641 = vsel %vm231, %v3347, 0.0
    %3642 = vadd.xlane.f32.xlu0 %v3641
    %v3643 = vpop.xlane.xlu0 %3642
    %v3644 = vsel %vm231, %v3349, 0.0
    %3645 = vadd.xlane.f32.xlu0 %v3644
    %v3646 = vpop.xlane.xlu0 %3645
    %v3647 = vsel %vm231, %v3351, 0.0
    %3648 = vadd.xlane.f32.xlu0 %v3647
    %v3649 = vpop.xlane.xlu0 %3648
    %v3650 = vsel %vm231, %v3353, 0.0
    %3651 = vadd.xlane.f32.xlu0 %v3650
    %v3652 = vpop.xlane.xlu0 %3651
    %v3653 = vsel %vm231, %v3355, 0.0
    %3654 = vadd.xlane.f32.xlu0 %v3653
    %v3655 = vpop.xlane.xlu0 %3654
    %v3656 = vsel %vm231, %v3357, 0.0
    %3657 = vadd.xlane.f32.xlu0 %v3656
    %v3658 = vpop.xlane.xlu0 %3657
    %v3659 = vsel %vm231, %v3359, 0.0
    %3660 = vadd.xlane.f32.xlu0 %v3659
    %v3661 = vpop.xlane.xlu0 %3660
    %v3662 = vsel %vm231, %v3361, 0.0
    %3663 = vadd.xlane.f32.xlu0 %v3662
    %v3664 = vpop.xlane.xlu0 %3663
    %v3665 = vsel %vm231, %v3363, 0.0
    %3666 = vadd.xlane.f32.xlu0 %v3665
    %v3667 = vpop.xlane.xlu0 %3666
    %v3668 = vsel %vm231, %v3365, 0.0
    %3669 = vadd.xlane.f32.xlu0 %v3668
    %v3670 = vpop.xlane.xlu0 %3669
    %v3671 = vsel %vm231, %v3367, 0.0
    %3672 = vadd.xlane.f32.xlu0 %v3671
    %v3673 = vpop.xlane.xlu0 %3672
    %v3674 = vsel %vm231, %v3369, 0.0
    %3675 = vadd.xlane.f32.xlu0 %v3674
    %v3676 = vpop.xlane.xlu0 %3675
    %v3677 = vsel %vm231, %v3371, 0.0
    %3678 = vadd.xlane.f32.xlu0 %v3677
    %v3679 = vpop.xlane.xlu0 %3678
    %v3680 = vsel %vm231, %v3373, 0.0
    %3681 = vadd.xlane.f32.xlu0 %v3680
    %v3682 = vpop.xlane.xlu0 %3681
    %v3683 = vsel %vm231, %v3375, 0.0
    %3684 = vadd.xlane.f32.xlu0 %v3683
    %v3685 = vpop.xlane.xlu0 %3684
    %v3686 = vsel %vm231, %v3377, 0.0
    %3687 = vadd.xlane.f32.xlu0 %v3686
    %v3688 = vpop.xlane.xlu0 %3687
    %v3689 = vsel %vm231, %v3379, 0.0
    %3690 = vadd.xlane.f32.xlu0 %v3689
    %v3691 = vpop.xlane.xlu0 %3690
    %v3692 = vsel %vm231, %v3381, 0.0
    %3693 = vadd.xlane.f32.xlu0 %v3692
    %v3694 = vpop.xlane.xlu0 %3693
    %v3695 = vsel %vm231, %v3383, 0.0
    %3696 = vadd.xlane.f32.xlu0 %v3695
    %v3697 = vpop.xlane.xlu0 %3696
    %v3698 = vsel %vm231, %v3385, 0.0
    %3699 = vadd.xlane.f32.xlu0 %v3698
    %v3700 = vpop.xlane.xlu0 %3699
    %v3701 = vsel %vm231, %v3387, 0.0
    %3702 = vadd.xlane.f32.xlu0 %v3701
    %v3703 = vpop.xlane.xlu0 %3702
    %v3704 = vsel %vm231, %v3389, 0.0
    %3705 = vadd.xlane.f32.xlu0 %v3704
    %v3706 = vpop.xlane.xlu0 %3705
    %v3707 = vsel %vm231, %v3391, 0.0
    %3708 = vadd.xlane.f32.xlu0 %v3707
    %v3709 = vpop.xlane.xlu0 %3708
    %v3710 = vsel %vm231, %v3393, 0.0
    %3711 = vadd.xlane.f32.xlu0 %v3710
    %v3712 = vpop.xlane.xlu0 %3711
    %v3713 = vsel %vm231, %v3395, 0.0
    %3714 = vadd.xlane.f32.xlu0 %v3713
    %v3715 = vpop.xlane.xlu0 %3714
    %v3716 = vsel %vm231, %v3397, 0.0
    %3717 = vadd.xlane.f32.xlu0 %v3716
    %v3718 = vpop.xlane.xlu0 %3717
    %v3719 = vsel %vm231, %v3399, 0.0
    %3720 = vadd.xlane.f32.xlu0 %v3719
    %v3721 = vpop.xlane.xlu0 %3720
    %v3722 = vsel %vm231, %v3401, 0.0
    %3723 = vadd.xlane.f32.xlu0 %v3722
    %v3724 = vpop.xlane.xlu0 %3723
    %v3725 = vsel %vm231, %v3403, 0.0
    %3726 = vadd.xlane.f32.xlu0 %v3725
    %v3727 = vpop.xlane.xlu0 %3726
    %v3728 = vsel %vm231, %v3405, 0.0
    %3729 = vadd.xlane.f32.xlu0 %v3728
    %v3730 = vpop.xlane.xlu0 %3729
    %v3731 = vsel %vm231, %v3407, 0.0
    %3732 = vadd.xlane.f32.xlu0 %v3731
    %v3733 = vpop.xlane.xlu0 %3732
    %v3734 = vsel %vm231, %v3409, 0.0
    %3735 = vadd.xlane.f32.xlu0 %v3734
    %v3736 = vpop.xlane.xlu0 %3735
    %v3737 = vsel %vm231, %v3411, 0.0
    %3738 = vadd.xlane.f32.xlu0 %v3737
    %v3739 = vpop.xlane.xlu0 %3738
    %v3740 = vsel %vm231, %v3413, 0.0
    %3741 = vadd.xlane.f32.xlu0 %v3740
    %v3742 = vpop.xlane.xlu0 %3741
    %v3743 = vsel %vm231, %v3415, 0.0
    %3744 = vadd.xlane.f32.xlu0 %v3743
    %v3745 = vpop.xlane.xlu0 %3744
    %v3746 = vsel %vm231, %v3417, 0.0
    %3747 = vadd.xlane.f32.xlu0 %v3746
    %v3748 = vpop.xlane.xlu0 %3747
    %v3749 = vsel %vm231, %v3419, 0.0
    %3750 = vadd.xlane.f32.xlu0 %v3749
    %v3751 = vpop.xlane.xlu0 %3750
    %v3752 = vsel %vm231, %v3421, 0.0
    %3753 = vadd.xlane.f32.xlu0 %v3752
    %v3754 = vpop.xlane.xlu0 %3753
    %v3755 = vsel %vm231, %v3423, 0.0
    %3756 = vadd.xlane.f32.xlu0 %v3755
    %v3757 = vpop.xlane.xlu0 %3756
    %v3758 = vsel %vm231, %v3425, 0.0
    %3759 = vadd.xlane.f32.xlu0 %v3758
    %v3760 = vpop.xlane.xlu0 %3759
    %v3761 = vsel %vm231, %v3427, 0.0
    %3762 = vadd.xlane.f32.xlu0 %v3761
    %v3763 = vpop.xlane.xlu0 %3762
    %v3764 = vsel %vm231, %v3429, 0.0
    %3765 = vadd.xlane.f32.xlu0 %v3764
    %v3766 = vpop.xlane.xlu0 %3765
    %v3767 = vsel %vm231, %v3431, 0.0
    %3768 = vadd.xlane.f32.xlu0 %v3767
    %v3769 = vpop.xlane.xlu0 %3768
    %v3770 = vsel %vm231, %v3433, 0.0
    %3771 = vadd.xlane.f32.xlu0 %v3770
    %v3772 = vpop.xlane.xlu0 %3771
    %v3773 = vsel %vm231, %v3435, 0.0
    %3774 = vadd.xlane.f32.xlu0 %v3773
    %v3775 = vpop.xlane.xlu0 %3774
    %v3776 = vsel %vm231, %v3437, 0.0
    %3777 = vadd.xlane.f32.xlu0 %v3776
    %v3778 = vpop.xlane.xlu0 %3777
    %v3779 = vsel %vm231, %v3439, 0.0
    %3780 = vadd.xlane.f32.xlu0 %v3779
    %v3781 = vpop.xlane.xlu0 %3780
    %v3782 = vsel %vm231, %v3441, 0.0
    %3783 = vadd.xlane.f32.xlu0 %v3782
    %v3784 = vpop.xlane.xlu0 %3783
    %v3785 = vsel %vm231, %v3443, 0.0
    %3786 = vadd.xlane.f32.xlu0 %v3785
    %v3787 = vpop.xlane.xlu0 %3786
    %v3788 = vsel %vm231, %v3445, 0.0
    %3789 = vadd.xlane.f32.xlu0 %v3788
    %v3790 = vpop.xlane.xlu0 %3789
    %v3791 = vsel %vm231, %v3447, 0.0
    %3792 = vadd.xlane.f32.xlu0 %v3791
    %v3793 = vpop.xlane.xlu0 %3792
    %v3794 = vsel %vm231, %v3449, 0.0
    %3795 = vadd.xlane.f32.xlu0 %v3794
    %v3796 = vpop.xlane.xlu0 %3795
    %v3797 = vsel %vm231, %v3451, 0.0
    %3798 = vadd.xlane.f32.xlu0 %v3797
    %v3799 = vpop.xlane.xlu0 %3798
    %v3800 = vsel %vm231, %v3453, 0.0
    %3801 = vadd.xlane.f32.xlu0 %v3800
    %v3802 = vpop.xlane.xlu0 %3801
    %v3803 = vsel %vm231, %v3455, 0.0
    %3804 = vadd.xlane.f32.xlu0 %v3803
    %v3805 = vpop.xlane.xlu0 %3804
    %v3806 = vsel %vm231, %v3457, 0.0
    %3807 = vadd.xlane.f32.xlu0 %v3806
    %v3808 = vpop.xlane.xlu0 %3807
    %v3809 = vsel %vm231, %v3459, 0.0
    %3810 = vadd.xlane.f32.xlu0 %v3809
    %v3811 = vpop.xlane.xlu0 %3810
    %v3812 = vsel %vm231, %v3461, 0.0
    %3813 = vadd.xlane.f32.xlu0 %v3812
    %v3814 = vpop.xlane.xlu0 %3813
    %v3815 = vsel %vm231, %v3463, 0.0
    %3816 = vadd.xlane.f32.xlu0 %v3815
    %v3817 = vpop.xlane.xlu0 %3816
    %v3818 = vsel %vm231, %v3465, 0.0
    %3819 = vadd.xlane.f32.xlu0 %v3818
    %v3820 = vpop.xlane.xlu0 %3819
    %v3821 = vsel %vm231, %v3467, 0.0
    %3822 = vadd.xlane.f32.xlu0 %v3821
    %v3823 = vpop.xlane.xlu0 %3822
    %v3824 = vsel %vm231, %v3469, 0.0
    %3825 = vadd.xlane.f32.xlu0 %v3824
    %v3826 = vpop.xlane.xlu0 %3825
    %v3827 = vsel %vm231, %v3471, 0.0
    %3828 = vadd.xlane.f32.xlu0 %v3827
    %v3829 = vpop.xlane.xlu0 %3828
    %v3830 = vsel %vm231, %v3473, 0.0
    %3831 = vadd.xlane.f32.xlu0 %v3830
    %v3832 = vpop.xlane.xlu0 %3831
    %v3833 = vsel %vm231, %v3475, 0.0
    %3834 = vadd.xlane.f32.xlu0 %v3833
    %v3835 = vpop.xlane.xlu0 %3834
    %v3836 = vsel %vm231, %v3477, 0.0
    %3837 = vadd.xlane.f32.xlu0 %v3836
    %v3838 = vpop.xlane.xlu0 %3837
    %v3839 = vsel %vm231, %v3479, 0.0
    %3840 = vadd.xlane.f32.xlu0 %v3839
    %v3841 = vpop.xlane.xlu0 %3840
    %v3842 = vsel %vm231, %v3481, 0.0
    %3843 = vadd.xlane.f32.xlu0 %v3842
    %v3844 = vpop.xlane.xlu0 %3843
    %v3845 = vsel %vm231, %v3483, 0.0
    %3846 = vadd.xlane.f32.xlu0 %v3845
    %v3847 = vpop.xlane.xlu0 %3846
    %v3848 = vsel %vm231, %v3485, 0.0
    %3849 = vadd.xlane.f32.xlu0 %v3848
    %v3850 = vpop.xlane.xlu0 %3849
    %v3851 = vsel %vm231, %v3487, 0.0
    %3852 = vadd.xlane.f32.xlu0 %v3851
    %v3853 = vpop.xlane.xlu0 %3852
    %v3854 = vsel %vm231, %v3489, 0.0
    %3855 = vadd.xlane.f32.xlu0 %v3854
    %v3856 = vpop.xlane.xlu0 %3855
    %v3857 = vsel %vm231, %v3491, 0.0
    %3858 = vadd.xlane.f32.xlu0 %v3857
    %v3859 = vpop.xlane.xlu0 %3858
    %v3860 = vsel %vm231, %v3493, 0.0
    %3861 = vadd.xlane.f32.xlu0 %v3860
    %v3862 = vpop.xlane.xlu0 %3861
    %v3863 = vsel %vm231, %v3495, 0.0
    %3864 = vadd.xlane.f32.xlu0 %v3863
    %v3865 = vpop.xlane.xlu0 %3864
    %v3866 = vsel %vm231, %v3497, 0.0
    %3867 = vadd.xlane.f32.xlu0 %v3866
    %v3868 = vpop.xlane.xlu0 %3867
    %v3869 = vsel %vm231, %v3499, 0.0
    %3870 = vadd.xlane.f32.xlu0 %v3869
    %v3871 = vpop.xlane.xlu0 %3870
    %v3872 = vsel %vm231, %v3501, 0.0
    %3873 = vadd.xlane.f32.xlu0 %v3872
    %v3874 = vpop.xlane.xlu0 %3873
    %v3875 = vsel %vm231, %v3503, 0.0
    %3876 = vadd.xlane.f32.xlu0 %v3875
    %v3877 = vpop.xlane.xlu0 %3876
    %v3878 = vsel %vm231, %v3505, 0.0
    %3879 = vadd.xlane.f32.xlu0 %v3878
    %v3880 = vpop.xlane.xlu0 %3879
    %v3881 = vsel %vm231, %v3507, 0.0
    %3882 = vadd.xlane.f32.xlu0 %v3881
    %v3883 = vpop.xlane.xlu0 %3882
    %v3884 = vsel %vm231, %v3509, 0.0
    %3885 = vadd.xlane.f32.xlu0 %v3884
    %v3886 = vpop.xlane.xlu0 %3885
    %v3887 = vsel %vm231, %v3511, 0.0
    %3888 = vadd.xlane.f32.xlu0 %v3887
    %v3889 = vpop.xlane.xlu0 %3888
    %v3890 = vsel %vm231, %v3513, 0.0
    %3891 = vadd.xlane.f32.xlu0 %v3890
    %v3892 = vpop.xlane.xlu0 %3891
    %v3893 = vsel %vm231, %v3515, 0.0
    %3894 = vadd.xlane.f32.xlu0 %v3893
    %v3895 = vpop.xlane.xlu0 %3894
    %v3896 = vsel %vm231, %v3517, 0.0
    %3897 = vadd.xlane.f32.xlu0 %v3896
    %v3898 = vpop.xlane.xlu0 %3897
    %v3899 = vsel %vm231, %v3519, 0.0
    %3900 = vadd.xlane.f32.xlu0 %v3899
    %v3901 = vpop.xlane.xlu0 %3900
    %v3902 = vsel %vm231, %v3521, 0.0
    %3903 = vadd.xlane.f32.xlu0 %v3902
    %v3904 = vpop.xlane.xlu0 %3903
    %v3905 = vsel %vm231, %v3523, 0.0
    %3906 = vadd.xlane.f32.xlu0 %v3905
    %v3907 = vpop.xlane.xlu0 %3906
    %v3908 = vrcp.pop %v3526
    %v3909 = vrcp.pop %v3529
    %v3910 = vrcp.pop %v3532
    %v3911 = vrcp.pop %v3535
    %v3912 = vrcp.pop %v3538
    %v3913 = vrcp.pop %v3541
    %v3914 = vrcp.pop %v3544
    %v3915 = vrcp.pop %v3547
    %v3916 = vrcp.pop %v3550
    %v3917 = vrcp.pop %v3553
    %v3918 = vrcp.pop %v3556
    %v3919 = vrcp.pop %v3559
    %v3920 = vrcp.pop %v3562
    %v3921 = vrcp.pop %v3565
    %v3922 = vrcp.pop %v3568
    %v3923 = vrcp.pop %v3571
    %v3924 = vrcp.pop %v3574
    %v3925 = vrcp.pop %v3577
    %v3926 = vrcp.pop %v3580
    %v3927 = vrcp.pop %v3583
    %v3928 = vrcp.pop %v3586
    %v3929 = vrcp.pop %v3589
    %v3930 = vrcp.pop %v3592
    %v3931 = vrcp.pop %v3595
    %v3932 = vrcp.pop %v3598
    %v3933 = vrcp.pop %v3601
    %v3934 = vrcp.pop %v3604
    %v3935 = vrcp.pop %v3607
    %v3936 = vrcp.pop %v3610
    %v3937 = vrcp.pop %v3613
    %v3938 = vrcp.pop %v3616
    %v3939 = vrcp.pop %v3619
    %v3940 = vrcp.pop %v3622
    %v3941 = vrcp.pop %v3625
    %v3942 = vrcp.pop %v3628
    %v3943 = vrcp.pop %v3631
    %v3944 = vrcp.pop %v3634
    %v3945 = vrcp.pop %v3637
    %v3946 = vrcp.pop %v3640
    %v3947 = vrcp.pop %v3643
    %v3948 = vrcp.pop %v3646
    %v3949 = vrcp.pop %v3649
    %v3950 = vrcp.pop %v3652
    %v3951 = vrcp.pop %v3655
    %v3952 = vrcp.pop %v3658
    %v3953 = vrcp.pop %v3661
    %v3954 = vrcp.pop %v3664
    %v3955 = vrcp.pop %v3667
    %v3956 = vrcp.pop %v3670
    %v3957 = vrcp.pop %v3673
    %v3958 = vrcp.pop %v3676
    %v3959 = vrcp.pop %v3679
    %v3960 = vrcp.pop %v3682
    %v3961 = vrcp.pop %v3685
    %v3962 = vrcp.pop %v3688
    %v3963 = vrcp.pop %v3691
    %v3964 = vrcp.pop %v3694
    %v3965 = vrcp.pop %v3697
    %v3966 = vrcp.pop %v3700
    %v3967 = vrcp.pop %v3703
    %v3968 = vrcp.pop %v3706
    %v3969 = vrcp.pop %v3709
    %v3970 = vrcp.pop %v3712
    %v3971 = vrcp.pop %v3715
    %v3972 = vrcp.pop %v3718
    %v3973 = vrcp.pop %v3721
    %v3974 = vrcp.pop %v3724
    %v3975 = vrcp.pop %v3727
    %v3976 = vrcp.pop %v3730
    %v3977 = vrcp.pop %v3733
    %v3978 = vrcp.pop %v3736
    %v3979 = vrcp.pop %v3739
    %v3980 = vrcp.pop %v3742
    %v3981 = vrcp.pop %v3745
    %v3982 = vrcp.pop %v3748
    %v3983 = vrcp.pop %v3751
    %v3984 = vrcp.pop %v3754
    %v3985 = vrcp.pop %v3757
    %v3986 = vrcp.pop %v3760
    %v3987 = vrcp.pop %v3763
    %v3988 = vrcp.pop %v3766
    %v3989 = vrcp.pop %v3769
    %v3990 = vrcp.pop %v3772
    %v3991 = vrcp.pop %v3775
    %v3992 = vrcp.pop %v3778
    %v3993 = vrcp.pop %v3781
    %v3994 = vrcp.pop %v3784
    %v3995 = vrcp.pop %v3787
    %v3996 = vrcp.pop %v3790
    %v3997 = vrcp.pop %v3793
    %v3998 = vrcp.pop %v3796
    %v3999 = vrcp.pop %v3799
    %v4000 = vrcp.pop %v3802
    %v4001 = vrcp.pop %v3805
    %v4002 = vrcp.pop %v3808
    %v4003 = vrcp.pop %v3811
    %v4004 = vrcp.pop %v3814
    %v4005 = vrcp.pop %v3817
    %v4006 = vrcp.pop %v3820
    %v4007 = vrcp.pop %v3823
    %v4008 = vrcp.pop %v3826
    %v4009 = vrcp.pop %v3829
    %v4010 = vrcp.pop %v3832
    %v4011 = vrcp.pop %v3835
    %v4012 = vrcp.pop %v3838
    %v4013 = vrcp.pop %v3841
    %v4014 = vrcp.pop %v3844
    %v4015 = vrcp.pop %v3847
    %v4016 = vrcp.pop %v3850
    %v4017 = vrcp.pop %v3853
    %v4018 = vrcp.pop %v3856
    %v4019 = vrcp.pop %v3859
    %v4020 = vrcp.pop %v3862
    %v4021 = vrcp.pop %v3865
    %v4022 = vrcp.pop %v3868
    %v4023 = vrcp.pop %v3871
    %v4024 = vrcp.pop %v3874
    %v4025 = vrcp.pop %v3877
    %v4026 = vrcp.pop %v3880
    %v4027 = vrcp.pop %v3883
    %v4028 = vrcp.pop %v3886
    %v4029 = vrcp.pop %v3889
    %v4030 = vrcp.pop %v3892
    %v4031 = vrcp.pop %v3895
    %v4032 = vrcp.pop %v3898
    %v4033 = vrcp.pop %v3901
    %v4034 = vrcp.pop %v3904
    %v4035 = vrcp.pop %v3907
    %v4036 = vmul.f32 %v3269, %v3908
    %v4037 = vmul.f32 %v3271, %v3909
    %v4038 = vmul.f32 %v3273, %v3910
    %v4039 = vmul.f32 %v3275, %v3911
    %v4040 = vmul.f32 %v3277, %v3912
    %v4041 = vmul.f32 %v3279, %v3913
    %v4042 = vmul.f32 %v3281, %v3914
    %v4043 = vmul.f32 %v3283, %v3915
    %v4044 = vmul.f32 %v3285, %v3916
    %v4045 = vmul.f32 %v3287, %v3917
    %v4046 = vmul.f32 %v3289, %v3918
    %v4047 = vmul.f32 %v3291, %v3919
    %v4048 = vmul.f32 %v3293, %v3920
    %v4049 = vmul.f32 %v3295, %v3921
    %v4050 = vmul.f32 %v3297, %v3922
    %v4051 = vmul.f32 %v3299, %v3923
    %v4052 = vmul.f32 %v3301, %v3924
    %v4053 = vmul.f32 %v3303, %v3925
    %v4054 = vmul.f32 %v3305, %v3926
    %v4055 = vmul.f32 %v3307, %v3927
    %v4056 = vmul.f32 %v3309, %v3928
    %v4057 = vmul.f32 %v3311, %v3929
    %v4058 = vmul.f32 %v3313, %v3930
    %v4059 = vmul.f32 %v3315, %v3931
    %v4060 = vmul.f32 %v3317, %v3932
    %v4061 = vmul.f32 %v3319, %v3933
    %v4062 = vmul.f32 %v3321, %v3934
    %v4063 = vmul.f32 %v3323, %v3935
    %v4064 = vmul.f32 %v3325, %v3936
    %v4065 = vmul.f32 %v3327, %v3937
    %v4066 = vmul.f32 %v3329, %v3938
    %v4067 = vmul.f32 %v3331, %v3939
    %v4068 = vmul.f32 %v3333, %v3940
    %v4069 = vmul.f32 %v3335, %v3941
    %v4070 = vmul.f32 %v3337, %v3942
    %v4071 = vmul.f32 %v3339, %v3943
    %v4072 = vmul.f32 %v3341, %v3944
    %v4073 = vmul.f32 %v3343, %v3945
    %v4074 = vmul.f32 %v3345, %v3946
    %v4075 = vmul.f32 %v3347, %v3947
    %v4076 = vmul.f32 %v3349, %v3948
    %v4077 = vmul.f32 %v3351, %v3949
    %v4078 = vmul.f32 %v3353, %v3950
    %v4079 = vmul.f32 %v3355, %v3951
    %v4080 = vmul.f32 %v3357, %v3952
    %v4081 = vmul.f32 %v3359, %v3953
    %v4082 = vmul.f32 %v3361, %v3954
    %v4083 = vmul.f32 %v3363, %v3955
    %v4084 = vmul.f32 %v3365, %v3956
    %v4085 = vmul.f32 %v3367, %v3957
    %v4086 = vmul.f32 %v3369, %v3958
    %v4087 = vmul.f32 %v3371, %v3959
    %v4088 = vmul.f32 %v3373, %v3960
    %v4089 = vmul.f32 %v3375, %v3961
    %v4090 = vmul.f32 %v3377, %v3962
    %v4091 = vmul.f32 %v3379, %v3963
    %v4092 = vmul.f32 %v3381, %v3964
    %v4093 = vmul.f32 %v3383, %v3965
    %v4094 = vmul.f32 %v3385, %v3966
    %v4095 = vmul.f32 %v3387, %v3967
    %v4096 = vmul.f32 %v3389, %v3968
    %v4097 = vmul.f32 %v3391, %v3969
    %v4098 = vmul.f32 %v3393, %v3970
    %v4099 = vmul.f32 %v3395, %v3971
    %v4100 = vmul.f32 %v3397, %v3972
    %v4101 = vmul.f32 %v3399, %v3973
    %v4102 = vmul.f32 %v3401, %v3974
    %v4103 = vmul.f32 %v3403, %v3975
    %v4104 = vmul.f32 %v3405, %v3976
    %v4105 = vmul.f32 %v3407, %v3977
    %v4106 = vmul.f32 %v3409, %v3978
    %v4107 = vmul.f32 %v3411, %v3979
    %v4108 = vmul.f32 %v3413, %v3980
    %v4109 = vmul.f32 %v3415, %v3981
    %v4110 = vmul.f32 %v3417, %v3982
    %v4111 = vmul.f32 %v3419, %v3983
    %v4112 = vmul.f32 %v3421, %v3984
    %v4113 = vmul.f32 %v3423, %v3985
    %v4114 = vmul.f32 %v3425, %v3986
    %v4115 = vmul.f32 %v3427, %v3987
    %v4116 = vmul.f32 %v3429, %v3988
    %v4117 = vmul.f32 %v3431, %v3989
    %v4118 = vmul.f32 %v3433, %v3990
    %v4119 = vmul.f32 %v3435, %v3991
    %v4120 = vmul.f32 %v3437, %v3992
    %v4121 = vmul.f32 %v3439, %v3993
    %v4122 = vmul.f32 %v3441, %v3994
    %v4123 = vmul.f32 %v3443, %v3995
    %v4124 = vmul.f32 %v3445, %v3996
    %v4125 = vmul.f32 %v3447, %v3997
    %v4126 = vmul.f32 %v3449, %v3998
    %v4127 = vmul.f32 %v3451, %v3999
    %v4128 = vmul.f32 %v3453, %v4000
    %v4129 = vmul.f32 %v3455, %v4001
    %v4130 = vmul.f32 %v3457, %v4002
    %v4131 = vmul.f32 %v3459, %v4003
    %v4132 = vmul.f32 %v3461, %v4004
    %v4133 = vmul.f32 %v3463, %v4005
    %v4134 = vmul.f32 %v3465, %v4006
    %v4135 = vmul.f32 %v3467, %v4007
    %v4136 = vmul.f32 %v3469, %v4008
    %v4137 = vmul.f32 %v3471, %v4009
    %v4138 = vmul.f32 %v3473, %v4010
    %v4139 = vmul.f32 %v3475, %v4011
    %v4140 = vmul.f32 %v3477, %v4012
    %v4141 = vmul.f32 %v3479, %v4013
    %v4142 = vmul.f32 %v3481, %v4014
    %v4143 = vmul.f32 %v3483, %v4015
    %v4144 = vmul.f32 %v3485, %v4016
    %v4145 = vmul.f32 %v3487, %v4017
    %v4146 = vmul.f32 %v3489, %v4018
    %v4147 = vmul.f32 %v3491, %v4019
    %v4148 = vmul.f32 %v3493, %v4020
    %v4149 = vmul.f32 %v3495, %v4021
    %v4150 = vmul.f32 %v3497, %v4022
    %v4151 = vmul.f32 %v3499, %v4023
    %v4152 = vmul.f32 %v3501, %v4024
    %v4153 = vmul.f32 %v3503, %v4025
    %v4154 = vmul.f32 %v3505, %v4026
    %v4155 = vmul.f32 %v3507, %v4027
    %v4156 = vmul.f32 %v3509, %v4028
    %v4157 = vmul.f32 %v3511, %v4029
    %v4158 = vmul.f32 %v3513, %v4030
    %v4159 = vmul.f32 %v3515, %v4031
    %v4160 = vmul.f32 %v3517, %v4032
    %v4161 = vmul.f32 %v3519, %v4033
    %v4162 = vmul.f32 %v3521, %v4034
    %v4163 = vmul.f32 %v3523, %v4035
    %v4164 = vpack.c.bf16 %v4036, %v4036
    %v4165 = vpack.c.bf16 %v4037, %v4037
    %v4166 = vpack.c.bf16 %v4038, %v4038
    %v4167 = vpack.c.bf16 %v4039, %v4039
    %v4168 = vpack.c.bf16 %v4040, %v4040
    %v4169 = vpack.c.bf16 %v4041, %v4041
    %v4170 = vpack.c.bf16 %v4042, %v4042
    %v4171 = vpack.c.bf16 %v4043, %v4043
    %v4172 = vpack.c.bf16 %v4044, %v4044
    %v4173 = vpack.c.bf16 %v4045, %v4045
    %v4174 = vpack.c.bf16 %v4046, %v4046
    %v4175 = vpack.c.bf16 %v4047, %v4047
    %v4176 = vpack.c.bf16 %v4048, %v4048
    %v4177 = vpack.c.bf16 %v4049, %v4049
    %v4178 = vpack.c.bf16 %v4050, %v4050
    %v4179 = vpack.c.bf16 %v4051, %v4051
    %v4180 = vpack.c.bf16 %v4052, %v4052
    %v4181 = vpack.c.bf16 %v4053, %v4053
    %v4182 = vpack.c.bf16 %v4054, %v4054
    %v4183 = vpack.c.bf16 %v4055, %v4055
    %v4184 = vpack.c.bf16 %v4056, %v4056
    %v4185 = vpack.c.bf16 %v4057, %v4057
    %v4186 = vpack.c.bf16 %v4058, %v4058
    %v4187 = vpack.c.bf16 %v4059, %v4059
    %v4188 = vpack.c.bf16 %v4060, %v4060
    %v4189 = vpack.c.bf16 %v4061, %v4061
    %v4190 = vpack.c.bf16 %v4062, %v4062
    %v4191 = vpack.c.bf16 %v4063, %v4063
    %v4192 = vpack.c.bf16 %v4064, %v4064
    %v4193 = vpack.c.bf16 %v4065, %v4065
    %v4194 = vpack.c.bf16 %v4066, %v4066
    %v4195 = vpack.c.bf16 %v4067, %v4067
    %v4196 = vpack.c.bf16 %v4068, %v4068
    %v4197 = vpack.c.bf16 %v4069, %v4069
    %v4198 = vpack.c.bf16 %v4070, %v4070
    %v4199 = vpack.c.bf16 %v4071, %v4071
    %v4200 = vpack.c.bf16 %v4072, %v4072
    %v4201 = vpack.c.bf16 %v4073, %v4073
    %v4202 = vpack.c.bf16 %v4074, %v4074
    %v4203 = vpack.c.bf16 %v4075, %v4075
    %v4204 = vpack.c.bf16 %v4076, %v4076
    %v4205 = vpack.c.bf16 %v4077, %v4077
    %v4206 = vpack.c.bf16 %v4078, %v4078
    %v4207 = vpack.c.bf16 %v4079, %v4079
    %v4208 = vpack.c.bf16 %v4080, %v4080
    %v4209 = vpack.c.bf16 %v4081, %v4081
    %v4210 = vpack.c.bf16 %v4082, %v4082
    %v4211 = vpack.c.bf16 %v4083, %v4083
    %v4212 = vpack.c.bf16 %v4084, %v4084
    %v4213 = vpack.c.bf16 %v4085, %v4085
    %v4214 = vpack.c.bf16 %v4086, %v4086
    %v4215 = vpack.c.bf16 %v4087, %v4087
    %v4216 = vpack.c.bf16 %v4088, %v4088
    %v4217 = vpack.c.bf16 %v4089, %v4089
    %v4218 = vpack.c.bf16 %v4090, %v4090
    %v4219 = vpack.c.bf16 %v4091, %v4091
    %v4220 = vpack.c.bf16 %v4092, %v4092
    %v4221 = vpack.c.bf16 %v4093, %v4093
    %v4222 = vpack.c.bf16 %v4094, %v4094
    %v4223 = vpack.c.bf16 %v4095, %v4095
    %v4224 = vpack.c.bf16 %v4096, %v4096
    %v4225 = vpack.c.bf16 %v4097, %v4097
    %v4226 = vpack.c.bf16 %v4098, %v4098
    %v4227 = vpack.c.bf16 %v4099, %v4099
    %v4228 = vpack.c.bf16 %v4100, %v4100
    %v4229 = vpack.c.bf16 %v4101, %v4101
    %v4230 = vpack.c.bf16 %v4102, %v4102
    %v4231 = vpack.c.bf16 %v4103, %v4103
    %v4232 = vpack.c.bf16 %v4104, %v4104
    %v4233 = vpack.c.bf16 %v4105, %v4105
    %v4234 = vpack.c.bf16 %v4106, %v4106
    %v4235 = vpack.c.bf16 %v4107, %v4107
    %v4236 = vpack.c.bf16 %v4108, %v4108
    %v4237 = vpack.c.bf16 %v4109, %v4109
    %v4238 = vpack.c.bf16 %v4110, %v4110
    %v4239 = vpack.c.bf16 %v4111, %v4111
    %v4240 = vpack.c.bf16 %v4112, %v4112
    %v4241 = vpack.c.bf16 %v4113, %v4113
    %v4242 = vpack.c.bf16 %v4114, %v4114
    %v4243 = vpack.c.bf16 %v4115, %v4115
    %v4244 = vpack.c.bf16 %v4116, %v4116
    %v4245 = vpack.c.bf16 %v4117, %v4117
    %v4246 = vpack.c.bf16 %v4118, %v4118
    %v4247 = vpack.c.bf16 %v4119, %v4119
    %v4248 = vpack.c.bf16 %v4120, %v4120
    %v4249 = vpack.c.bf16 %v4121, %v4121
    %v4250 = vpack.c.bf16 %v4122, %v4122
    %v4251 = vpack.c.bf16 %v4123, %v4123
    %v4252 = vpack.c.bf16 %v4124, %v4124
    %v4253 = vpack.c.bf16 %v4125, %v4125
    %v4254 = vpack.c.bf16 %v4126, %v4126
    %v4255 = vpack.c.bf16 %v4127, %v4127
    %v4256 = vpack.c.bf16 %v4128, %v4128
    %v4257 = vpack.c.bf16 %v4129, %v4129
    %v4258 = vpack.c.bf16 %v4130, %v4130
    %v4259 = vpack.c.bf16 %v4131, %v4131
    %v4260 = vpack.c.bf16 %v4132, %v4132
    %v4261 = vpack.c.bf16 %v4133, %v4133
    %v4262 = vpack.c.bf16 %v4134, %v4134
    %v4263 = vpack.c.bf16 %v4135, %v4135
    %v4264 = vpack.c.bf16 %v4136, %v4136
    %v4265 = vpack.c.bf16 %v4137, %v4137
    %v4266 = vpack.c.bf16 %v4138, %v4138
    %v4267 = vpack.c.bf16 %v4139, %v4139
    %v4268 = vpack.c.bf16 %v4140, %v4140
    %v4269 = vpack.c.bf16 %v4141, %v4141
    %v4270 = vpack.c.bf16 %v4142, %v4142
    %v4271 = vpack.c.bf16 %v4143, %v4143
    %v4272 = vpack.c.bf16 %v4144, %v4144
    %v4273 = vpack.c.bf16 %v4145, %v4145
    %v4274 = vpack.c.bf16 %v4146, %v4146
    %v4275 = vpack.c.bf16 %v4147, %v4147
    %v4276 = vpack.c.bf16 %v4148, %v4148
    %v4277 = vpack.c.bf16 %v4149, %v4149
    %v4278 = vpack.c.bf16 %v4150, %v4150
    %v4279 = vpack.c.bf16 %v4151, %v4151
    %v4280 = vpack.c.bf16 %v4152, %v4152
    %v4281 = vpack.c.bf16 %v4153, %v4153
    %v4282 = vpack.c.bf16 %v4154, %v4154
    %v4283 = vpack.c.bf16 %v4155, %v4155
    %v4284 = vpack.c.bf16 %v4156, %v4156
    %v4285 = vpack.c.bf16 %v4157, %v4157
    %v4286 = vpack.c.bf16 %v4158, %v4158
    %v4287 = vpack.c.bf16 %v4159, %v4159
    %v4288 = vpack.c.bf16 %v4160, %v4160
    %v4289 = vpack.c.bf16 %v4161, %v4161
    %v4290 = vpack.c.bf16 %v4162, %v4162
    %v4291 = vpack.c.bf16 %v4163, %v4163
    %v4296 = vunpack.c.l.b16 %v4164
    %v4297 = vunpack.c.l.b16 %v4165
    %v4298 = vunpack.c.l.b16 %v4166
    %v4299 = vunpack.c.l.b16 %v4167
    %v4300 = vpack.c.b16 %v4297, %v4296
    %v4301 = vpack.c.b16 %v4299, %v4298
    %v4302 = vunpack.c.l.b16 %v675
    %v4303 = vunpack.c.l.b16 %v676
    %v4304 = vunpack.c.l.b16 %v677
    %v4305 = vunpack.c.l.b16 %v678
    %v4306 = vpack.c.b16 %v4303, %v4302
    %v4307 = vpack.c.b16 %v4305, %v4304
    %v4311 = vsel %vm231, %v4300, 0
    %v4314 = vsel %vm231, %v4301, 0
    %4316 = vmatpush.bf16.msra.mxu0 0
    %4317 = vmatpush.bf16.msra.mxu0 0
    %4318 = vmatpush.bf16.msra.mxu0 0
    %4319 = vmatpush.bf16.msra.mxu0 0
    %4320 = vmatpush.bf16.msra.mxu0 0
    %4321 = vmatpush.bf16.msra.mxu0 0
    %4322 = vmatpush.bf16.msra.mxu0 %v4307
    %4323 = vmatpush.bf16.msra.mxu0 %v4306
    %4324 = vmatmul.bf16.gmra.mxu0 %v4311
    %v4325 = vpop.f32.mrf.mxu0
    %v4326 = vadd.f32 0.0, %v4325
    %v4327 = vpop.f32.mrf.mxu0
    %v4328 = vadd.f32 0.0, %v4327
    %4329 = vmatmul.bf16.gmra.mxu0 %v4314
    %v4330 = vpop.f32.mrf.mxu0
    %v4331 = vadd.f32 0.0, %v4330
    %v4332 = vpop.f32.mrf.mxu0
    %v4333 = vadd.f32 0.0, %v4332
    %4334 = vdwg.mxu0
    %v4339 = vunpack.c.l.b16 %v4168
    %v4340 = vunpack.c.l.b16 %v4169
    %v4341 = vunpack.c.l.b16 %v4170
    %v4342 = vunpack.c.l.b16 %v4171
    %v4343 = vpack.c.b16 %v4340, %v4339
    %v4344 = vpack.c.b16 %v4342, %v4341
    %v4345 = vunpack.c.l.b16 %v679
    %v4346 = vunpack.c.l.b16 %v680
    %v4347 = vunpack.c.l.b16 %v681
    %v4348 = vunpack.c.l.b16 %v682
    %v4349 = vpack.c.b16 %v4346, %v4345
    %v4350 = vpack.c.b16 %v4348, %v4347
    %v4354 = vsel %vm231, %v4343, 0
    %v4357 = vsel %vm231, %v4344, 0
    %4359 = vmatpush.bf16.msra.mxu0 0
    %4360 = vmatpush.bf16.msra.mxu0 0
    %4361 = vmatpush.bf16.msra.mxu0 0
    %4362 = vmatpush.bf16.msra.mxu0 0
    %4363 = vmatpush.bf16.msra.mxu0 0
    %4364 = vmatpush.bf16.msra.mxu0 0
    %4365 = vmatpush.bf16.msra.mxu0 %v4350
    %4366 = vmatpush.bf16.msra.mxu0 %v4349
    %4367 = vmatmul.bf16.gmra.mxu0 %v4354
    %v4368 = vpop.f32.mrf.mxu0
    %v4369 = vadd.f32 0.0, %v4368
    %v4370 = vpop.f32.mrf.mxu0
    %v4371 = vadd.f32 0.0, %v4370
    %4372 = vmatmul.bf16.gmra.mxu0 %v4357
    %v4373 = vpop.f32.mrf.mxu0
    %v4374 = vadd.f32 0.0, %v4373
    %v4375 = vpop.f32.mrf.mxu0
    %v4376 = vadd.f32 0.0, %v4375
    %4377 = vdwg.mxu0
    %v4382 = vunpack.c.l.b16 %v4172
    %v4383 = vunpack.c.l.b16 %v4173
    %v4384 = vunpack.c.l.b16 %v4174
    %v4385 = vunpack.c.l.b16 %v4175
    %v4386 = vpack.c.b16 %v4383, %v4382
    %v4387 = vpack.c.b16 %v4385, %v4384
    %v4388 = vunpack.c.l.b16 %v683
    %v4389 = vunpack.c.l.b16 %v684
    %v4390 = vunpack.c.l.b16 %v685
    %v4391 = vunpack.c.l.b16 %v686
    %v4392 = vpack.c.b16 %v4389, %v4388
    %v4393 = vpack.c.b16 %v4391, %v4390
    %v4397 = vsel %vm231, %v4386, 0
    %v4400 = vsel %vm231, %v4387, 0
    %4402 = vmatpush.bf16.msra.mxu0 0
    %4403 = vmatpush.bf16.msra.mxu0 0
    %4404 = vmatpush.bf16.msra.mxu0 0
    %4405 = vmatpush.bf16.msra.mxu0 0
    %4406 = vmatpush.bf16.msra.mxu0 0
    %4407 = vmatpush.bf16.msra.mxu0 0
    %4408 = vmatpush.bf16.msra.mxu0 %v4393
    %4409 = vmatpush.bf16.msra.mxu0 %v4392
    %4410 = vmatmul.bf16.gmra.mxu0 %v4397
    %v4411 = vpop.f32.mrf.mxu0
    %v4412 = vadd.f32 0.0, %v4411
    %v4413 = vpop.f32.mrf.mxu0
    %v4414 = vadd.f32 0.0, %v4413
    %4415 = vmatmul.bf16.gmra.mxu0 %v4400
    %v4416 = vpop.f32.mrf.mxu0
    %v4417 = vadd.f32 0.0, %v4416
    %v4418 = vpop.f32.mrf.mxu0
    %v4419 = vadd.f32 0.0, %v4418
    %4420 = vdwg.mxu0
    %v4425 = vunpack.c.l.b16 %v4176
    %v4426 = vunpack.c.l.b16 %v4177
    %v4427 = vunpack.c.l.b16 %v4178
    %v4428 = vunpack.c.l.b16 %v4179
    %v4429 = vpack.c.b16 %v4426, %v4425
    %v4430 = vpack.c.b16 %v4428, %v4427
    %v4431 = vunpack.c.l.b16 %v687
    %v4432 = vunpack.c.l.b16 %v688
    %v4433 = vunpack.c.l.b16 %v689
    %v4434 = vunpack.c.l.b16 %v690
    %v4435 = vpack.c.b16 %v4432, %v4431
    %v4436 = vpack.c.b16 %v4434, %v4433
    %v4440 = vsel %vm231, %v4429, 0
    %v4443 = vsel %vm231, %v4430, 0
    %4445 = vmatpush.bf16.msra.mxu0 0
    %4446 = vmatpush.bf16.msra.mxu0 0
    %4447 = vmatpush.bf16.msra.mxu0 0
    %4448 = vmatpush.bf16.msra.mxu0 0
    %4449 = vmatpush.bf16.msra.mxu0 0
    %4450 = vmatpush.bf16.msra.mxu0 0
    %4451 = vmatpush.bf16.msra.mxu0 %v4436
    %4452 = vmatpush.bf16.msra.mxu0 %v4435
    %4453 = vmatmul.bf16.gmra.mxu0 %v4440
    %v4454 = vpop.f32.mrf.mxu0
    %v4455 = vadd.f32 0.0, %v4454
    %v4456 = vpop.f32.mrf.mxu0
    %v4457 = vadd.f32 0.0, %v4456
    %4458 = vmatmul.bf16.gmra.mxu0 %v4443
    %v4459 = vpop.f32.mrf.mxu0
    %v4460 = vadd.f32 0.0, %v4459
    %v4461 = vpop.f32.mrf.mxu0
    %v4462 = vadd.f32 0.0, %v4461
    %4463 = vdwg.mxu0
    %v4468 = vunpack.c.l.b16 %v4180
    %v4469 = vunpack.c.l.b16 %v4181
    %v4470 = vunpack.c.l.b16 %v4182
    %v4471 = vunpack.c.l.b16 %v4183
    %v4472 = vpack.c.b16 %v4469, %v4468
    %v4473 = vpack.c.b16 %v4471, %v4470
    %v4474 = vunpack.c.l.b16 %v691
    %v4475 = vunpack.c.l.b16 %v692
    %v4476 = vunpack.c.l.b16 %v693
    %v4477 = vunpack.c.l.b16 %v694
    %v4478 = vpack.c.b16 %v4475, %v4474
    %v4479 = vpack.c.b16 %v4477, %v4476
    %v4483 = vsel %vm231, %v4472, 0
    %v4486 = vsel %vm231, %v4473, 0
    %4488 = vmatpush.bf16.msra.mxu0 0
    %4489 = vmatpush.bf16.msra.mxu0 0
    %4490 = vmatpush.bf16.msra.mxu0 0
    %4491 = vmatpush.bf16.msra.mxu0 0
    %4492 = vmatpush.bf16.msra.mxu0 0
    %4493 = vmatpush.bf16.msra.mxu0 0
    %4494 = vmatpush.bf16.msra.mxu0 %v4479
    %4495 = vmatpush.bf16.msra.mxu0 %v4478
    %4496 = vmatmul.bf16.gmra.mxu0 %v4483
    %v4497 = vpop.f32.mrf.mxu0
    %v4498 = vadd.f32 0.0, %v4497
    %v4499 = vpop.f32.mrf.mxu0
    %v4500 = vadd.f32 0.0, %v4499
    %4501 = vmatmul.bf16.gmra.mxu0 %v4486
    %v4502 = vpop.f32.mrf.mxu0
    %v4503 = vadd.f32 0.0, %v4502
    %v4504 = vpop.f32.mrf.mxu0
    %v4505 = vadd.f32 0.0, %v4504
    %4506 = vdwg.mxu0
    %v4511 = vunpack.c.l.b16 %v4184
    %v4512 = vunpack.c.l.b16 %v4185
    %v4513 = vunpack.c.l.b16 %v4186
    %v4514 = vunpack.c.l.b16 %v4187
    %v4515 = vpack.c.b16 %v4512, %v4511
    %v4516 = vpack.c.b16 %v4514, %v4513
    %v4517 = vunpack.c.l.b16 %v695
    %v4518 = vunpack.c.l.b16 %v696
    %v4519 = vunpack.c.l.b16 %v697
    %v4520 = vunpack.c.l.b16 %v698
    %v4521 = vpack.c.b16 %v4518, %v4517
    %v4522 = vpack.c.b16 %v4520, %v4519
    %v4526 = vsel %vm231, %v4515, 0
    %v4529 = vsel %vm231, %v4516, 0
    %4531 = vmatpush.bf16.msra.mxu0 0
    %4532 = vmatpush.bf16.msra.mxu0 0
    %4533 = vmatpush.bf16.msra.mxu0 0
    %4534 = vmatpush.bf16.msra.mxu0 0
    %4535 = vmatpush.bf16.msra.mxu0 0
    %4536 = vmatpush.bf16.msra.mxu0 0
    %4537 = vmatpush.bf16.msra.mxu0 %v4522
    %4538 = vmatpush.bf16.msra.mxu0 %v4521
    %4539 = vmatmul.bf16.gmra.mxu0 %v4526
    %v4540 = vpop.f32.mrf.mxu0
    %v4541 = vadd.f32 0.0, %v4540
    %v4542 = vpop.f32.mrf.mxu0
    %v4543 = vadd.f32 0.0, %v4542
    %4544 = vmatmul.bf16.gmra.mxu0 %v4529
    %v4545 = vpop.f32.mrf.mxu0
    %v4546 = vadd.f32 0.0, %v4545
    %v4547 = vpop.f32.mrf.mxu0
    %v4548 = vadd.f32 0.0, %v4547
    %4549 = vdwg.mxu0
    %v4554 = vunpack.c.l.b16 %v4188
    %v4555 = vunpack.c.l.b16 %v4189
    %v4556 = vunpack.c.l.b16 %v4190
    %v4557 = vunpack.c.l.b16 %v4191
    %v4558 = vpack.c.b16 %v4555, %v4554
    %v4559 = vpack.c.b16 %v4557, %v4556
    %v4560 = vunpack.c.l.b16 %v699
    %v4561 = vunpack.c.l.b16 %v700
    %v4562 = vunpack.c.l.b16 %v701
    %v4563 = vunpack.c.l.b16 %v702
    %v4564 = vpack.c.b16 %v4561, %v4560
    %v4565 = vpack.c.b16 %v4563, %v4562
    %v4569 = vsel %vm231, %v4558, 0
    %v4572 = vsel %vm231, %v4559, 0
    %4574 = vmatpush.bf16.msra.mxu0 0
    %4575 = vmatpush.bf16.msra.mxu0 0
    %4576 = vmatpush.bf16.msra.mxu0 0
    %4577 = vmatpush.bf16.msra.mxu0 0
    %4578 = vmatpush.bf16.msra.mxu0 0
    %4579 = vmatpush.bf16.msra.mxu0 0
    %4580 = vmatpush.bf16.msra.mxu0 %v4565
    %4581 = vmatpush.bf16.msra.mxu0 %v4564
    %4582 = vmatmul.bf16.gmra.mxu0 %v4569
    %v4583 = vpop.f32.mrf.mxu0
    %v4584 = vadd.f32 0.0, %v4583
    %v4585 = vpop.f32.mrf.mxu0
    %v4586 = vadd.f32 0.0, %v4585
    %4587 = vmatmul.bf16.gmra.mxu0 %v4572
    %v4588 = vpop.f32.mrf.mxu0
    %v4589 = vadd.f32 0.0, %v4588
    %v4590 = vpop.f32.mrf.mxu0
    %v4591 = vadd.f32 0.0, %v4590
    %4592 = vdwg.mxu0
    %v4597 = vunpack.c.l.b16 %v4192
    %v4598 = vunpack.c.l.b16 %v4193
    %v4599 = vunpack.c.l.b16 %v4194
    %v4600 = vunpack.c.l.b16 %v4195
    %v4601 = vpack.c.b16 %v4598, %v4597
    %v4602 = vpack.c.b16 %v4600, %v4599
    %v4603 = vunpack.c.l.b16 %v703
    %v4604 = vunpack.c.l.b16 %v704
    %v4605 = vunpack.c.l.b16 %v705
    %v4606 = vunpack.c.l.b16 %v706
    %v4607 = vpack.c.b16 %v4604, %v4603
    %v4608 = vpack.c.b16 %v4606, %v4605
    %v4612 = vsel %vm231, %v4601, 0
    %v4615 = vsel %vm231, %v4602, 0
    %4617 = vmatpush.bf16.msra.mxu0 0
    %4618 = vmatpush.bf16.msra.mxu0 0
    %4619 = vmatpush.bf16.msra.mxu0 0
    %4620 = vmatpush.bf16.msra.mxu0 0
    %4621 = vmatpush.bf16.msra.mxu0 0
    %4622 = vmatpush.bf16.msra.mxu0 0
    %4623 = vmatpush.bf16.msra.mxu0 %v4608
    %4624 = vmatpush.bf16.msra.mxu0 %v4607
    %4625 = vmatmul.bf16.gmra.mxu0 %v4612
    %v4626 = vpop.f32.mrf.mxu0
    %v4627 = vadd.f32 0.0, %v4626
    %v4628 = vpop.f32.mrf.mxu0
    %v4629 = vadd.f32 0.0, %v4628
    %4630 = vmatmul.bf16.gmra.mxu0 %v4615
    %v4631 = vpop.f32.mrf.mxu0
    %v4632 = vadd.f32 0.0, %v4631
    %v4633 = vpop.f32.mrf.mxu0
    %v4634 = vadd.f32 0.0, %v4633
    %4635 = vdwg.mxu0
    %v4640 = vunpack.c.l.b16 %v4196
    %v4641 = vunpack.c.l.b16 %v4197
    %v4642 = vunpack.c.l.b16 %v4198
    %v4643 = vunpack.c.l.b16 %v4199
    %v4644 = vpack.c.b16 %v4641, %v4640
    %v4645 = vpack.c.b16 %v4643, %v4642
    %v4646 = vunpack.c.l.b16 %v1188
    %v4647 = vunpack.c.l.b16 %v1190
    %v4648 = vunpack.c.l.b16 %v1192
    %v4649 = vunpack.c.l.b16 %v1194
    %v4650 = vpack.c.b16 %v4647, %v4646
    %v4651 = vpack.c.b16 %v4649, %v4648
    %v4655 = vsel %vm231, %v4644, 0
    %v4658 = vsel %vm231, %v4645, 0
    %4660 = vmatpush.bf16.msra.mxu0 0
    %4661 = vmatpush.bf16.msra.mxu0 0
    %4662 = vmatpush.bf16.msra.mxu0 0
    %4663 = vmatpush.bf16.msra.mxu0 0
    %4664 = vmatpush.bf16.msra.mxu0 0
    %4665 = vmatpush.bf16.msra.mxu0 0
    %4666 = vmatpush.bf16.msra.mxu0 %v4651
    %4667 = vmatpush.bf16.msra.mxu0 %v4650
    %4668 = vmatmul.bf16.gmra.mxu0 %v4655
    %v4669 = vpop.f32.mrf.mxu0
    %v4670 = vadd.f32 0.0, %v4669
    %v4671 = vpop.f32.mrf.mxu0
    %v4672 = vadd.f32 0.0, %v4671
    %4673 = vmatmul.bf16.gmra.mxu0 %v4658
    %v4674 = vpop.f32.mrf.mxu0
    %v4675 = vadd.f32 0.0, %v4674
    %v4676 = vpop.f32.mrf.mxu0
    %v4677 = vadd.f32 0.0, %v4676
    %4678 = vdwg.mxu0
    %v4683 = vunpack.c.l.b16 %v4200
    %v4684 = vunpack.c.l.b16 %v4201
    %v4685 = vunpack.c.l.b16 %v4202
    %v4686 = vunpack.c.l.b16 %v4203
    %v4687 = vpack.c.b16 %v4684, %v4683
    %v4688 = vpack.c.b16 %v4686, %v4685
    %v4689 = vunpack.c.l.b16 %v1196
    %v4690 = vunpack.c.l.b16 %v1198
    %v4691 = vunpack.c.l.b16 %v1200
    %v4692 = vunpack.c.l.b16 %v1202
    %v4693 = vpack.c.b16 %v4690, %v4689
    %v4694 = vpack.c.b16 %v4692, %v4691
    %v4698 = vsel %vm231, %v4687, 0
    %v4701 = vsel %vm231, %v4688, 0
    %4703 = vmatpush.bf16.msra.mxu0 0
    %4704 = vmatpush.bf16.msra.mxu0 0
    %4705 = vmatpush.bf16.msra.mxu0 0
    %4706 = vmatpush.bf16.msra.mxu0 0
    %4707 = vmatpush.bf16.msra.mxu0 0
    %4708 = vmatpush.bf16.msra.mxu0 0
    %4709 = vmatpush.bf16.msra.mxu0 %v4694
    %4710 = vmatpush.bf16.msra.mxu0 %v4693
    %4711 = vmatmul.bf16.gmra.mxu0 %v4698
    %v4712 = vpop.f32.mrf.mxu0
    %v4713 = vadd.f32 0.0, %v4712
    %v4714 = vpop.f32.mrf.mxu0
    %v4715 = vadd.f32 0.0, %v4714
    %4716 = vmatmul.bf16.gmra.mxu0 %v4701
    %v4717 = vpop.f32.mrf.mxu0
    %v4718 = vadd.f32 0.0, %v4717
    %v4719 = vpop.f32.mrf.mxu0
    %v4720 = vadd.f32 0.0, %v4719
    %4721 = vdwg.mxu0
    %v4726 = vunpack.c.l.b16 %v4204
    %v4727 = vunpack.c.l.b16 %v4205
    %v4728 = vunpack.c.l.b16 %v4206
    %v4729 = vunpack.c.l.b16 %v4207
    %v4730 = vpack.c.b16 %v4727, %v4726
    %v4731 = vpack.c.b16 %v4729, %v4728
    %v4732 = vunpack.c.l.b16 %v1204
    %v4733 = vunpack.c.l.b16 %v1206
    %v4734 = vunpack.c.l.b16 %v1208
    %v4735 = vunpack.c.l.b16 %v1210
    %v4736 = vpack.c.b16 %v4733, %v4732
    %v4737 = vpack.c.b16 %v4735, %v4734
    %v4741 = vsel %vm231, %v4730, 0
    %v4744 = vsel %vm231, %v4731, 0
    %4746 = vmatpush.bf16.msra.mxu0 0
    %4747 = vmatpush.bf16.msra.mxu0 0
    %4748 = vmatpush.bf16.msra.mxu0 0
    %4749 = vmatpush.bf16.msra.mxu0 0
    %4750 = vmatpush.bf16.msra.mxu0 0
    %4751 = vmatpush.bf16.msra.mxu0 0
    %4752 = vmatpush.bf16.msra.mxu0 %v4737
    %4753 = vmatpush.bf16.msra.mxu0 %v4736
    %4754 = vmatmul.bf16.gmra.mxu0 %v4741
    %v4755 = vpop.f32.mrf.mxu0
    %v4756 = vadd.f32 0.0, %v4755
    %v4757 = vpop.f32.mrf.mxu0
    %v4758 = vadd.f32 0.0, %v4757
    %4759 = vmatmul.bf16.gmra.mxu0 %v4744
    %v4760 = vpop.f32.mrf.mxu0
    %v4761 = vadd.f32 0.0, %v4760
    %v4762 = vpop.f32.mrf.mxu0
    %v4763 = vadd.f32 0.0, %v4762
    %4764 = vdwg.mxu0
    %v4769 = vunpack.c.l.b16 %v4208
    %v4770 = vunpack.c.l.b16 %v4209
    %v4771 = vunpack.c.l.b16 %v4210
    %v4772 = vunpack.c.l.b16 %v4211
    %v4773 = vpack.c.b16 %v4770, %v4769
    %v4774 = vpack.c.b16 %v4772, %v4771
    %v4775 = vunpack.c.l.b16 %v1212
    %v4776 = vunpack.c.l.b16 %v1214
    %v4777 = vunpack.c.l.b16 %v1216
    %v4778 = vunpack.c.l.b16 %v1218
    %v4779 = vpack.c.b16 %v4776, %v4775
    %v4780 = vpack.c.b16 %v4778, %v4777
    %v4784 = vsel %vm231, %v4773, 0
    %v4787 = vsel %vm231, %v4774, 0
    %4789 = vmatpush.bf16.msra.mxu0 0
    %4790 = vmatpush.bf16.msra.mxu0 0
    %4791 = vmatpush.bf16.msra.mxu0 0
    %4792 = vmatpush.bf16.msra.mxu0 0
    %4793 = vmatpush.bf16.msra.mxu0 0
    %4794 = vmatpush.bf16.msra.mxu0 0
    %4795 = vmatpush.bf16.msra.mxu0 %v4780
    %4796 = vmatpush.bf16.msra.mxu0 %v4779
    %4797 = vmatmul.bf16.gmra.mxu0 %v4784
    %v4798 = vpop.f32.mrf.mxu0
    %v4799 = vadd.f32 0.0, %v4798
    %v4800 = vpop.f32.mrf.mxu0
    %v4801 = vadd.f32 0.0, %v4800
    %4802 = vmatmul.bf16.gmra.mxu0 %v4787
    %v4803 = vpop.f32.mrf.mxu0
    %v4804 = vadd.f32 0.0, %v4803
    %v4805 = vpop.f32.mrf.mxu0
    %v4806 = vadd.f32 0.0, %v4805
    %4807 = vdwg.mxu0
    %v4812 = vunpack.c.l.b16 %v4212
    %v4813 = vunpack.c.l.b16 %v4213
    %v4814 = vunpack.c.l.b16 %v4214
    %v4815 = vunpack.c.l.b16 %v4215
    %v4816 = vpack.c.b16 %v4813, %v4812
    %v4817 = vpack.c.b16 %v4815, %v4814
    %v4818 = vunpack.c.l.b16 %v1220
    %v4819 = vunpack.c.l.b16 %v1222
    %v4820 = vunpack.c.l.b16 %v1224
    %v4821 = vunpack.c.l.b16 %v1226
    %v4822 = vpack.c.b16 %v4819, %v4818
    %v4823 = vpack.c.b16 %v4821, %v4820
    %v4827 = vsel %vm231, %v4816, 0
    %v4830 = vsel %vm231, %v4817, 0
    %4832 = vmatpush.bf16.msra.mxu0 0
    %4833 = vmatpush.bf16.msra.mxu0 0
    %4834 = vmatpush.bf16.msra.mxu0 0
    %4835 = vmatpush.bf16.msra.mxu0 0
    %4836 = vmatpush.bf16.msra.mxu0 0
    %4837 = vmatpush.bf16.msra.mxu0 0
    %4838 = vmatpush.bf16.msra.mxu0 %v4823
    %4839 = vmatpush.bf16.msra.mxu0 %v4822
    %4840 = vmatmul.bf16.gmra.mxu0 %v4827
    %v4841 = vpop.f32.mrf.mxu0
    %v4842 = vadd.f32 0.0, %v4841
    %v4843 = vpop.f32.mrf.mxu0
    %v4844 = vadd.f32 0.0, %v4843
    %4845 = vmatmul.bf16.gmra.mxu0 %v4830
    %v4846 = vpop.f32.mrf.mxu0
    %v4847 = vadd.f32 0.0, %v4846
    %v4848 = vpop.f32.mrf.mxu0
    %v4849 = vadd.f32 0.0, %v4848
    %4850 = vdwg.mxu0
    %v4855 = vunpack.c.l.b16 %v4216
    %v4856 = vunpack.c.l.b16 %v4217
    %v4857 = vunpack.c.l.b16 %v4218
    %v4858 = vunpack.c.l.b16 %v4219
    %v4859 = vpack.c.b16 %v4856, %v4855
    %v4860 = vpack.c.b16 %v4858, %v4857
    %v4861 = vunpack.c.l.b16 %v1228
    %v4862 = vunpack.c.l.b16 %v1230
    %v4863 = vunpack.c.l.b16 %v1232
    %v4864 = vunpack.c.l.b16 %v1234
    %v4865 = vpack.c.b16 %v4862, %v4861
    %v4866 = vpack.c.b16 %v4864, %v4863
    %v4870 = vsel %vm231, %v4859, 0
    %v4873 = vsel %vm231, %v4860, 0
    %4875 = vmatpush.bf16.msra.mxu0 0
    %4876 = vmatpush.bf16.msra.mxu0 0
    %4877 = vmatpush.bf16.msra.mxu0 0
    %4878 = vmatpush.bf16.msra.mxu0 0
    %4879 = vmatpush.bf16.msra.mxu0 0
    %4880 = vmatpush.bf16.msra.mxu0 0
    %4881 = vmatpush.bf16.msra.mxu0 %v4866
    %4882 = vmatpush.bf16.msra.mxu0 %v4865
    %4883 = vmatmul.bf16.gmra.mxu0 %v4870
    %v4884 = vpop.f32.mrf.mxu0
    %v4885 = vadd.f32 0.0, %v4884
    %v4886 = vpop.f32.mrf.mxu0
    %v4887 = vadd.f32 0.0, %v4886
    %4888 = vmatmul.bf16.gmra.mxu0 %v4873
    %v4889 = vpop.f32.mrf.mxu0
    %v4890 = vadd.f32 0.0, %v4889
    %v4891 = vpop.f32.mrf.mxu0
    %v4892 = vadd.f32 0.0, %v4891
    %4893 = vdwg.mxu0
    %v4898 = vunpack.c.l.b16 %v4220
    %v4899 = vunpack.c.l.b16 %v4221
    %v4900 = vunpack.c.l.b16 %v4222
    %v4901 = vunpack.c.l.b16 %v4223
    %v4902 = vpack.c.b16 %v4899, %v4898
    %v4903 = vpack.c.b16 %v4901, %v4900
    %v4904 = vunpack.c.l.b16 %v1236
    %v4905 = vunpack.c.l.b16 %v1238
    %v4906 = vunpack.c.l.b16 %v1240
    %v4907 = vunpack.c.l.b16 %v1242
    %v4908 = vpack.c.b16 %v4905, %v4904
    %v4909 = vpack.c.b16 %v4907, %v4906
    %v4913 = vsel %vm231, %v4902, 0
    %v4916 = vsel %vm231, %v4903, 0
    %4918 = vmatpush.bf16.msra.mxu0 0
    %4919 = vmatpush.bf16.msra.mxu0 0
    %4920 = vmatpush.bf16.msra.mxu0 0
    %4921 = vmatpush.bf16.msra.mxu0 0
    %4922 = vmatpush.bf16.msra.mxu0 0
    %4923 = vmatpush.bf16.msra.mxu0 0
    %4924 = vmatpush.bf16.msra.mxu0 %v4909
    %4925 = vmatpush.bf16.msra.mxu0 %v4908
    %4926 = vmatmul.bf16.gmra.mxu0 %v4913
    %v4927 = vpop.f32.mrf.mxu0
    %v4928 = vadd.f32 0.0, %v4927
    %v4929 = vpop.f32.mrf.mxu0
    %v4930 = vadd.f32 0.0, %v4929
    %4931 = vmatmul.bf16.gmra.mxu0 %v4916
    %v4932 = vpop.f32.mrf.mxu0
    %v4933 = vadd.f32 0.0, %v4932
    %v4934 = vpop.f32.mrf.mxu0
    %v4935 = vadd.f32 0.0, %v4934
    %4936 = vdwg.mxu0
    %v4941 = vunpack.c.l.b16 %v4224
    %v4942 = vunpack.c.l.b16 %v4225
    %v4943 = vunpack.c.l.b16 %v4226
    %v4944 = vunpack.c.l.b16 %v4227
    %v4945 = vpack.c.b16 %v4942, %v4941
    %v4946 = vpack.c.b16 %v4944, %v4943
    %v4947 = vunpack.c.l.b16 %v1244
    %v4948 = vunpack.c.l.b16 %v1246
    %v4949 = vunpack.c.l.b16 %v1248
    %v4950 = vunpack.c.l.b16 %v1250
    %v4951 = vpack.c.b16 %v4948, %v4947
    %v4952 = vpack.c.b16 %v4950, %v4949
    %v4956 = vsel %vm231, %v4945, 0
    %v4959 = vsel %vm231, %v4946, 0
    %4961 = vmatpush.bf16.msra.mxu0 0
    %4962 = vmatpush.bf16.msra.mxu0 0
    %4963 = vmatpush.bf16.msra.mxu0 0
    %4964 = vmatpush.bf16.msra.mxu0 0
    %4965 = vmatpush.bf16.msra.mxu0 0
    %4966 = vmatpush.bf16.msra.mxu0 0
    %4967 = vmatpush.bf16.msra.mxu0 %v4952
    %4968 = vmatpush.bf16.msra.mxu0 %v4951
    %4969 = vmatmul.bf16.gmra.mxu0 %v4956
    %v4970 = vpop.f32.mrf.mxu0
    %v4971 = vadd.f32 0.0, %v4970
    %v4972 = vpop.f32.mrf.mxu0
    %v4973 = vadd.f32 0.0, %v4972
    %4974 = vmatmul.bf16.gmra.mxu0 %v4959
    %v4975 = vpop.f32.mrf.mxu0
    %v4976 = vadd.f32 0.0, %v4975
    %v4977 = vpop.f32.mrf.mxu0
    %v4978 = vadd.f32 0.0, %v4977
    %4979 = vdwg.mxu0
    %v4984 = vunpack.c.l.b16 %v4228
    %v4985 = vunpack.c.l.b16 %v4229
    %v4986 = vunpack.c.l.b16 %v4230
    %v4987 = vunpack.c.l.b16 %v4231
    %v4988 = vpack.c.b16 %v4985, %v4984
    %v4989 = vpack.c.b16 %v4987, %v4986
    %v4990 = vunpack.c.l.b16 %v1252
    %v4991 = vunpack.c.l.b16 %v1254
    %v4992 = vunpack.c.l.b16 %v1256
    %v4993 = vunpack.c.l.b16 %v1258
    %v4994 = vpack.c.b16 %v4991, %v4990
    %v4995 = vpack.c.b16 %v4993, %v4992
    %v4999 = vsel %vm231, %v4988, 0
    %v5002 = vsel %vm231, %v4989, 0
    %5004 = vmatpush.bf16.msra.mxu0 0
    %5005 = vmatpush.bf16.msra.mxu0 0
    %5006 = vmatpush.bf16.msra.mxu0 0
    %5007 = vmatpush.bf16.msra.mxu0 0
    %5008 = vmatpush.bf16.msra.mxu0 0
    %5009 = vmatpush.bf16.msra.mxu0 0
    %5010 = vmatpush.bf16.msra.mxu0 %v4995
    %5011 = vmatpush.bf16.msra.mxu0 %v4994
    %5012 = vmatmul.bf16.gmra.mxu0 %v4999
    %v5013 = vpop.f32.mrf.mxu0
    %v5014 = vadd.f32 0.0, %v5013
    %v5015 = vpop.f32.mrf.mxu0
    %v5016 = vadd.f32 0.0, %v5015
    %5017 = vmatmul.bf16.gmra.mxu0 %v5002
    %v5018 = vpop.f32.mrf.mxu0
    %v5019 = vadd.f32 0.0, %v5018
    %v5020 = vpop.f32.mrf.mxu0
    %v5021 = vadd.f32 0.0, %v5020
    %5022 = vdwg.mxu0
    %v5027 = vunpack.c.l.b16 %v4232
    %v5028 = vunpack.c.l.b16 %v4233
    %v5029 = vunpack.c.l.b16 %v4234
    %v5030 = vunpack.c.l.b16 %v4235
    %v5031 = vpack.c.b16 %v5028, %v5027
    %v5032 = vpack.c.b16 %v5030, %v5029
    %v5033 = vunpack.c.l.b16 %v1260
    %v5034 = vunpack.c.l.b16 %v1262
    %v5035 = vunpack.c.l.b16 %v1264
    %v5036 = vunpack.c.l.b16 %v1266
    %v5037 = vpack.c.b16 %v5034, %v5033
    %v5038 = vpack.c.b16 %v5036, %v5035
    %v5042 = vsel %vm231, %v5031, 0
    %v5045 = vsel %vm231, %v5032, 0
    %5047 = vmatpush.bf16.msra.mxu0 0
    %5048 = vmatpush.bf16.msra.mxu0 0
    %5049 = vmatpush.bf16.msra.mxu0 0
    %5050 = vmatpush.bf16.msra.mxu0 0
    %5051 = vmatpush.bf16.msra.mxu0 0
    %5052 = vmatpush.bf16.msra.mxu0 0
    %5053 = vmatpush.bf16.msra.mxu0 %v5038
    %5054 = vmatpush.bf16.msra.mxu0 %v5037
    %5055 = vmatmul.bf16.gmra.mxu0 %v5042
    %v5056 = vpop.f32.mrf.mxu0
    %v5057 = vadd.f32 0.0, %v5056
    %v5058 = vpop.f32.mrf.mxu0
    %v5059 = vadd.f32 0.0, %v5058
    %5060 = vmatmul.bf16.gmra.mxu0 %v5045
    %v5061 = vpop.f32.mrf.mxu0
    %v5062 = vadd.f32 0.0, %v5061
    %v5063 = vpop.f32.mrf.mxu0
    %v5064 = vadd.f32 0.0, %v5063
    %5065 = vdwg.mxu0
    %v5070 = vunpack.c.l.b16 %v4236
    %v5071 = vunpack.c.l.b16 %v4237
    %v5072 = vunpack.c.l.b16 %v4238
    %v5073 = vunpack.c.l.b16 %v4239
    %v5074 = vpack.c.b16 %v5071, %v5070
    %v5075 = vpack.c.b16 %v5073, %v5072
    %v5076 = vunpack.c.l.b16 %v1268
    %v5077 = vunpack.c.l.b16 %v1270
    %v5078 = vunpack.c.l.b16 %v1272
    %v5079 = vunpack.c.l.b16 %v1274
    %v5080 = vpack.c.b16 %v5077, %v5076
    %v5081 = vpack.c.b16 %v5079, %v5078
    %v5085 = vsel %vm231, %v5074, 0
    %v5088 = vsel %vm231, %v5075, 0
    %5090 = vmatpush.bf16.msra.mxu0 0
    %5091 = vmatpush.bf16.msra.mxu0 0
    %5092 = vmatpush.bf16.msra.mxu0 0
    %5093 = vmatpush.bf16.msra.mxu0 0
    %5094 = vmatpush.bf16.msra.mxu0 0
    %5095 = vmatpush.bf16.msra.mxu0 0
    %5096 = vmatpush.bf16.msra.mxu0 %v5081
    %5097 = vmatpush.bf16.msra.mxu0 %v5080
    %5098 = vmatmul.bf16.gmra.mxu0 %v5085
    %v5099 = vpop.f32.mrf.mxu0
    %v5100 = vadd.f32 0.0, %v5099
    %v5101 = vpop.f32.mrf.mxu0
    %v5102 = vadd.f32 0.0, %v5101
    %5103 = vmatmul.bf16.gmra.mxu0 %v5088
    %v5104 = vpop.f32.mrf.mxu0
    %v5105 = vadd.f32 0.0, %v5104
    %v5106 = vpop.f32.mrf.mxu0
    %v5107 = vadd.f32 0.0, %v5106
    %5108 = vdwg.mxu0
    %v5113 = vunpack.c.l.b16 %v4240
    %v5114 = vunpack.c.l.b16 %v4241
    %v5115 = vunpack.c.l.b16 %v4242
    %v5116 = vunpack.c.l.b16 %v4243
    %v5117 = vpack.c.b16 %v5114, %v5113
    %v5118 = vpack.c.b16 %v5116, %v5115
    %v5119 = vunpack.c.l.b16 %v1276
    %v5120 = vunpack.c.l.b16 %v1278
    %v5121 = vunpack.c.l.b16 %v1280
    %v5122 = vunpack.c.l.b16 %v1282
    %v5123 = vpack.c.b16 %v5120, %v5119
    %v5124 = vpack.c.b16 %v5122, %v5121
    %v5128 = vsel %vm231, %v5117, 0
    %v5131 = vsel %vm231, %v5118, 0
    %5133 = vmatpush.bf16.msra.mxu0 0
    %5134 = vmatpush.bf16.msra.mxu0 0
    %5135 = vmatpush.bf16.msra.mxu0 0
    %5136 = vmatpush.bf16.msra.mxu0 0
    %5137 = vmatpush.bf16.msra.mxu0 0
    %5138 = vmatpush.bf16.msra.mxu0 0
    %5139 = vmatpush.bf16.msra.mxu0 %v5124
    %5140 = vmatpush.bf16.msra.mxu0 %v5123
    %5141 = vmatmul.bf16.gmra.mxu0 %v5128
    %v5142 = vpop.f32.mrf.mxu0
    %v5143 = vadd.f32 0.0, %v5142
    %v5144 = vpop.f32.mrf.mxu0
    %v5145 = vadd.f32 0.0, %v5144
    %5146 = vmatmul.bf16.gmra.mxu0 %v5131
    %v5147 = vpop.f32.mrf.mxu0
    %v5148 = vadd.f32 0.0, %v5147
    %v5149 = vpop.f32.mrf.mxu0
    %v5150 = vadd.f32 0.0, %v5149
    %5151 = vdwg.mxu0
    %v5156 = vunpack.c.l.b16 %v4244
    %v5157 = vunpack.c.l.b16 %v4245
    %v5158 = vunpack.c.l.b16 %v4246
    %v5159 = vunpack.c.l.b16 %v4247
    %v5160 = vpack.c.b16 %v5157, %v5156
    %v5161 = vpack.c.b16 %v5159, %v5158
    %v5162 = vunpack.c.l.b16 %v1284
    %v5163 = vunpack.c.l.b16 %v1286
    %v5164 = vunpack.c.l.b16 %v1288
    %v5165 = vunpack.c.l.b16 %v1290
    %v5166 = vpack.c.b16 %v5163, %v5162
    %v5167 = vpack.c.b16 %v5165, %v5164
    %v5171 = vsel %vm231, %v5160, 0
    %v5174 = vsel %vm231, %v5161, 0
    %5176 = vmatpush.bf16.msra.mxu0 0
    %5177 = vmatpush.bf16.msra.mxu0 0
    %5178 = vmatpush.bf16.msra.mxu0 0
    %5179 = vmatpush.bf16.msra.mxu0 0
    %5180 = vmatpush.bf16.msra.mxu0 0
    %5181 = vmatpush.bf16.msra.mxu0 0
    %5182 = vmatpush.bf16.msra.mxu0 %v5167
    %5183 = vmatpush.bf16.msra.mxu0 %v5166
    %5184 = vmatmul.bf16.gmra.mxu0 %v5171
    %v5185 = vpop.f32.mrf.mxu0
    %v5186 = vadd.f32 0.0, %v5185
    %v5187 = vpop.f32.mrf.mxu0
    %v5188 = vadd.f32 0.0, %v5187
    %5189 = vmatmul.bf16.gmra.mxu0 %v5174
    %v5190 = vpop.f32.mrf.mxu0
    %v5191 = vadd.f32 0.0, %v5190
    %v5192 = vpop.f32.mrf.mxu0
    %v5193 = vadd.f32 0.0, %v5192
    %5194 = vdwg.mxu0
    %v5199 = vunpack.c.l.b16 %v4248
    %v5200 = vunpack.c.l.b16 %v4249
    %v5201 = vunpack.c.l.b16 %v4250
    %v5202 = vunpack.c.l.b16 %v4251
    %v5203 = vpack.c.b16 %v5200, %v5199
    %v5204 = vpack.c.b16 %v5202, %v5201
    %v5205 = vunpack.c.l.b16 %v1292
    %v5206 = vunpack.c.l.b16 %v1294
    %v5207 = vunpack.c.l.b16 %v1296
    %v5208 = vunpack.c.l.b16 %v1298
    %v5209 = vpack.c.b16 %v5206, %v5205
    %v5210 = vpack.c.b16 %v5208, %v5207
    %v5214 = vsel %vm231, %v5203, 0
    %v5217 = vsel %vm231, %v5204, 0
    %5219 = vmatpush.bf16.msra.mxu0 0
    %5220 = vmatpush.bf16.msra.mxu0 0
    %5221 = vmatpush.bf16.msra.mxu0 0
    %5222 = vmatpush.bf16.msra.mxu0 0
    %5223 = vmatpush.bf16.msra.mxu0 0
    %5224 = vmatpush.bf16.msra.mxu0 0
    %5225 = vmatpush.bf16.msra.mxu0 %v5210
    %5226 = vmatpush.bf16.msra.mxu0 %v5209
    %5227 = vmatmul.bf16.gmra.mxu0 %v5214
    %v5228 = vpop.f32.mrf.mxu0
    %v5229 = vadd.f32 0.0, %v5228
    %v5230 = vpop.f32.mrf.mxu0
    %v5231 = vadd.f32 0.0, %v5230
    %5232 = vmatmul.bf16.gmra.mxu0 %v5217
    %v5233 = vpop.f32.mrf.mxu0
    %v5234 = vadd.f32 0.0, %v5233
    %v5235 = vpop.f32.mrf.mxu0
    %v5236 = vadd.f32 0.0, %v5235
    %5237 = vdwg.mxu0
    %v5242 = vunpack.c.l.b16 %v4252
    %v5243 = vunpack.c.l.b16 %v4253
    %v5244 = vunpack.c.l.b16 %v4254
    %v5245 = vunpack.c.l.b16 %v4255
    %v5246 = vpack.c.b16 %v5243, %v5242
    %v5247 = vpack.c.b16 %v5245, %v5244
    %v5248 = vunpack.c.l.b16 %v1300
    %v5249 = vunpack.c.l.b16 %v1302
    %v5250 = vunpack.c.l.b16 %v1304
    %v5251 = vunpack.c.l.b16 %v1306
    %v5252 = vpack.c.b16 %v5249, %v5248
    %v5253 = vpack.c.b16 %v5251, %v5250
    %v5257 = vsel %vm231, %v5246, 0
    %v5260 = vsel %vm231, %v5247, 0
    %5262 = vmatpush.bf16.msra.mxu0 0
    %5263 = vmatpush.bf16.msra.mxu0 0
    %5264 = vmatpush.bf16.msra.mxu0 0
    %5265 = vmatpush.bf16.msra.mxu0 0
    %5266 = vmatpush.bf16.msra.mxu0 0
    %5267 = vmatpush.bf16.msra.mxu0 0
    %5268 = vmatpush.bf16.msra.mxu0 %v5253
    %5269 = vmatpush.bf16.msra.mxu0 %v5252
    %5270 = vmatmul.bf16.gmra.mxu0 %v5257
    %v5271 = vpop.f32.mrf.mxu0
    %v5272 = vadd.f32 0.0, %v5271
    %v5273 = vpop.f32.mrf.mxu0
    %v5274 = vadd.f32 0.0, %v5273
    %5275 = vmatmul.bf16.gmra.mxu0 %v5260
    %v5276 = vpop.f32.mrf.mxu0
    %v5277 = vadd.f32 0.0, %v5276
    %v5278 = vpop.f32.mrf.mxu0
    %v5279 = vadd.f32 0.0, %v5278
    %5280 = vdwg.mxu0
    %v5285 = vunpack.c.l.b16 %v4256
    %v5286 = vunpack.c.l.b16 %v4257
    %v5287 = vunpack.c.l.b16 %v4258
    %v5288 = vunpack.c.l.b16 %v4259
    %v5289 = vpack.c.b16 %v5286, %v5285
    %v5290 = vpack.c.b16 %v5288, %v5287
    %v5291 = vunpack.c.l.b16 %v1308
    %v5292 = vunpack.c.l.b16 %v1310
    %v5293 = vunpack.c.l.b16 %v1312
    %v5294 = vunpack.c.l.b16 %v1314
    %v5295 = vpack.c.b16 %v5292, %v5291
    %v5296 = vpack.c.b16 %v5294, %v5293
    %v5300 = vsel %vm231, %v5289, 0
    %v5303 = vsel %vm231, %v5290, 0
    %5305 = vmatpush.bf16.msra.mxu0 0
    %5306 = vmatpush.bf16.msra.mxu0 0
    %5307 = vmatpush.bf16.msra.mxu0 0
    %5308 = vmatpush.bf16.msra.mxu0 0
    %5309 = vmatpush.bf16.msra.mxu0 0
    %5310 = vmatpush.bf16.msra.mxu0 0
    %5311 = vmatpush.bf16.msra.mxu0 %v5296
    %5312 = vmatpush.bf16.msra.mxu0 %v5295
    %5313 = vmatmul.bf16.gmra.mxu0 %v5300
    %v5314 = vpop.f32.mrf.mxu0
    %v5315 = vadd.f32 0.0, %v5314
    %v5316 = vpop.f32.mrf.mxu0
    %v5317 = vadd.f32 0.0, %v5316
    %5318 = vmatmul.bf16.gmra.mxu0 %v5303
    %v5319 = vpop.f32.mrf.mxu0
    %v5320 = vadd.f32 0.0, %v5319
    %v5321 = vpop.f32.mrf.mxu0
    %v5322 = vadd.f32 0.0, %v5321
    %5323 = vdwg.mxu0
    %v5328 = vunpack.c.l.b16 %v4260
    %v5329 = vunpack.c.l.b16 %v4261
    %v5330 = vunpack.c.l.b16 %v4262
    %v5331 = vunpack.c.l.b16 %v4263
    %v5332 = vpack.c.b16 %v5329, %v5328
    %v5333 = vpack.c.b16 %v5331, %v5330
    %v5334 = vunpack.c.l.b16 %v1316
    %v5335 = vunpack.c.l.b16 %v1318
    %v5336 = vunpack.c.l.b16 %v1320
    %v5337 = vunpack.c.l.b16 %v1322
    %v5338 = vpack.c.b16 %v5335, %v5334
    %v5339 = vpack.c.b16 %v5337, %v5336
    %v5343 = vsel %vm231, %v5332, 0
    %v5346 = vsel %vm231, %v5333, 0
    %5348 = vmatpush.bf16.msra.mxu0 0
    %5349 = vmatpush.bf16.msra.mxu0 0
    %5350 = vmatpush.bf16.msra.mxu0 0
    %5351 = vmatpush.bf16.msra.mxu0 0
    %5352 = vmatpush.bf16.msra.mxu0 0
    %5353 = vmatpush.bf16.msra.mxu0 0
    %5354 = vmatpush.bf16.msra.mxu0 %v5339
    %5355 = vmatpush.bf16.msra.mxu0 %v5338
    %5356 = vmatmul.bf16.gmra.mxu0 %v5343
    %v5357 = vpop.f32.mrf.mxu0
    %v5358 = vadd.f32 0.0, %v5357
    %v5359 = vpop.f32.mrf.mxu0
    %v5360 = vadd.f32 0.0, %v5359
    %5361 = vmatmul.bf16.gmra.mxu0 %v5346
    %v5362 = vpop.f32.mrf.mxu0
    %v5363 = vadd.f32 0.0, %v5362
    %v5364 = vpop.f32.mrf.mxu0
    %v5365 = vadd.f32 0.0, %v5364
    %5366 = vdwg.mxu0
    %v5371 = vunpack.c.l.b16 %v4264
    %v5372 = vunpack.c.l.b16 %v4265
    %v5373 = vunpack.c.l.b16 %v4266
    %v5374 = vunpack.c.l.b16 %v4267
    %v5375 = vpack.c.b16 %v5372, %v5371
    %v5376 = vpack.c.b16 %v5374, %v5373
    %v5377 = vunpack.c.l.b16 %v1324
    %v5378 = vunpack.c.l.b16 %v1326
    %v5379 = vunpack.c.l.b16 %v1328
    %v5380 = vunpack.c.l.b16 %v1330
    %v5381 = vpack.c.b16 %v5378, %v5377
    %v5382 = vpack.c.b16 %v5380, %v5379
    %v5386 = vsel %vm231, %v5375, 0
    %v5389 = vsel %vm231, %v5376, 0
    %5391 = vmatpush.bf16.msra.mxu0 0
    %5392 = vmatpush.bf16.msra.mxu0 0
    %5393 = vmatpush.bf16.msra.mxu0 0
    %5394 = vmatpush.bf16.msra.mxu0 0
    %5395 = vmatpush.bf16.msra.mxu0 0
    %5396 = vmatpush.bf16.msra.mxu0 0
    %5397 = vmatpush.bf16.msra.mxu0 %v5382
    %5398 = vmatpush.bf16.msra.mxu0 %v5381
    %5399 = vmatmul.bf16.gmra.mxu0 %v5386
    %v5400 = vpop.f32.mrf.mxu0
    %v5401 = vadd.f32 0.0, %v5400
    %v5402 = vpop.f32.mrf.mxu0
    %v5403 = vadd.f32 0.0, %v5402
    %5404 = vmatmul.bf16.gmra.mxu0 %v5389
    %v5405 = vpop.f32.mrf.mxu0
    %v5406 = vadd.f32 0.0, %v5405
    %v5407 = vpop.f32.mrf.mxu0
    %v5408 = vadd.f32 0.0, %v5407
    %5409 = vdwg.mxu0
    %v5414 = vunpack.c.l.b16 %v4268
    %v5415 = vunpack.c.l.b16 %v4269
    %v5416 = vunpack.c.l.b16 %v4270
    %v5417 = vunpack.c.l.b16 %v4271
    %v5418 = vpack.c.b16 %v5415, %v5414
    %v5419 = vpack.c.b16 %v5417, %v5416
    %v5420 = vunpack.c.l.b16 %v1332
    %v5421 = vunpack.c.l.b16 %v1334
    %v5422 = vunpack.c.l.b16 %v1336
    %v5423 = vunpack.c.l.b16 %v1338
    %v5424 = vpack.c.b16 %v5421, %v5420
    %v5425 = vpack.c.b16 %v5423, %v5422
    %v5429 = vsel %vm231, %v5418, 0
    %v5432 = vsel %vm231, %v5419, 0
    %5434 = vmatpush.bf16.msra.mxu0 0
    %5435 = vmatpush.bf16.msra.mxu0 0
    %5436 = vmatpush.bf16.msra.mxu0 0
    %5437 = vmatpush.bf16.msra.mxu0 0
    %5438 = vmatpush.bf16.msra.mxu0 0
    %5439 = vmatpush.bf16.msra.mxu0 0
    %5440 = vmatpush.bf16.msra.mxu0 %v5425
    %5441 = vmatpush.bf16.msra.mxu0 %v5424
    %5442 = vmatmul.bf16.gmra.mxu0 %v5429
    %v5443 = vpop.f32.mrf.mxu0
    %v5444 = vadd.f32 0.0, %v5443
    %v5445 = vpop.f32.mrf.mxu0
    %v5446 = vadd.f32 0.0, %v5445
    %5447 = vmatmul.bf16.gmra.mxu0 %v5432
    %v5448 = vpop.f32.mrf.mxu0
    %v5449 = vadd.f32 0.0, %v5448
    %v5450 = vpop.f32.mrf.mxu0
    %v5451 = vadd.f32 0.0, %v5450
    %5452 = vdwg.mxu0
    %v5457 = vunpack.c.l.b16 %v4272
    %v5458 = vunpack.c.l.b16 %v4273
    %v5459 = vunpack.c.l.b16 %v4274
    %v5460 = vunpack.c.l.b16 %v4275
    %v5461 = vpack.c.b16 %v5458, %v5457
    %v5462 = vpack.c.b16 %v5460, %v5459
    %v5463 = vunpack.c.l.b16 %v1340
    %v5464 = vunpack.c.l.b16 %v1342
    %v5465 = vunpack.c.l.b16 %v1344
    %v5466 = vunpack.c.l.b16 %v1346
    %v5467 = vpack.c.b16 %v5464, %v5463
    %v5468 = vpack.c.b16 %v5466, %v5465
    %v5472 = vsel %vm231, %v5461, 0
    %v5475 = vsel %vm231, %v5462, 0
    %5477 = vmatpush.bf16.msra.mxu0 0
    %5478 = vmatpush.bf16.msra.mxu0 0
    %5479 = vmatpush.bf16.msra.mxu0 0
    %5480 = vmatpush.bf16.msra.mxu0 0
    %5481 = vmatpush.bf16.msra.mxu0 0
    %5482 = vmatpush.bf16.msra.mxu0 0
    %5483 = vmatpush.bf16.msra.mxu0 %v5468
    %5484 = vmatpush.bf16.msra.mxu0 %v5467
    %5485 = vmatmul.bf16.gmra.mxu0 %v5472
    %v5486 = vpop.f32.mrf.mxu0
    %v5487 = vadd.f32 0.0, %v5486
    %v5488 = vpop.f32.mrf.mxu0
    %v5489 = vadd.f32 0.0, %v5488
    %5490 = vmatmul.bf16.gmra.mxu0 %v5475
    %v5491 = vpop.f32.mrf.mxu0
    %v5492 = vadd.f32 0.0, %v5491
    %v5493 = vpop.f32.mrf.mxu0
    %v5494 = vadd.f32 0.0, %v5493
    %5495 = vdwg.mxu0
    %v5500 = vunpack.c.l.b16 %v4276
    %v5501 = vunpack.c.l.b16 %v4277
    %v5502 = vunpack.c.l.b16 %v4278
    %v5503 = vunpack.c.l.b16 %v4279
    %v5504 = vpack.c.b16 %v5501, %v5500
    %v5505 = vpack.c.b16 %v5503, %v5502
    %v5506 = vunpack.c.l.b16 %v1348
    %v5507 = vunpack.c.l.b16 %v1350
    %v5508 = vunpack.c.l.b16 %v1352
    %v5509 = vunpack.c.l.b16 %v1354
    %v5510 = vpack.c.b16 %v5507, %v5506
    %v5511 = vpack.c.b16 %v5509, %v5508
    %v5515 = vsel %vm231, %v5504, 0
    %v5518 = vsel %vm231, %v5505, 0
    %5520 = vmatpush.bf16.msra.mxu0 0
    %5521 = vmatpush.bf16.msra.mxu0 0
    %5522 = vmatpush.bf16.msra.mxu0 0
    %5523 = vmatpush.bf16.msra.mxu0 0
    %5524 = vmatpush.bf16.msra.mxu0 0
    %5525 = vmatpush.bf16.msra.mxu0 0
    %5526 = vmatpush.bf16.msra.mxu0 %v5511
    %5527 = vmatpush.bf16.msra.mxu0 %v5510
    %5528 = vmatmul.bf16.gmra.mxu0 %v5515
    %v5529 = vpop.f32.mrf.mxu0
    %v5530 = vadd.f32 0.0, %v5529
    %v5531 = vpop.f32.mrf.mxu0
    %v5532 = vadd.f32 0.0, %v5531
    %5533 = vmatmul.bf16.gmra.mxu0 %v5518
    %v5534 = vpop.f32.mrf.mxu0
    %v5535 = vadd.f32 0.0, %v5534
    %v5536 = vpop.f32.mrf.mxu0
    %v5537 = vadd.f32 0.0, %v5536
    %5538 = vdwg.mxu0
    %v5543 = vunpack.c.l.b16 %v4280
    %v5544 = vunpack.c.l.b16 %v4281
    %v5545 = vunpack.c.l.b16 %v4282
    %v5546 = vunpack.c.l.b16 %v4283
    %v5547 = vpack.c.b16 %v5544, %v5543
    %v5548 = vpack.c.b16 %v5546, %v5545
    %v5549 = vunpack.c.l.b16 %v1356
    %v5550 = vunpack.c.l.b16 %v1358
    %v5551 = vunpack.c.l.b16 %v1360
    %v5552 = vunpack.c.l.b16 %v1362
    %v5553 = vpack.c.b16 %v5550, %v5549
    %v5554 = vpack.c.b16 %v5552, %v5551
    %v5558 = vsel %vm231, %v5547, 0
    %v5561 = vsel %vm231, %v5548, 0
    %5563 = vmatpush.bf16.msra.mxu0 0
    %5564 = vmatpush.bf16.msra.mxu0 0
    %5565 = vmatpush.bf16.msra.mxu0 0
    %5566 = vmatpush.bf16.msra.mxu0 0
    %5567 = vmatpush.bf16.msra.mxu0 0
    %5568 = vmatpush.bf16.msra.mxu0 0
    %5569 = vmatpush.bf16.msra.mxu0 %v5554
    %5570 = vmatpush.bf16.msra.mxu0 %v5553
    %5571 = vmatmul.bf16.gmra.mxu0 %v5558
    %v5572 = vpop.f32.mrf.mxu0
    %v5573 = vadd.f32 0.0, %v5572
    %v5574 = vpop.f32.mrf.mxu0
    %v5575 = vadd.f32 0.0, %v5574
    %5576 = vmatmul.bf16.gmra.mxu0 %v5561
    %v5577 = vpop.f32.mrf.mxu0
    %v5578 = vadd.f32 0.0, %v5577
    %v5579 = vpop.f32.mrf.mxu0
    %v5580 = vadd.f32 0.0, %v5579
    %5581 = vdwg.mxu0
    %v5586 = vunpack.c.l.b16 %v4284
    %v5587 = vunpack.c.l.b16 %v4285
    %v5588 = vunpack.c.l.b16 %v4286
    %v5589 = vunpack.c.l.b16 %v4287
    %v5590 = vpack.c.b16 %v5587, %v5586
    %v5591 = vpack.c.b16 %v5589, %v5588
    %v5592 = vunpack.c.l.b16 %v1364
    %v5593 = vunpack.c.l.b16 %v1366
    %v5594 = vunpack.c.l.b16 %v1368
    %v5595 = vunpack.c.l.b16 %v1370
    %v5596 = vpack.c.b16 %v5593, %v5592
    %v5597 = vpack.c.b16 %v5595, %v5594
    %v5601 = vsel %vm231, %v5590, 0
    %v5604 = vsel %vm231, %v5591, 0
    %5606 = vmatpush.bf16.msra.mxu0 0
    %5607 = vmatpush.bf16.msra.mxu0 0
    %5608 = vmatpush.bf16.msra.mxu0 0
    %5609 = vmatpush.bf16.msra.mxu0 0
    %5610 = vmatpush.bf16.msra.mxu0 0
    %5611 = vmatpush.bf16.msra.mxu0 0
    %5612 = vmatpush.bf16.msra.mxu0 %v5597
    %5613 = vmatpush.bf16.msra.mxu0 %v5596
    %5614 = vmatmul.bf16.gmra.mxu0 %v5601
    %v5615 = vpop.f32.mrf.mxu0
    %v5616 = vadd.f32 0.0, %v5615
    %v5617 = vpop.f32.mrf.mxu0
    %v5618 = vadd.f32 0.0, %v5617
    %5619 = vmatmul.bf16.gmra.mxu0 %v5604
    %v5620 = vpop.f32.mrf.mxu0
    %v5621 = vadd.f32 0.0, %v5620
    %v5622 = vpop.f32.mrf.mxu0
    %v5623 = vadd.f32 0.0, %v5622
    %5624 = vdwg.mxu0
    %v5629 = vunpack.c.l.b16 %v4288
    %v5630 = vunpack.c.l.b16 %v4289
    %v5631 = vunpack.c.l.b16 %v4290
    %v5632 = vunpack.c.l.b16 %v4291
    %v5633 = vpack.c.b16 %v5630, %v5629
    %v5634 = vpack.c.b16 %v5632, %v5631
    %v5635 = vunpack.c.l.b16 %v1372
    %v5636 = vunpack.c.l.b16 %v1374
    %v5637 = vunpack.c.l.b16 %v1376
    %v5638 = vunpack.c.l.b16 %v1378
    %v5639 = vpack.c.b16 %v5636, %v5635
    %v5640 = vpack.c.b16 %v5638, %v5637
    %v5644 = vsel %vm231, %v5633, 0
    %v5647 = vsel %vm231, %v5634, 0
    %5649 = vmatpush.bf16.msra.mxu0 0
    %5650 = vmatpush.bf16.msra.mxu0 0
    %5651 = vmatpush.bf16.msra.mxu0 0
    %5652 = vmatpush.bf16.msra.mxu0 0
    %5653 = vmatpush.bf16.msra.mxu0 0
    %5654 = vmatpush.bf16.msra.mxu0 0
    %5655 = vmatpush.bf16.msra.mxu0 %v5640
    %5656 = vmatpush.bf16.msra.mxu0 %v5639
    %5657 = vmatmul.bf16.gmra.mxu0 %v5644
    %v5658 = vpop.f32.mrf.mxu0
    %v5659 = vadd.f32 0.0, %v5658
    %v5660 = vpop.f32.mrf.mxu0
    %v5661 = vadd.f32 0.0, %v5660
    %5662 = vmatmul.bf16.gmra.mxu0 %v5647
    %v5663 = vpop.f32.mrf.mxu0
    %v5664 = vadd.f32 0.0, %v5663
    %v5665 = vpop.f32.mrf.mxu0
    %v5666 = vadd.f32 0.0, %v5665
    %5667 = vdwg.mxu0
    %5700 = vrot.lane.b32.xlu0 %v4670, 8
    %v5701 = vpop.permute.xlu0 %5700
    %5702 = vrot.lane.b32.xlu0 %v4672, 8
    %v5703 = vpop.permute.xlu0 %5702
    %5704 = vrot.lane.b32.xlu0 %v4675, 8
    %v5705 = vpop.permute.xlu0 %5704
    %5706 = vrot.lane.b32.xlu0 %v4677, 8
    %v5707 = vpop.permute.xlu0 %5706
    %5708 = vrot.lane.b32.xlu0 %v4713, 8
    %v5709 = vpop.permute.xlu0 %5708
    %5710 = vrot.lane.b32.xlu0 %v4715, 8
    %v5711 = vpop.permute.xlu0 %5710
    %5712 = vrot.lane.b32.xlu0 %v4718, 8
    %v5713 = vpop.permute.xlu0 %5712
    %5714 = vrot.lane.b32.xlu0 %v4720, 8
    %v5715 = vpop.permute.xlu0 %5714
    %5716 = vrot.lane.b32.xlu0 %v4756, 8
    %v5717 = vpop.permute.xlu0 %5716
    %5718 = vrot.lane.b32.xlu0 %v4758, 8
    %v5719 = vpop.permute.xlu0 %5718
    %5720 = vrot.lane.b32.xlu0 %v4761, 8
    %v5721 = vpop.permute.xlu0 %5720
    %5722 = vrot.lane.b32.xlu0 %v4763, 8
    %v5723 = vpop.permute.xlu0 %5722
    %5724 = vrot.lane.b32.xlu0 %v4799, 8
    %v5725 = vpop.permute.xlu0 %5724
    %5726 = vrot.lane.b32.xlu0 %v4801, 8
    %v5727 = vpop.permute.xlu0 %5726
    %5728 = vrot.lane.b32.xlu0 %v4804, 8
    %v5729 = vpop.permute.xlu0 %5728
    %5730 = vrot.lane.b32.xlu0 %v4806, 8
    %v5731 = vpop.permute.xlu0 %5730
    %5732 = vrot.lane.b32.xlu0 %v4842, 8
    %v5733 = vpop.permute.xlu0 %5732
    %5734 = vrot.lane.b32.xlu0 %v4844, 8
    %v5735 = vpop.permute.xlu0 %5734
    %5736 = vrot.lane.b32.xlu0 %v4847, 8
    %v5737 = vpop.permute.xlu0 %5736
    %5738 = vrot.lane.b32.xlu0 %v4849, 8
    %v5739 = vpop.permute.xlu0 %5738
    %5740 = vrot.lane.b32.xlu0 %v4885, 8
    %v5741 = vpop.permute.xlu0 %5740
    %5742 = vrot.lane.b32.xlu0 %v4887, 8
    %v5743 = vpop.permute.xlu0 %5742
    %5744 = vrot.lane.b32.xlu0 %v4890, 8
    %v5745 = vpop.permute.xlu0 %5744
    %5746 = vrot.lane.b32.xlu0 %v4892, 8
    %v5747 = vpop.permute.xlu0 %5746
    %5748 = vrot.lane.b32.xlu0 %v4928, 8
    %v5749 = vpop.permute.xlu0 %5748
    %5750 = vrot.lane.b32.xlu0 %v4930, 8
    %v5751 = vpop.permute.xlu0 %5750
    %5752 = vrot.lane.b32.xlu0 %v4933, 8
    %v5753 = vpop.permute.xlu0 %5752
    %5754 = vrot.lane.b32.xlu0 %v4935, 8
    %v5755 = vpop.permute.xlu0 %5754
    %5756 = vrot.lane.b32.xlu0 %v4971, 8
    %v5757 = vpop.permute.xlu0 %5756
    %5758 = vrot.lane.b32.xlu0 %v4973, 8
    %v5759 = vpop.permute.xlu0 %5758
    %5760 = vrot.lane.b32.xlu0 %v4976, 8
    %v5761 = vpop.permute.xlu0 %5760
    %5762 = vrot.lane.b32.xlu0 %v4978, 8
    %v5763 = vpop.permute.xlu0 %5762
    %5828 = vrot.lane.b32.xlu0 %v5014, 16
    %v5829 = vpop.permute.xlu0 %5828
    %5830 = vrot.lane.b32.xlu0 %v5016, 16
    %v5831 = vpop.permute.xlu0 %5830
    %5832 = vrot.lane.b32.xlu0 %v5019, 16
    %v5833 = vpop.permute.xlu0 %5832
    %5834 = vrot.lane.b32.xlu0 %v5021, 16
    %v5835 = vpop.permute.xlu0 %5834
    %5836 = vrot.lane.b32.xlu0 %v5057, 16
    %v5837 = vpop.permute.xlu0 %5836
    %5838 = vrot.lane.b32.xlu0 %v5059, 16
    %v5839 = vpop.permute.xlu0 %5838
    %5840 = vrot.lane.b32.xlu0 %v5062, 16
    %v5841 = vpop.permute.xlu0 %5840
    %5842 = vrot.lane.b32.xlu0 %v5064, 16
    %v5843 = vpop.permute.xlu0 %5842
    %5844 = vrot.lane.b32.xlu0 %v5100, 16
    %v5845 = vpop.permute.xlu0 %5844
    %5846 = vrot.lane.b32.xlu0 %v5102, 16
    %v5847 = vpop.permute.xlu0 %5846
    %5848 = vrot.lane.b32.xlu0 %v5105, 16
    %v5849 = vpop.permute.xlu0 %5848
    %5850 = vrot.lane.b32.xlu0 %v5107, 16
    %v5851 = vpop.permute.xlu0 %5850
    %5852 = vrot.lane.b32.xlu0 %v5143, 16
    %v5853 = vpop.permute.xlu0 %5852
    %5854 = vrot.lane.b32.xlu0 %v5145, 16
    %v5855 = vpop.permute.xlu0 %5854
    %5856 = vrot.lane.b32.xlu0 %v5148, 16
    %v5857 = vpop.permute.xlu0 %5856
    %5858 = vrot.lane.b32.xlu0 %v5150, 16
    %v5859 = vpop.permute.xlu0 %5858
    %5860 = vrot.lane.b32.xlu0 %v5186, 16
    %v5861 = vpop.permute.xlu0 %5860
    %5862 = vrot.lane.b32.xlu0 %v5188, 16
    %v5863 = vpop.permute.xlu0 %5862
    %5864 = vrot.lane.b32.xlu0 %v5191, 16
    %v5865 = vpop.permute.xlu0 %5864
    %5866 = vrot.lane.b32.xlu0 %v5193, 16
    %v5867 = vpop.permute.xlu0 %5866
    %5868 = vrot.lane.b32.xlu0 %v5229, 16
    %v5869 = vpop.permute.xlu0 %5868
    %5870 = vrot.lane.b32.xlu0 %v5231, 16
    %v5871 = vpop.permute.xlu0 %5870
    %5872 = vrot.lane.b32.xlu0 %v5234, 16
    %v5873 = vpop.permute.xlu0 %5872
    %5874 = vrot.lane.b32.xlu0 %v5236, 16
    %v5875 = vpop.permute.xlu0 %5874
    %5876 = vrot.lane.b32.xlu0 %v5272, 16
    %v5877 = vpop.permute.xlu0 %5876
    %5878 = vrot.lane.b32.xlu0 %v5274, 16
    %v5879 = vpop.permute.xlu0 %5878
    %5880 = vrot.lane.b32.xlu0 %v5277, 16
    %v5881 = vpop.permute.xlu0 %5880
    %5882 = vrot.lane.b32.xlu0 %v5279, 16
    %v5883 = vpop.permute.xlu0 %5882
    %5884 = vrot.lane.b32.xlu0 %v5315, 16
    %v5885 = vpop.permute.xlu0 %5884
    %5886 = vrot.lane.b32.xlu0 %v5317, 16
    %v5887 = vpop.permute.xlu0 %5886
    %5888 = vrot.lane.b32.xlu0 %v5320, 16
    %v5889 = vpop.permute.xlu0 %5888
    %5890 = vrot.lane.b32.xlu0 %v5322, 16
    %v5891 = vpop.permute.xlu0 %5890
    %5956 = vrot.lane.b32.xlu0 %v5358, 24
    %v5957 = vpop.permute.xlu0 %5956
    %5958 = vrot.lane.b32.xlu0 %v5360, 24
    %v5959 = vpop.permute.xlu0 %5958
    %5960 = vrot.lane.b32.xlu0 %v5363, 24
    %v5961 = vpop.permute.xlu0 %5960
    %5962 = vrot.lane.b32.xlu0 %v5365, 24
    %v5963 = vpop.permute.xlu0 %5962
    %5964 = vrot.lane.b32.xlu0 %v5401, 24
    %v5965 = vpop.permute.xlu0 %5964
    %5966 = vrot.lane.b32.xlu0 %v5403, 24
    %v5967 = vpop.permute.xlu0 %5966
    %5968 = vrot.lane.b32.xlu0 %v5406, 24
    %v5969 = vpop.permute.xlu0 %5968
    %5970 = vrot.lane.b32.xlu0 %v5408, 24
    %v5971 = vpop.permute.xlu0 %5970
    %5972 = vrot.lane.b32.xlu0 %v5444, 24
    %v5973 = vpop.permute.xlu0 %5972
    %5974 = vrot.lane.b32.xlu0 %v5446, 24
    %v5975 = vpop.permute.xlu0 %5974
    %5976 = vrot.lane.b32.xlu0 %v5449, 24
    %v5977 = vpop.permute.xlu0 %5976
    %5978 = vrot.lane.b32.xlu0 %v5451, 24
    %v5979 = vpop.permute.xlu0 %5978
    %5980 = vrot.lane.b32.xlu0 %v5487, 24
    %v5981 = vpop.permute.xlu0 %5980
    %5982 = vrot.lane.b32.xlu0 %v5489, 24
    %v5983 = vpop.permute.xlu0 %5982
    %5984 = vrot.lane.b32.xlu0 %v5492, 24
    %v5985 = vpop.permute.xlu0 %5984
    %5986 = vrot.lane.b32.xlu0 %v5494, 24
    %v5987 = vpop.permute.xlu0 %5986
    %5988 = vrot.lane.b32.xlu0 %v5530, 24
    %v5989 = vpop.permute.xlu0 %5988
    %5990 = vrot.lane.b32.xlu0 %v5532, 24
    %v5991 = vpop.permute.xlu0 %5990
    %5992 = vrot.lane.b32.xlu0 %v5535, 24
    %v5993 = vpop.permute.xlu0 %5992
    %5994 = vrot.lane.b32.xlu0 %v5537, 24
    %v5995 = vpop.permute.xlu0 %5994
    %5996 = vrot.lane.b32.xlu0 %v5573, 24
    %v5997 = vpop.permute.xlu0 %5996
    %5998 = vrot.lane.b32.xlu0 %v5575, 24
    %v5999 = vpop.permute.xlu0 %5998
    %6000 = vrot.lane.b32.xlu0 %v5578, 24
    %v6001 = vpop.permute.xlu0 %6000
    %6002 = vrot.lane.b32.xlu0 %v5580, 24
    %v6003 = vpop.permute.xlu0 %6002
    %6004 = vrot.lane.b32.xlu0 %v5616, 24
    %v6005 = vpop.permute.xlu0 %6004
    %6006 = vrot.lane.b32.xlu0 %v5618, 24
    %v6007 = vpop.permute.xlu0 %6006
    %6008 = vrot.lane.b32.xlu0 %v5621, 24
    %v6009 = vpop.permute.xlu0 %6008
    %6010 = vrot.lane.b32.xlu0 %v5623, 24
    %v6011 = vpop.permute.xlu0 %6010
    %6012 = vrot.lane.b32.xlu0 %v5659, 24
    %v6013 = vpop.permute.xlu0 %6012
    %6014 = vrot.lane.b32.xlu0 %v5661, 24
    %v6015 = vpop.permute.xlu0 %6014
    %6016 = vrot.lane.b32.xlu0 %v5664, 24
    %v6017 = vpop.permute.xlu0 %6016
    %6018 = vrot.lane.b32.xlu0 %v5666, 24
    %v6019 = vpop.permute.xlu0 %6018
    %v6052 = vsel %vm1391, %v4326, %v5701
    %v6053 = vsel %vm1391, %v4328, %v5703
    %v6054 = vsel %vm1391, %v4331, %v5705
    %v6055 = vsel %vm1391, %v4333, %v5707
    %v6056 = vsel %vm1391, %v4369, %v5709
    %v6057 = vsel %vm1391, %v4371, %v5711
    %v6058 = vsel %vm1391, %v4374, %v5713
    %v6059 = vsel %vm1391, %v4376, %v5715
    %v6060 = vsel %vm1391, %v4412, %v5717
    %v6061 = vsel %vm1391, %v4414, %v5719
    %v6062 = vsel %vm1391, %v4417, %v5721
    %v6063 = vsel %vm1391, %v4419, %v5723
    %v6064 = vsel %vm1391, %v4455, %v5725
    %v6065 = vsel %vm1391, %v4457, %v5727
    %v6066 = vsel %vm1391, %v4460, %v5729
    %v6067 = vsel %vm1391, %v4462, %v5731
    %v6068 = vsel %vm1391, %v4498, %v5733
    %v6069 = vsel %vm1391, %v4500, %v5735
    %v6070 = vsel %vm1391, %v4503, %v5737
    %v6071 = vsel %vm1391, %v4505, %v5739
    %v6072 = vsel %vm1391, %v4541, %v5741
    %v6073 = vsel %vm1391, %v4543, %v5743
    %v6074 = vsel %vm1391, %v4546, %v5745
    %v6075 = vsel %vm1391, %v4548, %v5747
    %v6076 = vsel %vm1391, %v4584, %v5749
    %v6077 = vsel %vm1391, %v4586, %v5751
    %v6078 = vsel %vm1391, %v4589, %v5753
    %v6079 = vsel %vm1391, %v4591, %v5755
    %v6080 = vsel %vm1391, %v4627, %v5757
    %v6081 = vsel %vm1391, %v4629, %v5759
    %v6082 = vsel %vm1391, %v4632, %v5761
    %v6083 = vsel %vm1391, %v4634, %v5763
    %vm6084 = vcmask 130048
    %v6085 = vsel %vm6084, %v6052, %v5829
    %v6086 = vsel %vm6084, %v6053, %v5831
    %v6087 = vsel %vm6084, %v6054, %v5833
    %v6088 = vsel %vm6084, %v6055, %v5835
    %v6089 = vsel %vm6084, %v6056, %v5837
    %v6090 = vsel %vm6084, %v6057, %v5839
    %v6091 = vsel %vm6084, %v6058, %v5841
    %v6092 = vsel %vm6084, %v6059, %v5843
    %v6093 = vsel %vm6084, %v6060, %v5845
    %v6094 = vsel %vm6084, %v6061, %v5847
    %v6095 = vsel %vm6084, %v6062, %v5849
    %v6096 = vsel %vm6084, %v6063, %v5851
    %v6097 = vsel %vm6084, %v6064, %v5853
    %v6098 = vsel %vm6084, %v6065, %v5855
    %v6099 = vsel %vm6084, %v6066, %v5857
    %v6100 = vsel %vm6084, %v6067, %v5859
    %v6101 = vsel %vm6084, %v6068, %v5861
    %v6102 = vsel %vm6084, %v6069, %v5863
    %v6103 = vsel %vm6084, %v6070, %v5865
    %v6104 = vsel %vm6084, %v6071, %v5867
    %v6105 = vsel %vm6084, %v6072, %v5869
    %v6106 = vsel %vm6084, %v6073, %v5871
    %v6107 = vsel %vm6084, %v6074, %v5873
    %v6108 = vsel %vm6084, %v6075, %v5875
    %v6109 = vsel %vm6084, %v6076, %v5877
    %v6110 = vsel %vm6084, %v6077, %v5879
    %v6111 = vsel %vm6084, %v6078, %v5881
    %v6112 = vsel %vm6084, %v6079, %v5883
    %v6113 = vsel %vm6084, %v6080, %v5885
    %v6114 = vsel %vm6084, %v6081, %v5887
    %v6115 = vsel %vm6084, %v6082, %v5889
    %v6116 = vsel %vm6084, %v6083, %v5891
    %vm6117 = vcmask 195584
    %v6118 = vsel %vm6117, %v6085, %v5957
    %v6119 = vsel %vm6117, %v6086, %v5959
    %v6120 = vsel %vm6117, %v6087, %v5961
    %v6121 = vsel %vm6117, %v6088, %v5963
    %v6122 = vsel %vm6117, %v6089, %v5965
    %v6123 = vsel %vm6117, %v6090, %v5967
    %v6124 = vsel %vm6117, %v6091, %v5969
    %v6125 = vsel %vm6117, %v6092, %v5971
    %v6126 = vsel %vm6117, %v6093, %v5973
    %v6127 = vsel %vm6117, %v6094, %v5975
    %v6128 = vsel %vm6117, %v6095, %v5977
    %v6129 = vsel %vm6117, %v6096, %v5979
    %v6130 = vsel %vm6117, %v6097, %v5981
    %v6131 = vsel %vm6117, %v6098, %v5983
    %v6132 = vsel %vm6117, %v6099, %v5985
    %v6133 = vsel %vm6117, %v6100, %v5987
    %v6134 = vsel %vm6117, %v6101, %v5989
    %v6135 = vsel %vm6117, %v6102, %v5991
    %v6136 = vsel %vm6117, %v6103, %v5993
    %v6137 = vsel %vm6117, %v6104, %v5995
    %v6138 = vsel %vm6117, %v6105, %v5997
    %v6139 = vsel %vm6117, %v6106, %v5999
    %v6140 = vsel %vm6117, %v6107, %v6001
    %v6141 = vsel %vm6117, %v6108, %v6003
    %v6142 = vsel %vm6117, %v6109, %v6005
    %v6143 = vsel %vm6117, %v6110, %v6007
    %v6144 = vsel %vm6117, %v6111, %v6009
    %v6145 = vsel %vm6117, %v6112, %v6011
    %v6146 = vsel %vm6117, %v6113, %v6013
    %v6147 = vsel %vm6117, %v6114, %v6015
    %v6148 = vsel %vm6117, %v6115, %v6017
    %v6149 = vsel %vm6117, %v6116, %v6019
    %v6150 = vpack.c.bf16 %v6119, %v6118
    %v6151 = vpack.c.bf16 %v6121, %v6120
    %v6152 = vpack.c.bf16 %v6123, %v6122
    %v6153 = vpack.c.bf16 %v6125, %v6124
    %v6154 = vpack.c.bf16 %v6127, %v6126
    %v6155 = vpack.c.bf16 %v6129, %v6128
    %v6156 = vpack.c.bf16 %v6131, %v6130
    %v6157 = vpack.c.bf16 %v6133, %v6132
    %v6158 = vpack.c.bf16 %v6135, %v6134
    %v6159 = vpack.c.bf16 %v6137, %v6136
    %v6160 = vpack.c.bf16 %v6139, %v6138
    %v6161 = vpack.c.bf16 %v6141, %v6140
    %v6162 = vpack.c.bf16 %v6143, %v6142
    %v6163 = vpack.c.bf16 %v6145, %v6144
    %v6164 = vpack.c.bf16 %v6147, %v6146
    %v6165 = vpack.c.bf16 %v6149, %v6148
    %v6166 = vld [vmem:[#allocation10] sm:$0xf]
    %v6167 = vld [vmem:[#allocation10 + $0x4] sm:$0xf]
    %v6168 = vld [vmem:[#allocation10 + $0x8] sm:$0xf]
    %v6169 = vld [vmem:[#allocation10 + $0xc] sm:$0xf]
    %v6170 = vld [vmem:[%s5] sm:$0x1]
    %v6172 = vperm.slane %v6170, 0
    %v6178 = vunpack.c.l.b16 %v6166
    %v6179 = vunpack.c.l.b16 %v6167
    %v6180 = vunpack.c.l.b16 %v6168
    %v6181 = vunpack.c.l.b16 %v6169
    %v6182 = vpack.c.b16 %v6179, %v6178
    %v6183 = vpack.c.b16 %v6181, %v6180
    %v6187 = vsel %vm231, %v6150, 0
    %v6190 = vsel %vm231, %v6151, 0
    %v6193 = vsel %vm231, %v6152, 0
    %v6196 = vsel %vm231, %v6153, 0
    %v6199 = vsel %vm231, %v6154, 0
    %v6202 = vsel %vm231, %v6155, 0
    %v6205 = vsel %vm231, %v6156, 0
    %v6208 = vsel %vm231, %v6157, 0
    %v6211 = vsel %vm231, %v6158, 0
    %v6214 = vsel %vm231, %v6159, 0
    %v6217 = vsel %vm231, %v6160, 0
    %v6220 = vsel %vm231, %v6161, 0
    %v6223 = vsel %vm231, %v6162, 0
    %v6226 = vsel %vm231, %v6163, 0
    %v6229 = vsel %vm231, %v6164, 0
    %v6232 = vsel %vm231, %v6165, 0
    %6234 = vmatpush.bf16.msra.mxu0 0
    %6235 = vmatpush.bf16.msra.mxu0 0
    %6236 = vmatpush.bf16.msra.mxu0 0
    %6237 = vmatpush.bf16.msra.mxu0 0
    %6238 = vmatpush.bf16.msra.mxu0 0
    %6239 = vmatpush.bf16.msra.mxu0 0
    %6240 = vmatpush.bf16.msra.mxu0 %v6183
    %6241 = vmatpush.bf16.msra.mxu0 %v6182
    %6242 = vmatmul.bf16.gmra.mxu0 %v6187
    %v6243 = vpop.f32.mrf.mxu0
    %v6244 = vadd.f32 %v6172, %v6243
    %v6245 = vpop.f32.mrf.mxu0
    %v6246 = vadd.f32 %v6172, %v6245
    %6247 = vmatmul.bf16.gmra.mxu0 %v6190
    %v6248 = vpop.f32.mrf.mxu0
    %v6249 = vadd.f32 %v6172, %v6248
    %v6250 = vpop.f32.mrf.mxu0
    %v6251 = vadd.f32 %v6172, %v6250
    %6252 = vmatmul.bf16.gmra.mxu0 %v6193
    %v6253 = vpop.f32.mrf.mxu0
    %v6254 = vadd.f32 %v6172, %v6253
    %v6255 = vpop.f32.mrf.mxu0
    %v6256 = vadd.f32 %v6172, %v6255
    %6257 = vmatmul.bf16.gmra.mxu0 %v6196
    %v6258 = vpop.f32.mrf.mxu0
    %v6259 = vadd.f32 %v6172, %v6258
    %v6260 = vpop.f32.mrf.mxu0
    %v6261 = vadd.f32 %v6172, %v6260
    %6262 = vmatmul.bf16.gmra.mxu0 %v6199
    %v6263 = vpop.f32.mrf.mxu0
    %v6264 = vadd.f32 %v6172, %v6263
    %v6265 = vpop.f32.mrf.mxu0
    %v6266 = vadd.f32 %v6172, %v6265
    %6267 = vmatmul.bf16.gmra.mxu0 %v6202
    %v6268 = vpop.f32.mrf.mxu0
    %v6269 = vadd.f32 %v6172, %v6268
    %v6270 = vpop.f32.mrf.mxu0
    %v6271 = vadd.f32 %v6172, %v6270
    %6272 = vmatmul.bf16.gmra.mxu0 %v6205
    %v6273 = vpop.f32.mrf.mxu0
    %v6274 = vadd.f32 %v6172, %v6273
    %v6275 = vpop.f32.mrf.mxu0
    %v6276 = vadd.f32 %v6172, %v6275
    %6277 = vmatmul.bf16.gmra.mxu0 %v6208
    %v6278 = vpop.f32.mrf.mxu0
    %v6279 = vadd.f32 %v6172, %v6278
    %v6280 = vpop.f32.mrf.mxu0
    %v6281 = vadd.f32 %v6172, %v6280
    %6282 = vmatmul.bf16.gmra.mxu0 %v6211
    %v6283 = vpop.f32.mrf.mxu0
    %v6284 = vadd.f32 %v6172, %v6283
    %v6285 = vpop.f32.mrf.mxu0
    %v6286 = vadd.f32 %v6172, %v6285
    %6287 = vmatmul.bf16.gmra.mxu0 %v6214
    %v6288 = vpop.f32.mrf.mxu0
    %v6289 = vadd.f32 %v6172, %v6288
    %v6290 = vpop.f32.mrf.mxu0
    %v6291 = vadd.f32 %v6172, %v6290
    %6292 = vmatmul.bf16.gmra.mxu0 %v6217
    %v6293 = vpop.f32.mrf.mxu0
    %v6294 = vadd.f32 %v6172, %v6293
    %v6295 = vpop.f32.mrf.mxu0
    %v6296 = vadd.f32 %v6172, %v6295
    %6297 = vmatmul.bf16.gmra.mxu0 %v6220
    %v6298 = vpop.f32.mrf.mxu0
    %v6299 = vadd.f32 %v6172, %v6298
    %v6300 = vpop.f32.mrf.mxu0
    %v6301 = vadd.f32 %v6172, %v6300
    %6302 = vmatmul.bf16.gmra.mxu0 %v6223
    %v6303 = vpop.f32.mrf.mxu0
    %v6304 = vadd.f32 %v6172, %v6303
    %v6305 = vpop.f32.mrf.mxu0
    %v6306 = vadd.f32 %v6172, %v6305
    %6307 = vmatmul.bf16.gmra.mxu0 %v6226
    %v6308 = vpop.f32.mrf.mxu0
    %v6309 = vadd.f32 %v6172, %v6308
    %v6310 = vpop.f32.mrf.mxu0
    %v6311 = vadd.f32 %v6172, %v6310
    %6312 = vmatmul.bf16.gmra.mxu0 %v6229
    %v6313 = vpop.f32.mrf.mxu0
    %v6314 = vadd.f32 %v6172, %v6313
    %v6315 = vpop.f32.mrf.mxu0
    %v6316 = vadd.f32 %v6172, %v6315
    %6317 = vmatmul.bf16.gmra.mxu0 %v6232
    %v6318 = vpop.f32.mrf.mxu0
    %v6319 = vadd.f32 %v6172, %v6318
    %v6320 = vpop.f32.mrf.mxu0
    %v6321 = vadd.f32 %v6172, %v6320
    %6322 = vdwg.mxu0
    %6323 = vst.msk [vmem:[#allocation11] sm:$0xff] %vm231, %v6244
    %6324 = vst.msk [vmem:[#allocation11 + $0x8] sm:$0xff] %vm231, %v6246
    %6325 = vst.msk [vmem:[#allocation11 + $0x10] sm:$0xff] %vm231, %v6249
    %6326 = vst.msk [vmem:[#allocation11 + $0x18] sm:$0xff] %vm231, %v6251
    %6327 = vst.msk [vmem:[#allocation11 + $0x20] sm:$0xff] %vm231, %v6254
    %6328 = vst.msk [vmem:[#allocation11 + $0x28] sm:$0xff] %vm231, %v6256
    %6329 = vst.msk [vmem:[#allocation11 + $0x30] sm:$0xff] %vm231, %v6259
    %6330 = vst.msk [vmem:[#allocation11 + $0x38] sm:$0xff] %vm231, %v6261
    %6331 = vst.msk [vmem:[#allocation11 + $0x40] sm:$0xff] %vm231, %v6264
    %6332 = vst.msk [vmem:[#allocation11 + $0x48] sm:$0xff] %vm231, %v6266
    %6333 = vst.msk [vmem:[#allocation11 + $0x50] sm:$0xff] %vm231, %v6269
    %6334 = vst.msk [vmem:[#allocation11 + $0x58] sm:$0xff] %vm231, %v6271
    %6335 = vst.msk [vmem:[#allocation11 + $0x60] sm:$0xff] %vm231, %v6274
    %6336 = vst.msk [vmem:[#allocation11 + $0x68] sm:$0xff] %vm231, %v6276
    %6337 = vst.msk [vmem:[#allocation11 + $0x70] sm:$0xff] %vm231, %v6279
    %6338 = vst.msk [vmem:[#allocation11 + $0x78] sm:$0xff] %vm231, %v6281
    %6339 = vst.msk [vmem:[#allocation11 + $0x80] sm:$0xff] %vm231, %v6284
    %6340 = vst.msk [vmem:[#allocation11 + $0x88] sm:$0xff] %vm231, %v6286
    %6341 = vst.msk [vmem:[#allocation11 + $0x90] sm:$0xff] %vm231, %v6289
    %6342 = vst.msk [vmem:[#allocation11 + $0x98] sm:$0xff] %vm231, %v6291
    %6343 = vst.msk [vmem:[#allocation11 + $0xa0] sm:$0xff] %vm231, %v6294
    %6344 = vst.msk [vmem:[#allocation11 + $0xa8] sm:$0xff] %vm231, %v6296
    %6345 = vst.msk [vmem:[#allocation11 + $0xb0] sm:$0xff] %vm231, %v6299
    %6346 = vst.msk [vmem:[#allocation11 + $0xb8] sm:$0xff] %vm231, %v6301
    %6347 = vst.msk [vmem:[#allocation11 + $0xc0] sm:$0xff] %vm231, %v6304
    %6348 = vst.msk [vmem:[#allocation11 + $0xc8] sm:$0xff] %vm231, %v6306
    %6349 = vst.msk [vmem:[#allocation11 + $0xd0] sm:$0xff] %vm231, %v6309
    %6350 = vst.msk [vmem:[#allocation11 + $0xd8] sm:$0xff] %vm231, %v6311
    %6351 = vst.msk [vmem:[#allocation11 + $0xe0] sm:$0xff] %vm231, %v6314
    %6352 = vst.msk [vmem:[#allocation11 + $0xe8] sm:$0xff] %vm231, %v6316
    %6353 = vst.msk [vmem:[#allocation11 + $0xf0] sm:$0xff] %vm231, %v6319
    %6354 = vst.msk [vmem:[#allocation11 + $0xf8] sm:$0xff] %vm231, %v6321
    // Predicated region
    $region46: #{tpu_custom_call.1} parent=1 // pred_check
      _
    $region47: #{tpu_custom_call.1} parent=1 // pred_check_branch
      %6356 = sbr.rel (0) target = $region49
    $region48: #{tpu_custom_call.1} parent=1 // pred_region
      %6358 = vsyncadd [#allocation4], 0
      %s6359 = sshll.u32 [#allocation11], 4
      %s6360 = int_to_ptr.vmem [resolvable:$true] %s6359
      %s6361 = sshll.u32 %s6, 4
      %s6362 = int_to_ptr.hbm [resolvable:$true] %s6361
      %6367 = dma.vmem_to_hbm [thread:$0]  %s6360, 4096, %s6362, [#allocation4], 128, 128, 8
    $region49: #{tpu_custom_call.1} parent=1 // pred_fallthru
      _
    // Predicated region
    $region50: #{tpu_custom_call.1} parent=1 // pred_check
      _
    $region51: #{tpu_custom_call.1} parent=1 // pred_check_branch
      %6369 = sbr.rel (0) target = $region53
    $region52: #{tpu_custom_call.1} parent=1 // pred_region
      %6371 = dma.done [#allocation4], 4096
    $region53: #{tpu_custom_call.1} parent=1 // pred_fallthru
      _
    %6372 = vsyncpa [#allocation3], 1
    %6373 = vsyncpa [#allocation6], 1
    %6374 = vsyncpa [#allocation9], 1
    %6375 = vsyncpa [#allocation4], 1

</llo_original>
